<compile_context>
chip_gen: v7x
topology: tpu7x:2x2x1
jax: 0.10.0
libtpu: 0.0.40
codegen_flags: <defaults>
</compile_context>

<pallas_src>
import jax
import jax.numpy as jnp
from jax.experimental import pallas as pl
from jax.experimental.pallas import tpu as pltpu

H1, H2, H3, H3P = 1024, 512, 300, 384   # hidden sizes; H3 padded to 384 lanes


def critic_kernel(x_ref, wbd_ref, b1_ref, w2a_ref, b2_ref,
                  w3_ref, b3_ref, w4r_ref, b4_ref, out_ref):
    # x = [obs | acts] in f32; cast to bf16 on the VPU (inputs are tiny).
    xb = x_ref[...].astype(jnp.bfloat16)                       # (TB, obs+act)

    # Fused block-diagonal matmul: [obs@W1 | acts@W2b], f32 accumulation.
    fused = jnp.dot(xb, wbd_ref[...],
                    preferred_element_type=jnp.float32)        # (TB, H1+H2)

    # FC1 + ReLU (left half of the fused result).
    h1 = jnp.maximum(fused[:, :H1] + b1_ref[...], 0.0)         # (TB, H1) f32
    p = fused[:, H1:]                                          # acts @ W2b

    # FC2 on cat([h1, acts]) == h1 @ W2a + acts @ W2b, then ReLU.
    h2 = (jnp.dot(h1.astype(jnp.bfloat16), w2a_ref[...],
                  preferred_element_type=jnp.float32)
          + p + b2_ref[...])
    h2 = jnp.maximum(h2, 0.0)                                  # (TB, H2) f32

    # FC3 + ReLU (output dim zero-padded 300 -> 384; relu(0 + 0) = 0, exact).
    h3 = jnp.dot(h2.astype(jnp.bfloat16), w3_ref[...],
                 preferred_element_type=jnp.float32) + b3_ref[...]
    h3 = jnp.maximum(h3, 0.0)                                  # (TB, H3P) f32

    # FC4 (single output column): VPU multiply + XLU lane reduction instead of
    # an MXU matmul that would use 1/256 of the array. Padded w4 lanes are zero.
    out = jnp.sum(h3 * w4r_ref[...], axis=-1, keepdims=True) + b4_ref[...]
    out_ref[...] = out.astype(out_ref.dtype)


def critic_forward(obs, acts, kernel_params, *, block_b=1024):
    """obs: (B, obs_dim) f32, acts: (B, act_dim) f32 -> (B, 1) f32."""
    (wbd, b1, w2a, b2, w3, b3, w4r, b4) = kernel_params
    B = obs.shape[0]
    # Single tiny wrapper op: concat obs/acts so the kernel sees one input
    # stream feeding the block-diagonal fused matmul.  No pad, no cast here.
    x = jnp.concatenate([obs, acts], axis=1)                   # (B, in_dim) f32
    in_dim = x.shape[1]

    # 128-aligned batch tile (MXU-M friendly), capped at block_b.  Partial last
    # blocks are masked by Pallas, so B need not be padded.
    tb = min(block_b, pl.cdiv(B, 128) * 128)
    # v7x megacore: if everything fits in one tile, split so the "parallel"
    # grid axis gives both TensorCores work (harmless on v5e/v6e).
    if pl.cdiv(B, tb) < 2 and tb >= 256:
        tb //= 2
    n_blocks = pl.cdiv(B, tb)

    # Weights/biases: constant index_map -> resident in VMEM across grid steps.
    def pinned(a):
        return pl.BlockSpec(a.shape, lambda i: (0,) * a.ndim)

    x_spec = pl.BlockSpec((tb, in_dim), lambda i: (i, 0))
    out_spec = pl.BlockSpec((tb, 1), lambda i: (i, 0))

    # Advisory cost estimate for XLA's scheduler.
    flops = 2 * B * (in_dim * (H1 + H2) + H1 * H2 + H2 * H3P + H3P)
    weight_bytes = (2 * (in_dim * (H1 + H2) + H1 * H2 + H2 * H3P)     # bf16
                    + 4 * (H1 + H2 + H3P + H3P + 1))                  # f32
    io_bytes = B * (4 * in_dim + 4)
    cost = pl.CostEstimate(flops=flops, transcendentals=0,
                           bytes_accessed=weight_bytes + io_bytes)

    return pl.pallas_call(
        critic_kernel,
        out_shape=jax.ShapeDtypeStruct((B, 1), jnp.float32),
        grid=(n_blocks,),
        in_specs=[x_spec,
                  pinned(wbd), pinned(b1),
                  pinned(w2a), pinned(b2),
                  pinned(w3), pinned(b3),
                  pinned(w4r), pinned(b4)],
        out_specs=out_spec,
        compiler_params=pltpu.CompilerParams(
            dimension_semantics=("parallel",),
            vmem_limit_bytes=32 << 20),
        cost_estimate=cost,
    )(x, wbd, b1, w2a, b2, w3, b3, w4r, b4)


def init_params(key, n_agent, dim_observation, dim_action):
    """f32 params mimicking nn.Linear default init (U[-1/sqrt(fan_in), +])."""
    obs_dim = dim_observation * n_agent
    act_dim = dim_action * n_agent

    def linear(k, fan_in, fan_out):
        kw, kb = jax.random.split(k)
        bound = 1.0 / jnp.sqrt(jnp.float32(fan_in))
        w = jax.random.uniform(kw, (fan_in, fan_out), jnp.float32, -bound, bound)
        b = jax.random.uniform(kb, (1, fan_out), jnp.float32, -bound, bound)
        return w, b

    k1, k2, k3, k4 = jax.random.split(key, 4)
    w1, b1 = linear(k1, obs_dim, H1)
    w2, b2 = linear(k2, H1 + act_dim, H2)
    w3, b3 = linear(k3, H2, H3)
    w4, b4 = linear(k4, H3, 1)
    return (w1, b1, w2, b2, w3, b3, w4, b4)


def prepare_kernel_params(params):
    """Build the block-diag fused weight, split W2, pad FC3/FC4 to 384 lanes,
    and cast the matmul weights to bf16 (biases stay f32)."""
    (w1, b1, w2, b2, w3, b3, w4, b4) = params
    obs_dim = w1.shape[0]
    act_dim = w2.shape[0] - H1
    w2a, w2b = w2[:H1, :], w2[H1:, :]                 # exact concat split

    # [obs|acts] @ [[W1, 0], [0, W2b]] == [obs@W1 | acts@W2b]
    wbd = jnp.zeros((obs_dim + act_dim, H1 + H2), jnp.float32)
    wbd = wbd.at[:obs_dim, :H1].set(w1)
    wbd = wbd.at[obs_dim:, H1:].set(w2b)

    w3p = jnp.pad(w3, ((0, 0), (0, H3P - H3)))        # (512, 384)
    b3p = jnp.pad(b3, ((0, 0), (0, H3P - H3)))        # (1, 384)
    w4r = jnp.pad(w4.T, ((0, 0), (0, H3P - H3)))      # (1, 384) f32 row

    bf = jnp.bfloat16
    return (wbd.astype(bf), b1, w2a.astype(bf), b2, w3p.astype(bf), b3p, w4r, b4)


def critic_ref_f32(obs, acts, params):
    """Pure-JAX f32 reference (exact PyTorch semantics)."""
    (w1, b1, w2, b2, w3, b3, w4, b4) = params
    h1 = jax.nn.relu(obs @ w1 + b1)
    h2 = jax.nn.relu(jnp.concatenate([h1, acts], axis=1) @ w2 + b2)
    h3 = jax.nn.relu(h2 @ w3 + b3)
    return h3 @ w4 + b4


def critic_ref_bf16(obs, acts, kernel_params):
    """Pure-JAX reference mimicking the kernel's bf16/f32 mixed precision."""
    (wbd, b1, w2a, b2, w3, b3, w4r, b4) = kernel_params
    bf = jnp.bfloat16
    xb = jnp.concatenate([obs, acts], axis=1).astype(bf)
    fused = jnp.dot(xb, wbd, preferred_element_type=jnp.float32)
    h1 = jax.nn.relu(fused[:, :H1] + b1)
    h2 = jax.nn.relu(jnp.dot(h1.astype(bf), w2a, preferred_element_type=jnp.float32)
                     + fused[:, H1:] + b2)
    h3 = jax.nn.relu(jnp.dot(h2.astype(bf), w3, preferred_element_type=jnp.float32) + b3)
    return jnp.sum(h3 * w4r, axis=-1, keepdims=True) + b4


if __name__ == "__main__":
    n_agent, dim_observation, dim_action = 2, 8, 4
    obs_dim = dim_observation * n_agent   # 16
    act_dim = dim_action * n_agent        # 8

    key = jax.random.PRNGKey(0)
    kp, ko, ka = jax.random.split(key, 3)
    params = init_params(kp, n_agent, dim_observation, dim_action)
    kernel_params = prepare_kernel_params(params)

    # Small-shape smoke test (batch=2, single partial tile).
    batch = 2
    obs = jax.random.normal(ko, (batch, obs_dim), jnp.float32)
    acts = jax.random.normal(ka, (batch, act_dim), jnp.float32)
    out = jax.block_until_ready(critic_forward(obs, acts, kernel_params))
    assert out.shape == (batch, 1)
    ref_mixed = critic_ref_bf16(obs, acts, kernel_params)
    ref_full = critic_ref_f32(obs, acts, params)
    assert jnp.allclose(out, ref_mixed, atol=1e-2, rtol=1e-2), (out, ref_mixed)
    assert jnp.allclose(out, ref_full, atol=5e-2, rtol=5e-2), (out, ref_full)

    # Multi-block / partial-last-block path (exercises the tile-split heuristic).
    batch2 = 300
    ko2, ka2 = jax.random.split(jax.random.PRNGKey(1))
    obs2 = jax.random.normal(ko2, (batch2, obs_dim), jnp.float32)
    acts2 = jax.random.normal(ka2, (batch2, act_dim), jnp.float32)
    out2 = jax.block_until_ready(critic_forward(obs2, acts2, kernel_params))
    assert out2.shape == (batch2, 1)
    ref2 = critic_ref_bf16(obs2, acts2, kernel_params)
    assert jnp.allclose(out2, ref2, atol=1e-2, rtol=1e-2)

    print("KERNEL_OK")
</pallas_src>

<mosaic_0001>
module attributes {stable_mosaic.version = 11 : i64} {
  func.func @critic_kernel(%arg0: i32, %arg1: memref<128x24xf32, #tpu.memory_space<vmem>>, %arg2: memref<24x1536xbf16, #tpu.memory_space<vmem>>, %arg3: memref<1x1024xf32, #tpu.memory_space<vmem>>, %arg4: memref<1024x512xbf16, #tpu.memory_space<vmem>>, %arg5: memref<1x512xf32, #tpu.memory_space<vmem>>, %arg6: memref<512x384xbf16, #tpu.memory_space<vmem>>, %arg7: memref<1x384xf32, #tpu.memory_space<vmem>>, %arg8: memref<1x384xf32, #tpu.memory_space<vmem>>, %arg9: memref<1x1xf32, #tpu.memory_space<vmem>>, %arg10: memref<128x1xf32, #tpu.memory_space<vmem>>) attributes {dimension_semantics = [#tpu.dimension_semantics<parallel>], iteration_bounds = array<i64: 1>, scalar_prefetch = 0 : i64, scratch_operands = 0 : i64, tpu.core_type = #tpu.core_type<tc>, window_params = [{transform_indices = @transform_0, window_bounds = array<i64: 128, 24>}, {pipeline_mode = #tpu.pipeline_mode<synchronous>, transform_indices = @transform_1, window_bounds = array<i64: 24, 1536>}, {pipeline_mode = #tpu.pipeline_mode<synchronous>, transform_indices = @transform_2, window_bounds = array<i64: 1, 1024>}, {pipeline_mode = #tpu.pipeline_mode<synchronous>, transform_indices = @transform_3, window_bounds = array<i64: 1024, 512>}, {pipeline_mode = #tpu.pipeline_mode<synchronous>, transform_indices = @transform_4, window_bounds = array<i64: 1, 512>}, {pipeline_mode = #tpu.pipeline_mode<synchronous>, transform_indices = @transform_5, window_bounds = array<i64: 512, 384>}, {pipeline_mode = #tpu.pipeline_mode<synchronous>, transform_indices = @transform_6, window_bounds = array<i64: 1, 384>}, {pipeline_mode = #tpu.pipeline_mode<synchronous>, transform_indices = @transform_7, window_bounds = array<i64: 1, 384>}, {pipeline_mode = #tpu.pipeline_mode<synchronous>, transform_indices = @transform_8, window_bounds = array<i64: 1, 1>}, {transform_indices = @transform_9, window_bounds = array<i64: 128, 1>}]} {
    %c0 = arith.constant 0 : index
    %c0_0 = arith.constant 0 : index
    %0 = vector.load %arg1[%c0, %c0_0] : memref<128x24xf32, #tpu.memory_space<vmem>>, vector<128x24xf32>
    %1 = arith.truncf %0 : vector<128x24xf32> to vector<128x24xbf16>
    %c0_1 = arith.constant 0 : index
    %c0_2 = arith.constant 0 : index
    %2 = vector.load %arg2[%c0_1, %c0_2] : memref<24x1536xbf16, #tpu.memory_space<vmem>>, vector<24x1536xbf16>
    %cst = arith.constant dense<0.000000e+00> : vector<128x1536xf32>
    %3 = tpu.matmul %1, %2, %cst {dimension_numbers = #tpu.dot_dimension_numbers<[1], [0], [0], [1], [0, 0, 1, 1], [], []>} : vector<128x24xbf16>, vector<24x1536xbf16>, vector<128x1536xf32> -> vector<128x1536xf32>
    %4 = vector.extract_strided_slice %3 {offsets = [0, 0], sizes = [128, 1024], strides = [1, 1]} : vector<128x1536xf32> to vector<128x1024xf32>
    %c0_3 = arith.constant 0 : index
    %c0_4 = arith.constant 0 : index
    %5 = vector.load %arg3[%c0_3, %c0_4] : memref<1x1024xf32, #tpu.memory_space<vmem>>, vector<1x1024xf32>
    %6 = vector.broadcast %5 : vector<1x1024xf32> to vector<128x1024xf32>
    %7 = arith.addf %4, %6 : vector<128x1024xf32>
    %cst_5 = arith.constant 0.000000e+00 : f32
    %8 = vector.broadcast %cst_5 : f32 to vector<128x1024xf32>
    %9 = arith.maximumf %7, %8 : vector<128x1024xf32>
    %10 = vector.extract_strided_slice %3 {offsets = [0, 1024], sizes = [128, 512], strides = [1, 1]} : vector<128x1536xf32> to vector<128x512xf32>
    %11 = arith.truncf %9 : vector<128x1024xf32> to vector<128x1024xbf16>
    %c0_6 = arith.constant 0 : index
    %c0_7 = arith.constant 0 : index
    %12 = vector.load %arg4[%c0_6, %c0_7] : memref<1024x512xbf16, #tpu.memory_space<vmem>>, vector<1024x512xbf16>
    %cst_8 = arith.constant dense<0.000000e+00> : vector<128x512xf32>
    %13 = tpu.matmul %11, %12, %cst_8 {dimension_numbers = #tpu.dot_dimension_numbers<[1], [0], [0], [1], [0, 0, 1, 1], [], []>} : vector<128x1024xbf16>, vector<1024x512xbf16>, vector<128x512xf32> -> vector<128x512xf32>
    %14 = arith.addf %13, %10 : vector<128x512xf32>
    %c0_9 = arith.constant 0 : index
    %c0_10 = arith.constant 0 : index
    %15 = vector.load %arg5[%c0_9, %c0_10] : memref<1x512xf32, #tpu.memory_space<vmem>>, vector<1x512xf32>
    %16 = vector.broadcast %15 : vector<1x512xf32> to vector<128x512xf32>
    %17 = arith.addf %14, %16 : vector<128x512xf32>
    %cst_11 = arith.constant 0.000000e+00 : f32
    %18 = vector.broadcast %cst_11 : f32 to vector<128x512xf32>
    %19 = arith.maximumf %17, %18 : vector<128x512xf32>
    %20 = arith.truncf %19 : vector<128x512xf32> to vector<128x512xbf16>
    %c0_12 = arith.constant 0 : index
    %c0_13 = arith.constant 0 : index
    %21 = vector.load %arg6[%c0_12, %c0_13] : memref<512x384xbf16, #tpu.memory_space<vmem>>, vector<512x384xbf16>
    %cst_14 = arith.constant dense<0.000000e+00> : vector<128x384xf32>
    %22 = tpu.matmul %20, %21, %cst_14 {dimension_numbers = #tpu.dot_dimension_numbers<[1], [0], [0], [1], [0, 0, 1, 1], [], []>} : vector<128x512xbf16>, vector<512x384xbf16>, vector<128x384xf32> -> vector<128x384xf32>
    %c0_15 = arith.constant 0 : index
    %c0_16 = arith.constant 0 : index
    %23 = vector.load %arg7[%c0_15, %c0_16] : memref<1x384xf32, #tpu.memory_space<vmem>>, vector<1x384xf32>
    %24 = vector.broadcast %23 : vector<1x384xf32> to vector<128x384xf32>
    %25 = arith.addf %22, %24 : vector<128x384xf32>
    %cst_17 = arith.constant 0.000000e+00 : f32
    %26 = vector.broadcast %cst_17 : f32 to vector<128x384xf32>
    %27 = arith.maximumf %25, %26 : vector<128x384xf32>
    %c0_18 = arith.constant 0 : index
    %c0_19 = arith.constant 0 : index
    %28 = vector.load %arg8[%c0_18, %c0_19] : memref<1x384xf32, #tpu.memory_space<vmem>>, vector<1x384xf32>
    %29 = vector.broadcast %28 : vector<1x384xf32> to vector<128x384xf32>
    %30 = arith.mulf %27, %29 : vector<128x384xf32>
    %cst_20 = arith.constant dense<0.000000e+00> : vector<128xf32>
    %31 = vector.multi_reduction <add>, %30, %cst_20 [1] : vector<128x384xf32> to vector<128xf32>
    %32 = vector.shape_cast %31 : vector<128xf32> to vector<128x1xf32>
    %c0_21 = arith.constant 0 : index
    %c0_22 = arith.constant 0 : index
    %33 = vector.load %arg9[%c0_21, %c0_22] : memref<1x1xf32, #tpu.memory_space<vmem>>, vector<1x1xf32>
    %34 = vector.broadcast %33 : vector<1x1xf32> to vector<128x1xf32>
    %35 = arith.addf %32, %34 : vector<128x1xf32>
    %c0_23 = arith.constant 0 : index
    %c0_24 = arith.constant 0 : index
    %36 = vector.load %arg10[%c0_23, %c0_24] : memref<128x1xf32, #tpu.memory_space<vmem>>, vector<128x1xf32>
    tpu.vector_store %arg10[%c0_23, %c0_24], %35 {strides = array<i32>} : memref<128x1xf32, #tpu.memory_space<vmem>>, vector<128x1xf32>,
    return
  }
  func.func @transform_0(%arg0: i32) -> (i32, i32) {
    %c0_i32 = arith.constant 0 : i32
    %c0_i32_0 = arith.constant 0 : i32
    return %arg0, %c0_i32 : i32, i32
  }
  func.func @transform_1(%arg0: i32) -> (i32, i32) {
    %c0_i32 = arith.constant 0 : i32
    %c0_i32_0 = arith.constant 0 : i32
    %c0_i32_1 = arith.constant 0 : i32
    return %c0_i32, %c0_i32_0 : i32, i32
  }
  func.func @transform_2(%arg0: i32) -> (i32, i32) {
    %c0_i32 = arith.constant 0 : i32
    %c0_i32_0 = arith.constant 0 : i32
    %c0_i32_1 = arith.constant 0 : i32
    return %c0_i32, %c0_i32_0 : i32, i32
  }
  func.func @transform_3(%arg0: i32) -> (i32, i32) {
    %c0_i32 = arith.constant 0 : i32
    %c0_i32_0 = arith.constant 0 : i32
    %c0_i32_1 = arith.constant 0 : i32
    return %c0_i32, %c0_i32_0 : i32, i32
  }
  func.func @transform_4(%arg0: i32) -> (i32, i32) {
    %c0_i32 = arith.constant 0 : i32
    %c0_i32_0 = arith.constant 0 : i32
    %c0_i32_1 = arith.constant 0 : i32
    return %c0_i32, %c0_i32_0 : i32, i32
  }
  func.func @transform_5(%arg0: i32) -> (i32, i32) {
    %c0_i32 = arith.constant 0 : i32
    %c0_i32_0 = arith.constant 0 : i32
    %c0_i32_1 = arith.constant 0 : i32
    return %c0_i32, %c0_i32_0 : i32, i32
  }
  func.func @transform_6(%arg0: i32) -> (i32, i32) {
    %c0_i32 = arith.constant 0 : i32
    %c0_i32_0 = arith.constant 0 : i32
    %c0_i32_1 = arith.constant 0 : i32
    return %c0_i32, %c0_i32_0 : i32, i32
  }
  func.func @transform_7(%arg0: i32) -> (i32, i32) {
    %c0_i32 = arith.constant 0 : i32
    %c0_i32_0 = arith.constant 0 : i32
    %c0_i32_1 = arith.constant 0 : i32
    return %c0_i32, %c0_i32_0 : i32, i32
  }
  func.func @transform_8(%arg0: i32) -> (i32, i32) {
    %c0_i32 = arith.constant 0 : i32
    %c0_i32_0 = arith.constant 0 : i32
    %c0_i32_1 = arith.constant 0 : i32
    return %c0_i32, %c0_i32_0 : i32, i32
  }
  func.func @transform_9(%arg0: i32) -> (i32, i32) {
    %c0_i32 = arith.constant 0 : i32
    %c0_i32_0 = arith.constant 0 : i32
    return %arg0, %c0_i32 : i32, i32
  }
}

</mosaic_0001>

<llo_original>
// kernel: tpu_custom_call.1
$region0: #{tpu_custom_call.1}
  #allocation0 [shape = 'u32[]', space=smem, size = 0x4, offset = 0x4, fixed_abs, tag = 'smem constant byte address 0x4 - core index']
  #allocation1 [shape = 'u32[144,128]{1,0:T(1,128)}', space=vmem, size = 0x12000, scoped, tag = 'internal scratch']
  #allocation2 [shape = 'f32[1,1]{1,0:T(1,128)S(1)}', space=vmem, size = 0x200, scoped, tag = 'scoped memory for tpu_custom_call.1']
  %s0 = inlined_call_operand.hbm [shape: f32[2,24], index: 0, kind: input, shape index: {}]
  %s1 = inlined_call_operand.hbm [shape: bf16[24,1536], index: 1, kind: input, shape index: {}]
  %s2 = inlined_call_operand.vmem [shape: f32[1,1024], index: 2, kind: input, shape index: {}]
  %s3 = inlined_call_operand.hbm [shape: bf16[1024,512], index: 3, kind: input, shape index: {}]
  %s4 = inlined_call_operand.vmem [shape: f32[1,512], index: 4, kind: input, shape index: {}]
  %s5 = inlined_call_operand.hbm [shape: bf16[512,384], index: 5, kind: input, shape index: {}]
  %s6 = inlined_call_operand.vmem [shape: f32[1,384], index: 6, kind: input, shape index: {}]
  %s7 = inlined_call_operand.vmem [shape: f32[1,384], index: 7, kind: input, shape index: {}]
  %s8 = inlined_call_operand.<no memory space> [shape: f32[1,1], index: 8, kind: input, shape index: {}]
  %s9 = inlined_call_operand.vmem [shape: f32[2,1], index: 9, kind: output, shape index: {}]
  %s10 = sld [smem:[#allocation0]]
  $region92: #{tpu_custom_call.1} parent=0
    _
  %s12 = ssub.s32 1, %s10
  %s13 = scalar_select 0, %s12, %s10
  %v14 = vstv %s8
  %15 = vst [vmem:[#allocation2] sm:$0x1] %v14
  $region1: #{tpu_custom_call.1} parent=0
    #allocation3 [shape = 'u8[65536]{0}', space=vmem, size = 0x10000, scoped, tag = 'input window, operand 0, single buffered']
    #allocation4 [shape = 's32[1]{0}', space=sflag, size = 0x4, scoped, tag = 'scoped memory for tpu_custom_call.1']
    #allocation5 [shape = 'u8[73728]{0}', space=vmem, size = 0x12000, scoped, tag = 'input window, operand 1, single buffered']
    #allocation6 [shape = 's32[1]{0}', space=sflag, size = 0x4, scoped, tag = 'scoped memory for tpu_custom_call.1']
    #allocation7 [shape = 'u8[1048576]{0}', space=vmem, size = 0x100000, scoped, tag = 'input window, operand 3, single buffered']
    #allocation8 [shape = 'u8[393216]{0}', space=vmem, size = 0x60000, scoped, tag = 'input window, operand 5, single buffered']
    #allocation9 [shape = 's32[1]{0}', space=sflag, size = 0x4, scoped, tag = 'scoped memory for tpu_custom_call.1']
    #allocation10 [shape = 'u8[65536]{0}', space=vmem, size = 0x10000, scoped, tag = 'output window, operand 0, single buffered']
    %16 = vsyncpa [#allocation4], 0
    %17 = vsyncpa [#allocation6], 0
    %18 = vsyncpa [#allocation9], 0
    // Predicated region
    $region2: #{tpu_custom_call.1} parent=1 // pred_check
      _
    $region3: #{tpu_custom_call.1} parent=1 // pred_check_branch
      %20 = sbr.rel (0) target = $region5
    $region4: #{tpu_custom_call.1} parent=1 // pred_region
      %s22 = ssub.s32 2048, 32
      %23 = vsyncadd [#allocation4], %s22
      %s24 = sshll.u32 [#allocation3], 4
      %s25 = int_to_ptr.vmem [resolvable:$true] %s24
      %30 = dma.hbm_to_vmem [thread:$0]  %s0, 32, %s25, [#allocation4], 32, 32, 2
    $region5: #{tpu_custom_call.1} parent=1 // pred_fallthru
      _
    // Predicated region
    $region6: #{tpu_custom_call.1} parent=1 // pred_check
      _
    $region7: #{tpu_custom_call.1} parent=1 // pred_check_branch
      %32 = sbr.rel (0) target = $region9
    $region8: #{tpu_custom_call.1} parent=1 // pred_region
      %s34 = ssub.s32 2304, 2304
      %35 = vsyncadd [#allocation6], %s34
      %s36 = sshll.u32 [#allocation5], 4
      %s37 = int_to_ptr.vmem [resolvable:$true] %s36
      %42 = dma.hbm_to_vmem [thread:$0]  %s1, 2304, %s37, [#allocation6], 768, 768, 48
    $region9: #{tpu_custom_call.1} parent=1 // pred_fallthru
      _
    // Predicated region
    $region10: #{tpu_custom_call.1} parent=1 // pred_check
      _
    $region11: #{tpu_custom_call.1} parent=1 // pred_check_branch
      %44 = sbr.rel (0) target = $region13
    $region12: #{tpu_custom_call.1} parent=1 // pred_region
      _
    $region13: #{tpu_custom_call.1} parent=1 // pred_fallthru
      _
    // Predicated region
    $region14: #{tpu_custom_call.1} parent=1 // pred_check
      _
    $region15: #{tpu_custom_call.1} parent=1 // pred_check_branch
      %46 = sbr.rel (0) target = $region17
    $region16: #{tpu_custom_call.1} parent=1 // pred_region
      %s48 = ssub.s32 32768, 32768
      %49 = vsyncadd [#allocation6], %s48
      %s50 = sshll.u32 [#allocation7], 4
      %s51 = int_to_ptr.vmem [resolvable:$true] %s50
      %56 = dma.hbm_to_vmem [thread:$0]  %s3, 32768, %s51, [#allocation6], 256, 256, 16
    $region17: #{tpu_custom_call.1} parent=1 // pred_fallthru
      _
    // Predicated region
    $region18: #{tpu_custom_call.1} parent=1 // pred_check
      _
    $region19: #{tpu_custom_call.1} parent=1 // pred_check_branch
      %58 = sbr.rel (0) target = $region21
    $region20: #{tpu_custom_call.1} parent=1 // pred_region
      _
    $region21: #{tpu_custom_call.1} parent=1 // pred_fallthru
      _
    // Predicated region
    $region22: #{tpu_custom_call.1} parent=1 // pred_check
      _
    $region23: #{tpu_custom_call.1} parent=1 // pred_check_branch
      %60 = sbr.rel (0) target = $region25
    $region24: #{tpu_custom_call.1} parent=1 // pred_region
      %s62 = ssub.s32 12288, 12288
      %63 = vsyncadd [#allocation9], %s62
      %s64 = sshll.u32 [#allocation8], 4
      %s65 = int_to_ptr.vmem [resolvable:$true] %s64
      %70 = dma.hbm_to_vmem [thread:$0]  %s5, 12288, %s65, [#allocation9], 192, 192, 12
    $region25: #{tpu_custom_call.1} parent=1 // pred_fallthru
      _
    // Predicated region
    $region26: #{tpu_custom_call.1} parent=1 // pred_check
      _
    $region27: #{tpu_custom_call.1} parent=1 // pred_check_branch
      %72 = sbr.rel (0) target = $region29
    $region28: #{tpu_custom_call.1} parent=1 // pred_region
      _
    $region29: #{tpu_custom_call.1} parent=1 // pred_fallthru
      _
    // Predicated region
    $region30: #{tpu_custom_call.1} parent=1 // pred_check
      _
    $region31: #{tpu_custom_call.1} parent=1 // pred_check_branch
      %74 = sbr.rel (0) target = $region33
    $region32: #{tpu_custom_call.1} parent=1 // pred_region
      _
    $region33: #{tpu_custom_call.1} parent=1 // pred_fallthru
      _
    // Predicated region
    $region34: #{tpu_custom_call.1} parent=1 // pred_check
      _
    $region35: #{tpu_custom_call.1} parent=1 // pred_check_branch
      %76 = sbr.rel (0) target = $region37
    $region36: #{tpu_custom_call.1} parent=1 // pred_region
      _
    $region37: #{tpu_custom_call.1} parent=1 // pred_fallthru
      _
    // Predicated region
    $region38: #{tpu_custom_call.1} parent=1 // pred_check
      _
    $region39: #{tpu_custom_call.1} parent=1 // pred_check_branch
      %78 = sbr.rel (0) target = $region41
    $region40: #{tpu_custom_call.1} parent=1 // pred_region
      %79 = dma.done [#allocation4], 2048
    $region41: #{tpu_custom_call.1} parent=1 // pred_fallthru
      _
    // Predicated region
    $region42: #{tpu_custom_call.1} parent=1 // pred_check
      _
    $region43: #{tpu_custom_call.1} parent=1 // pred_check_branch
      %81 = sbr.rel (0) target = $region45
    $region44: #{tpu_custom_call.1} parent=1 // pred_region
      %82 = dma.done [#allocation6], 2304
    $region45: #{tpu_custom_call.1} parent=1 // pred_fallthru
      _
    // Predicated region
    $region46: #{tpu_custom_call.1} parent=1 // pred_check
      _
    $region47: #{tpu_custom_call.1} parent=1 // pred_check_branch
      %84 = sbr.rel (0) target = $region49
    $region48: #{tpu_custom_call.1} parent=1 // pred_region
      %85 = dma.done [#allocation6], 32768
    $region49: #{tpu_custom_call.1} parent=1 // pred_fallthru
      _
    // Predicated region
    $region50: #{tpu_custom_call.1} parent=1 // pred_check
      _
    $region51: #{tpu_custom_call.1} parent=1 // pred_check_branch
      %87 = sbr.rel (0) target = $region53
    $region52: #{tpu_custom_call.1} parent=1 // pred_region
      %88 = dma.done [#allocation9], 12288
    $region53: #{tpu_custom_call.1} parent=1 // pred_fallthru
      _
    %v90 = vld [vmem:[#allocation3] sm:$0xff]
    %v91 = vld [vmem:[#allocation3 + $0x8] sm:$0xff]
    %v92 = vld [vmem:[#allocation3 + $0x10] sm:$0xff]
    %v93 = vld [vmem:[#allocation3 + $0x18] sm:$0xff]
    %v94 = vld [vmem:[#allocation3 + $0x20] sm:$0xff]
    %v95 = vld [vmem:[#allocation3 + $0x28] sm:$0xff]
    %v96 = vld [vmem:[#allocation3 + $0x30] sm:$0xff]
    %v97 = vld [vmem:[#allocation3 + $0x38] sm:$0xff]
    %v98 = vld [vmem:[#allocation3 + $0x40] sm:$0xff]
    %v99 = vld [vmem:[#allocation3 + $0x48] sm:$0xff]
    %v100 = vld [vmem:[#allocation3 + $0x50] sm:$0xff]
    %v101 = vld [vmem:[#allocation3 + $0x58] sm:$0xff]
    %v102 = vld [vmem:[#allocation3 + $0x60] sm:$0xff]
    %v103 = vld [vmem:[#allocation3 + $0x68] sm:$0xff]
    %v104 = vld [vmem:[#allocation3 + $0x70] sm:$0xff]
    %v105 = vld [vmem:[#allocation3 + $0x78] sm:$0xff]
    %v106 = vpack.c.bf16 %v91, %v90
    %v107 = vpack.c.bf16 %v93, %v92
    %v108 = vpack.c.bf16 %v95, %v94
    %v109 = vpack.c.bf16 %v97, %v96
    %v110 = vpack.c.bf16 %v99, %v98
    %v111 = vpack.c.bf16 %v101, %v100
    %v112 = vpack.c.bf16 %v103, %v102
    %v113 = vpack.c.bf16 %v105, %v104
    %v114 = vld [vmem:[#allocation5] sm:$0xff]
    %v115 = vld [vmem:[#allocation5 + $0x8] sm:$0xff]
    %v116 = vld [vmem:[#allocation5 + $0x10] sm:$0xff]
    %v117 = vld [vmem:[#allocation5 + $0x18] sm:$0xff]
    %v118 = vld [vmem:[#allocation5 + $0x20] sm:$0xff]
    %v119 = vld [vmem:[#allocation5 + $0x28] sm:$0xff]
    %v120 = vld [vmem:[#allocation5 + $0x30] sm:$0xff]
    %v121 = vld [vmem:[#allocation5 + $0x38] sm:$0xff]
    %v122 = vld [vmem:[#allocation5 + $0x40] sm:$0xff]
    %v123 = vld [vmem:[#allocation5 + $0x48] sm:$0xff]
    %v124 = vld [vmem:[#allocation5 + $0x50] sm:$0xff]
    %v125 = vld [vmem:[#allocation5 + $0x58] sm:$0xff]
    %v126 = vld [vmem:[#allocation5 + $0x60] sm:$0xff]
    %v127 = vld [vmem:[#allocation5 + $0x68] sm:$0xff]
    %v128 = vld [vmem:[#allocation5 + $0x70] sm:$0xff]
    %v129 = vld [vmem:[#allocation5 + $0x78] sm:$0xff]
    %v130 = vld [vmem:[#allocation5 + $0x80] sm:$0xff]
    %v131 = vld [vmem:[#allocation5 + $0x88] sm:$0xff]
    %v150 = vunpack.c.l.b16 %v114
    %v151 = vunpack.c.h.b16 %v114
    %v152 = vunpack.c.l.b16 %v115
    %v153 = vunpack.c.h.b16 %v115
    %v154 = vunpack.c.l.b16 %v116
    %v155 = vunpack.c.h.b16 %v116
    %v156 = vunpack.c.l.b16 %v117
    %v157 = vunpack.c.h.b16 %v117
    %v158 = vunpack.c.l.b16 %v118
    %v159 = vunpack.c.h.b16 %v118
    %v160 = vunpack.c.l.b16 %v119
    %v161 = vunpack.c.h.b16 %v119
    %v162 = vunpack.c.l.b16 %v120
    %v163 = vunpack.c.h.b16 %v120
    %v164 = vunpack.c.l.b16 %v121
    %v165 = vunpack.c.h.b16 %v121
    %v166 = vunpack.c.l.b16 %v122
    %v167 = vunpack.c.h.b16 %v122
    %v168 = vunpack.c.l.b16 %v123
    %v169 = vunpack.c.h.b16 %v123
    %v170 = vunpack.c.l.b16 %v124
    %v171 = vunpack.c.h.b16 %v124
    %v172 = vunpack.c.l.b16 %v125
    %v173 = vunpack.c.h.b16 %v125
    %v174 = vunpack.c.l.b16 %v126
    %v175 = vunpack.c.h.b16 %v126
    %v176 = vunpack.c.l.b16 %v127
    %v177 = vunpack.c.h.b16 %v127
    %v178 = vunpack.c.l.b16 %v128
    %v179 = vunpack.c.h.b16 %v128
    %v180 = vunpack.c.l.b16 %v129
    %v181 = vunpack.c.h.b16 %v129
    %v182 = vunpack.c.l.b16 %v130
    %v183 = vunpack.c.h.b16 %v130
    %v184 = vunpack.c.l.b16 %v131
    %v185 = vunpack.c.h.b16 %v131
    %v186 = vpack.c.b16 %v162, %v150
    %v187 = vpack.c.b16 %v163, %v151
    %v188 = vpack.c.b16 %v164, %v152
    %v189 = vpack.c.b16 %v165, %v153
    %v190 = vpack.c.b16 %v166, %v154
    %v191 = vpack.c.b16 %v167, %v155
    %v192 = vpack.c.b16 %v168, %v156
    %v193 = vpack.c.b16 %v169, %v157
    %v194 = vpack.c.b16 %v170, %v158
    %v195 = vpack.c.b16 %v171, %v159
    %v196 = vpack.c.b16 %v172, %v160
    %v197 = vpack.c.b16 %v173, %v161
    %v198 = vpack.c.b16 %v174, %v174
    %v199 = vpack.c.b16 %v175, %v175
    %v200 = vpack.c.b16 %v176, %v176
    %v201 = vpack.c.b16 %v177, %v177
    %v202 = vpack.c.b16 %v178, %v178
    %v203 = vpack.c.b16 %v179, %v179
    %v204 = vpack.c.b16 %v180, %v180
    %v205 = vpack.c.b16 %v181, %v181
    %v206 = vpack.c.b16 %v182, %v182
    %v207 = vpack.c.b16 %v183, %v183
    %v208 = vpack.c.b16 %v184, %v184
    %v209 = vpack.c.b16 %v185, %v185
    %vm222 = vcmask 195584
    %v224 = vsel %vm222, %v106, 0
    %v227 = vsel %vm222, %v107, 0
    %v230 = vsel %vm222, %v108, 0
    %v233 = vsel %vm222, %v109, 0
    %v236 = vsel %vm222, %v110, 0
    %v239 = vsel %vm222, %v111, 0
    %v242 = vsel %vm222, %v112, 0
    %v245 = vsel %vm222, %v113, 0
    %vm247 = vcmask 1043456
    %v249 = vsel %vm247, %v198, 0
    %v252 = vsel %vm247, %v199, 0
    %v255 = vsel %vm247, %v200, 0
    %v258 = vsel %vm247, %v201, 0
    %v261 = vsel %vm247, %v202, 0
    %v264 = vsel %vm247, %v203, 0
    %v267 = vsel %vm247, %v204, 0
    %v270 = vsel %vm247, %v205, 0
    %v273 = vsel %vm247, %v206, 0
    %v276 = vsel %vm247, %v207, 0
    %v279 = vsel %vm247, %v208, 0
    %v282 = vsel %vm247, %v209, 0
    %284 = vmatprep.subr.bf16.mxu0 %v187
    %285 = vmatpush1.bf16.msra.mxu0 %v186
    %286 = vmatprep.subr.bf16.mxu0 %v252
    %287 = vmatpush1.bf16.msra.mxu0 %v249
    %288 = vmatprep.subr.bf16.mxu0 0
    %289 = vmatpush1.bf16.msra.mxu0 0
    %290 = vmatprep.subr.bf16.mxu0 0
    %291 = vmatpush1.bf16.msra.mxu0 0
    %292 = vmatprep.subr.bf16.mxu0 0
    %293 = vmatpush1.bf16.msra.mxu0 0
    %294 = vmatprep.subr.bf16.mxu0 0
    %295 = vmatpush1.bf16.msra.mxu0 0
    %296 = vmatprep.subr.bf16.mxu0 0
    %297 = vmatpush1.bf16.msra.mxu0 0
    %298 = vmatprep.subr.bf16.mxu0 0
    %299 = vmatpush1.bf16.msra.mxu0 0
    %300 = vmatprep.subr.bf16.mxu0 0
    %301 = vmatpush1.bf16.msra.mxu0 0
    %302 = vmatprep.subr.bf16.mxu0 0
    %303 = vmatpush1.bf16.msra.mxu0 0
    %304 = vmatprep.subr.bf16.mxu0 0
    %305 = vmatpush1.bf16.msra.mxu0 0
    %306 = vmatprep.subr.bf16.mxu0 0
    %307 = vmatpush1.bf16.msra.mxu0 0
    %308 = vmatprep.subr.bf16.mxu0 0
    %309 = vmatpush1.bf16.msra.mxu0 0
    %310 = vmatprep.subr.bf16.mxu0 0
    %311 = vmatpush1.bf16.msra.mxu0 0
    %312 = vmatprep.subr.bf16.mxu0 0
    %313 = vmatpush1.bf16.msra.mxu0 0
    %314 = vmatprep.subr.bf16.mxu0 0
    %315 = vmatpush1.bf16.msra.mxu0 0
    %316 = vmatprep.mubr.bf16.mxu0 0
    %317 = vmatmul.mubr.bf16.gmra.mrb[0].mxu0 %v224
    %v318 = vpop.f32.mrb[0].mxu0
    %v319 = vadd.f32 0.0, %v318
    %v320 = vpop.f32.mrb[0].mxu0
    %v321 = vadd.f32 0.0, %v320
    %v322 = vpop.f32.mrb[0].mxu0
    %v323 = vadd.f32 0.0, %v322
    %v324 = vpop.f32.mrb[0].mxu0
    %v325 = vadd.f32 0.0, %v324
    %326 = vmatprep.mubr.bf16.mxu0 0
    %327 = vmatmul.mubr.bf16.gmra.mrb[0].mxu0 %v227
    %v328 = vpop.f32.mrb[0].mxu0
    %v329 = vadd.f32 0.0, %v328
    %v330 = vpop.f32.mrb[0].mxu0
    %v331 = vadd.f32 0.0, %v330
    %v332 = vpop.f32.mrb[0].mxu0
    %v333 = vadd.f32 0.0, %v332
    %v334 = vpop.f32.mrb[0].mxu0
    %v335 = vadd.f32 0.0, %v334
    %336 = vmatprep.mubr.bf16.mxu0 0
    %337 = vmatmul.mubr.bf16.gmra.mrb[0].mxu0 %v230
    %v338 = vpop.f32.mrb[0].mxu0
    %v339 = vadd.f32 0.0, %v338
    %v340 = vpop.f32.mrb[0].mxu0
    %v341 = vadd.f32 0.0, %v340
    %v342 = vpop.f32.mrb[0].mxu0
    %v343 = vadd.f32 0.0, %v342
    %v344 = vpop.f32.mrb[0].mxu0
    %v345 = vadd.f32 0.0, %v344
    %346 = vmatprep.mubr.bf16.mxu0 0
    %347 = vmatmul.mubr.bf16.gmra.mrb[0].mxu0 %v233
    %v348 = vpop.f32.mrb[0].mxu0
    %v349 = vadd.f32 0.0, %v348
    %v350 = vpop.f32.mrb[0].mxu0
    %v351 = vadd.f32 0.0, %v350
    %v352 = vpop.f32.mrb[0].mxu0
    %v353 = vadd.f32 0.0, %v352
    %v354 = vpop.f32.mrb[0].mxu0
    %v355 = vadd.f32 0.0, %v354
    %356 = vmatprep.mubr.bf16.mxu0 0
    %357 = vmatmul.mubr.bf16.gmra.mrb[0].mxu0 %v236
    %v358 = vpop.f32.mrb[0].mxu0
    %v359 = vadd.f32 0.0, %v358
    %v360 = vpop.f32.mrb[0].mxu0
    %v361 = vadd.f32 0.0, %v360
    %v362 = vpop.f32.mrb[0].mxu0
    %v363 = vadd.f32 0.0, %v362
    %v364 = vpop.f32.mrb[0].mxu0
    %v365 = vadd.f32 0.0, %v364
    %366 = vmatprep.mubr.bf16.mxu0 0
    %367 = vmatmul.mubr.bf16.gmra.mrb[0].mxu0 %v239
    %v368 = vpop.f32.mrb[0].mxu0
    %v369 = vadd.f32 0.0, %v368
    %v370 = vpop.f32.mrb[0].mxu0
    %v371 = vadd.f32 0.0, %v370
    %v372 = vpop.f32.mrb[0].mxu0
    %v373 = vadd.f32 0.0, %v372
    %v374 = vpop.f32.mrb[0].mxu0
    %v375 = vadd.f32 0.0, %v374
    %376 = vmatprep.mubr.bf16.mxu0 0
    %377 = vmatmul.mubr.bf16.gmra.mrb[0].mxu0 %v242
    %v378 = vpop.f32.mrb[0].mxu0
    %v379 = vadd.f32 0.0, %v378
    %v380 = vpop.f32.mrb[0].mxu0
    %v381 = vadd.f32 0.0, %v380
    %v382 = vpop.f32.mrb[0].mxu0
    %v383 = vadd.f32 0.0, %v382
    %v384 = vpop.f32.mrb[0].mxu0
    %v385 = vadd.f32 0.0, %v384
    %386 = vmatprep.mubr.bf16.mxu0 0
    %387 = vmatmul.mubr.bf16.gmra.mrb[0].mxu0 %v245
    %v388 = vpop.f32.mrb[0].mxu0
    %v389 = vadd.f32 0.0, %v388
    %v390 = vpop.f32.mrb[0].mxu0
    %v391 = vadd.f32 0.0, %v390
    %v392 = vpop.f32.mrb[0].mxu0
    %v393 = vadd.f32 0.0, %v392
    %v394 = vpop.f32.mrb[0].mxu0
    %v395 = vadd.f32 0.0, %v394
    %396 = vdwg.mxu0
    %397 = vmatprep.subr.bf16.mxu0 %v189
    %398 = vmatpush1.bf16.msra.mxu0 %v188
    %399 = vmatprep.subr.bf16.mxu0 %v258
    %400 = vmatpush1.bf16.msra.mxu0 %v255
    %401 = vmatprep.subr.bf16.mxu0 0
    %402 = vmatpush1.bf16.msra.mxu0 0
    %403 = vmatprep.subr.bf16.mxu0 0
    %404 = vmatpush1.bf16.msra.mxu0 0
    %405 = vmatprep.subr.bf16.mxu0 0
    %406 = vmatpush1.bf16.msra.mxu0 0
    %407 = vmatprep.subr.bf16.mxu0 0
    %408 = vmatpush1.bf16.msra.mxu0 0
    %409 = vmatprep.subr.bf16.mxu0 0
    %410 = vmatpush1.bf16.msra.mxu0 0
    %411 = vmatprep.subr.bf16.mxu0 0
    %412 = vmatpush1.bf16.msra.mxu0 0
    %413 = vmatprep.subr.bf16.mxu0 0
    %414 = vmatpush1.bf16.msra.mxu0 0
    %415 = vmatprep.subr.bf16.mxu0 0
    %416 = vmatpush1.bf16.msra.mxu0 0
    %417 = vmatprep.subr.bf16.mxu0 0
    %418 = vmatpush1.bf16.msra.mxu0 0
    %419 = vmatprep.subr.bf16.mxu0 0
    %420 = vmatpush1.bf16.msra.mxu0 0
    %421 = vmatprep.subr.bf16.mxu0 0
    %422 = vmatpush1.bf16.msra.mxu0 0
    %423 = vmatprep.subr.bf16.mxu0 0
    %424 = vmatpush1.bf16.msra.mxu0 0
    %425 = vmatprep.subr.bf16.mxu0 0
    %426 = vmatpush1.bf16.msra.mxu0 0
    %427 = vmatprep.subr.bf16.mxu0 0
    %428 = vmatpush1.bf16.msra.mxu0 0
    %429 = vmatprep.mubr.bf16.mxu0 0
    %430 = vmatmul.mubr.bf16.gmra.mrb[0].mxu0 %v224
    %v431 = vpop.f32.mrb[0].mxu0
    %v432 = vadd.f32 0.0, %v431
    %v433 = vpop.f32.mrb[0].mxu0
    %v434 = vadd.f32 0.0, %v433
    %v435 = vpop.f32.mrb[0].mxu0
    %v436 = vadd.f32 0.0, %v435
    %v437 = vpop.f32.mrb[0].mxu0
    %v438 = vadd.f32 0.0, %v437
    %439 = vmatprep.mubr.bf16.mxu0 0
    %440 = vmatmul.mubr.bf16.gmra.mrb[0].mxu0 %v227
    %v441 = vpop.f32.mrb[0].mxu0
    %v442 = vadd.f32 0.0, %v441
    %v443 = vpop.f32.mrb[0].mxu0
    %v444 = vadd.f32 0.0, %v443
    %v445 = vpop.f32.mrb[0].mxu0
    %v446 = vadd.f32 0.0, %v445
    %v447 = vpop.f32.mrb[0].mxu0
    %v448 = vadd.f32 0.0, %v447
    %449 = vmatprep.mubr.bf16.mxu0 0
    %450 = vmatmul.mubr.bf16.gmra.mrb[0].mxu0 %v230
    %v451 = vpop.f32.mrb[0].mxu0
    %v452 = vadd.f32 0.0, %v451
    %v453 = vpop.f32.mrb[0].mxu0
    %v454 = vadd.f32 0.0, %v453
    %v455 = vpop.f32.mrb[0].mxu0
    %v456 = vadd.f32 0.0, %v455
    %v457 = vpop.f32.mrb[0].mxu0
    %v458 = vadd.f32 0.0, %v457
    %459 = vmatprep.mubr.bf16.mxu0 0
    %460 = vmatmul.mubr.bf16.gmra.mrb[0].mxu0 %v233
    %v461 = vpop.f32.mrb[0].mxu0
    %v462 = vadd.f32 0.0, %v461
    %v463 = vpop.f32.mrb[0].mxu0
    %v464 = vadd.f32 0.0, %v463
    %v465 = vpop.f32.mrb[0].mxu0
    %v466 = vadd.f32 0.0, %v465
    %v467 = vpop.f32.mrb[0].mxu0
    %v468 = vadd.f32 0.0, %v467
    %469 = vmatprep.mubr.bf16.mxu0 0
    %470 = vmatmul.mubr.bf16.gmra.mrb[0].mxu0 %v236
    %v471 = vpop.f32.mrb[0].mxu0
    %v472 = vadd.f32 0.0, %v471
    %v473 = vpop.f32.mrb[0].mxu0
    %v474 = vadd.f32 0.0, %v473
    %v475 = vpop.f32.mrb[0].mxu0
    %v476 = vadd.f32 0.0, %v475
    %v477 = vpop.f32.mrb[0].mxu0
    %v478 = vadd.f32 0.0, %v477
    %479 = vmatprep.mubr.bf16.mxu0 0
    %480 = vmatmul.mubr.bf16.gmra.mrb[0].mxu0 %v239
    %v481 = vpop.f32.mrb[0].mxu0
    %v482 = vadd.f32 0.0, %v481
    %v483 = vpop.f32.mrb[0].mxu0
    %v484 = vadd.f32 0.0, %v483
    %v485 = vpop.f32.mrb[0].mxu0
    %v486 = vadd.f32 0.0, %v485
    %v487 = vpop.f32.mrb[0].mxu0
    %v488 = vadd.f32 0.0, %v487
    %489 = vmatprep.mubr.bf16.mxu0 0
    %490 = vmatmul.mubr.bf16.gmra.mrb[0].mxu0 %v242
    %v491 = vpop.f32.mrb[0].mxu0
    %v492 = vadd.f32 0.0, %v491
    %v493 = vpop.f32.mrb[0].mxu0
    %v494 = vadd.f32 0.0, %v493
    %v495 = vpop.f32.mrb[0].mxu0
    %v496 = vadd.f32 0.0, %v495
    %v497 = vpop.f32.mrb[0].mxu0
    %v498 = vadd.f32 0.0, %v497
    %499 = vmatprep.mubr.bf16.mxu0 0
    %500 = vmatmul.mubr.bf16.gmra.mrb[0].mxu0 %v245
    %v501 = vpop.f32.mrb[0].mxu0
    %v502 = vadd.f32 0.0, %v501
    %v503 = vpop.f32.mrb[0].mxu0
    %v504 = vadd.f32 0.0, %v503
    %v505 = vpop.f32.mrb[0].mxu0
    %v506 = vadd.f32 0.0, %v505
    %v507 = vpop.f32.mrb[0].mxu0
    %v508 = vadd.f32 0.0, %v507
    %509 = vdwg.mxu0
    %510 = vmatprep.subr.bf16.mxu0 %v191
    %511 = vmatpush1.bf16.msra.mxu0 %v190
    %512 = vmatprep.subr.bf16.mxu0 %v264
    %513 = vmatpush1.bf16.msra.mxu0 %v261
    %514 = vmatprep.subr.bf16.mxu0 0
    %515 = vmatpush1.bf16.msra.mxu0 0
    %516 = vmatprep.subr.bf16.mxu0 0
    %517 = vmatpush1.bf16.msra.mxu0 0
    %518 = vmatprep.subr.bf16.mxu0 0
    %519 = vmatpush1.bf16.msra.mxu0 0
    %520 = vmatprep.subr.bf16.mxu0 0
    %521 = vmatpush1.bf16.msra.mxu0 0
    %522 = vmatprep.subr.bf16.mxu0 0
    %523 = vmatpush1.bf16.msra.mxu0 0
    %524 = vmatprep.subr.bf16.mxu0 0
    %525 = vmatpush1.bf16.msra.mxu0 0
    %526 = vmatprep.subr.bf16.mxu0 0
    %527 = vmatpush1.bf16.msra.mxu0 0
    %528 = vmatprep.subr.bf16.mxu0 0
    %529 = vmatpush1.bf16.msra.mxu0 0
    %530 = vmatprep.subr.bf16.mxu0 0
    %531 = vmatpush1.bf16.msra.mxu0 0
    %532 = vmatprep.subr.bf16.mxu0 0
    %533 = vmatpush1.bf16.msra.mxu0 0
    %534 = vmatprep.subr.bf16.mxu0 0
    %535 = vmatpush1.bf16.msra.mxu0 0
    %536 = vmatprep.subr.bf16.mxu0 0
    %537 = vmatpush1.bf16.msra.mxu0 0
    %538 = vmatprep.subr.bf16.mxu0 0
    %539 = vmatpush1.bf16.msra.mxu0 0
    %540 = vmatprep.subr.bf16.mxu0 0
    %541 = vmatpush1.bf16.msra.mxu0 0
    %542 = vmatprep.mubr.bf16.mxu0 0
    %543 = vmatmul.mubr.bf16.gmra.mrb[0].mxu0 %v224
    %v544 = vpop.f32.mrb[0].mxu0
    %v545 = vadd.f32 0.0, %v544
    %v546 = vpop.f32.mrb[0].mxu0
    %v547 = vadd.f32 0.0, %v546
    %v548 = vpop.f32.mrb[0].mxu0
    %v549 = vadd.f32 0.0, %v548
    %v550 = vpop.f32.mrb[0].mxu0
    %v551 = vadd.f32 0.0, %v550
    %552 = vmatprep.mubr.bf16.mxu0 0
    %553 = vmatmul.mubr.bf16.gmra.mrb[0].mxu0 %v227
    %v554 = vpop.f32.mrb[0].mxu0
    %v555 = vadd.f32 0.0, %v554
    %v556 = vpop.f32.mrb[0].mxu0
    %v557 = vadd.f32 0.0, %v556
    %v558 = vpop.f32.mrb[0].mxu0
    %v559 = vadd.f32 0.0, %v558
    %v560 = vpop.f32.mrb[0].mxu0
    %v561 = vadd.f32 0.0, %v560
    %562 = vmatprep.mubr.bf16.mxu0 0
    %563 = vmatmul.mubr.bf16.gmra.mrb[0].mxu0 %v230
    %v564 = vpop.f32.mrb[0].mxu0
    %v565 = vadd.f32 0.0, %v564
    %v566 = vpop.f32.mrb[0].mxu0
    %v567 = vadd.f32 0.0, %v566
    %v568 = vpop.f32.mrb[0].mxu0
    %v569 = vadd.f32 0.0, %v568
    %v570 = vpop.f32.mrb[0].mxu0
    %v571 = vadd.f32 0.0, %v570
    %572 = vmatprep.mubr.bf16.mxu0 0
    %573 = vmatmul.mubr.bf16.gmra.mrb[0].mxu0 %v233
    %v574 = vpop.f32.mrb[0].mxu0
    %v575 = vadd.f32 0.0, %v574
    %v576 = vpop.f32.mrb[0].mxu0
    %v577 = vadd.f32 0.0, %v576
    %v578 = vpop.f32.mrb[0].mxu0
    %v579 = vadd.f32 0.0, %v578
    %v580 = vpop.f32.mrb[0].mxu0
    %v581 = vadd.f32 0.0, %v580
    %582 = vmatprep.mubr.bf16.mxu0 0
    %583 = vmatmul.mubr.bf16.gmra.mrb[0].mxu0 %v236
    %v584 = vpop.f32.mrb[0].mxu0
    %v585 = vadd.f32 0.0, %v584
    %v586 = vpop.f32.mrb[0].mxu0
    %v587 = vadd.f32 0.0, %v586
    %v588 = vpop.f32.mrb[0].mxu0
    %v589 = vadd.f32 0.0, %v588
    %v590 = vpop.f32.mrb[0].mxu0
    %v591 = vadd.f32 0.0, %v590
    %592 = vmatprep.mubr.bf16.mxu0 0
    %593 = vmatmul.mubr.bf16.gmra.mrb[0].mxu0 %v239
    %v594 = vpop.f32.mrb[0].mxu0
    %v595 = vadd.f32 0.0, %v594
    %v596 = vpop.f32.mrb[0].mxu0
    %v597 = vadd.f32 0.0, %v596
    %v598 = vpop.f32.mrb[0].mxu0
    %v599 = vadd.f32 0.0, %v598
    %v600 = vpop.f32.mrb[0].mxu0
    %v601 = vadd.f32 0.0, %v600
    %602 = vmatprep.mubr.bf16.mxu0 0
    %603 = vmatmul.mubr.bf16.gmra.mrb[0].mxu0 %v242
    %v604 = vpop.f32.mrb[0].mxu0
    %v605 = vadd.f32 0.0, %v604
    %v606 = vpop.f32.mrb[0].mxu0
    %v607 = vadd.f32 0.0, %v606
    %v608 = vpop.f32.mrb[0].mxu0
    %v609 = vadd.f32 0.0, %v608
    %v610 = vpop.f32.mrb[0].mxu0
    %v611 = vadd.f32 0.0, %v610
    %612 = vmatprep.mubr.bf16.mxu0 0
    %613 = vmatmul.mubr.bf16.gmra.mrb[0].mxu0 %v245
    %v614 = vpop.f32.mrb[0].mxu0
    %v615 = vadd.f32 0.0, %v614
    %v616 = vpop.f32.mrb[0].mxu0
    %v617 = vadd.f32 0.0, %v616
    %v618 = vpop.f32.mrb[0].mxu0
    %v619 = vadd.f32 0.0, %v618
    %v620 = vpop.f32.mrb[0].mxu0
    %v621 = vadd.f32 0.0, %v620
    %622 = vdwg.mxu0
    %623 = vmatprep.subr.bf16.mxu0 %v193
    %624 = vmatpush1.bf16.msra.mxu0 %v192
    %625 = vmatprep.subr.bf16.mxu0 %v270
    %626 = vmatpush1.bf16.msra.mxu0 %v267
    %627 = vmatprep.subr.bf16.mxu0 0
    %628 = vmatpush1.bf16.msra.mxu0 0
    %629 = vmatprep.subr.bf16.mxu0 0
    %630 = vmatpush1.bf16.msra.mxu0 0
    %631 = vmatprep.subr.bf16.mxu0 0
    %632 = vmatpush1.bf16.msra.mxu0 0
    %633 = vmatprep.subr.bf16.mxu0 0
    %634 = vmatpush1.bf16.msra.mxu0 0
    %635 = vmatprep.subr.bf16.mxu0 0
    %636 = vmatpush1.bf16.msra.mxu0 0
    %637 = vmatprep.subr.bf16.mxu0 0
    %638 = vmatpush1.bf16.msra.mxu0 0
    %639 = vmatprep.subr.bf16.mxu0 0
    %640 = vmatpush1.bf16.msra.mxu0 0
    %641 = vmatprep.subr.bf16.mxu0 0
    %642 = vmatpush1.bf16.msra.mxu0 0
    %643 = vmatprep.subr.bf16.mxu0 0
    %644 = vmatpush1.bf16.msra.mxu0 0
    %645 = vmatprep.subr.bf16.mxu0 0
    %646 = vmatpush1.bf16.msra.mxu0 0
    %647 = vmatprep.subr.bf16.mxu0 0
    %648 = vmatpush1.bf16.msra.mxu0 0
    %649 = vmatprep.subr.bf16.mxu0 0
    %650 = vmatpush1.bf16.msra.mxu0 0
    %651 = vmatprep.subr.bf16.mxu0 0
    %652 = vmatpush1.bf16.msra.mxu0 0
    %653 = vmatprep.subr.bf16.mxu0 0
    %654 = vmatpush1.bf16.msra.mxu0 0
    %655 = vmatprep.mubr.bf16.mxu0 0
    %656 = vmatmul.mubr.bf16.gmra.mrb[0].mxu0 %v224
    %v657 = vpop.f32.mrb[0].mxu0
    %v658 = vadd.f32 0.0, %v657
    %v659 = vpop.f32.mrb[0].mxu0
    %v660 = vadd.f32 0.0, %v659
    %v661 = vpop.f32.mrb[0].mxu0
    %v662 = vadd.f32 0.0, %v661
    %v663 = vpop.f32.mrb[0].mxu0
    %v664 = vadd.f32 0.0, %v663
    %665 = vmatprep.mubr.bf16.mxu0 0
    %666 = vmatmul.mubr.bf16.gmra.mrb[0].mxu0 %v227
    %v667 = vpop.f32.mrb[0].mxu0
    %v668 = vadd.f32 0.0, %v667
    %v669 = vpop.f32.mrb[0].mxu0
    %v670 = vadd.f32 0.0, %v669
    %v671 = vpop.f32.mrb[0].mxu0
    %v672 = vadd.f32 0.0, %v671
    %v673 = vpop.f32.mrb[0].mxu0
    %v674 = vadd.f32 0.0, %v673
    %675 = vmatprep.mubr.bf16.mxu0 0
    %676 = vmatmul.mubr.bf16.gmra.mrb[0].mxu0 %v230
    %v677 = vpop.f32.mrb[0].mxu0
    %v678 = vadd.f32 0.0, %v677
    %v679 = vpop.f32.mrb[0].mxu0
    %v680 = vadd.f32 0.0, %v679
    %v681 = vpop.f32.mrb[0].mxu0
    %v682 = vadd.f32 0.0, %v681
    %v683 = vpop.f32.mrb[0].mxu0
    %v684 = vadd.f32 0.0, %v683
    %685 = vmatprep.mubr.bf16.mxu0 0
    %686 = vmatmul.mubr.bf16.gmra.mrb[0].mxu0 %v233
    %v687 = vpop.f32.mrb[0].mxu0
    %v688 = vadd.f32 0.0, %v687
    %v689 = vpop.f32.mrb[0].mxu0
    %v690 = vadd.f32 0.0, %v689
    %v691 = vpop.f32.mrb[0].mxu0
    %v692 = vadd.f32 0.0, %v691
    %v693 = vpop.f32.mrb[0].mxu0
    %v694 = vadd.f32 0.0, %v693
    %695 = vmatprep.mubr.bf16.mxu0 0
    %696 = vmatmul.mubr.bf16.gmra.mrb[0].mxu0 %v236
    %v697 = vpop.f32.mrb[0].mxu0
    %v698 = vadd.f32 0.0, %v697
    %v699 = vpop.f32.mrb[0].mxu0
    %v700 = vadd.f32 0.0, %v699
    %v701 = vpop.f32.mrb[0].mxu0
    %v702 = vadd.f32 0.0, %v701
    %v703 = vpop.f32.mrb[0].mxu0
    %v704 = vadd.f32 0.0, %v703
    %705 = vmatprep.mubr.bf16.mxu0 0
    %706 = vmatmul.mubr.bf16.gmra.mrb[0].mxu0 %v239
    %v707 = vpop.f32.mrb[0].mxu0
    %v708 = vadd.f32 0.0, %v707
    %v709 = vpop.f32.mrb[0].mxu0
    %v710 = vadd.f32 0.0, %v709
    %v711 = vpop.f32.mrb[0].mxu0
    %v712 = vadd.f32 0.0, %v711
    %v713 = vpop.f32.mrb[0].mxu0
    %v714 = vadd.f32 0.0, %v713
    %715 = vmatprep.mubr.bf16.mxu0 0
    %716 = vmatmul.mubr.bf16.gmra.mrb[0].mxu0 %v242
    %v717 = vpop.f32.mrb[0].mxu0
    %v718 = vadd.f32 0.0, %v717
    %v719 = vpop.f32.mrb[0].mxu0
    %v720 = vadd.f32 0.0, %v719
    %v721 = vpop.f32.mrb[0].mxu0
    %v722 = vadd.f32 0.0, %v721
    %v723 = vpop.f32.mrb[0].mxu0
    %v724 = vadd.f32 0.0, %v723
    %725 = vmatprep.mubr.bf16.mxu0 0
    %726 = vmatmul.mubr.bf16.gmra.mrb[0].mxu0 %v245
    %v727 = vpop.f32.mrb[0].mxu0
    %v728 = vadd.f32 0.0, %v727
    %v729 = vpop.f32.mrb[0].mxu0
    %v730 = vadd.f32 0.0, %v729
    %v731 = vpop.f32.mrb[0].mxu0
    %v732 = vadd.f32 0.0, %v731
    %v733 = vpop.f32.mrb[0].mxu0
    %v734 = vadd.f32 0.0, %v733
    %735 = vdwg.mxu0
    %736 = vmatprep.subr.bf16.mxu0 %v195
    %737 = vmatpush1.bf16.msra.mxu0 %v194
    %738 = vmatprep.subr.bf16.mxu0 %v276
    %739 = vmatpush1.bf16.msra.mxu0 %v273
    %740 = vmatprep.subr.bf16.mxu0 0
    %741 = vmatpush1.bf16.msra.mxu0 0
    %742 = vmatprep.subr.bf16.mxu0 0
    %743 = vmatpush1.bf16.msra.mxu0 0
    %744 = vmatprep.subr.bf16.mxu0 0
    %745 = vmatpush1.bf16.msra.mxu0 0
    %746 = vmatprep.subr.bf16.mxu0 0
    %747 = vmatpush1.bf16.msra.mxu0 0
    %748 = vmatprep.subr.bf16.mxu0 0
    %749 = vmatpush1.bf16.msra.mxu0 0
    %750 = vmatprep.subr.bf16.mxu0 0
    %751 = vmatpush1.bf16.msra.mxu0 0
    %752 = vmatprep.subr.bf16.mxu0 0
    %753 = vmatpush1.bf16.msra.mxu0 0
    %754 = vmatprep.subr.bf16.mxu0 0
    %755 = vmatpush1.bf16.msra.mxu0 0
    %756 = vmatprep.subr.bf16.mxu0 0
    %757 = vmatpush1.bf16.msra.mxu0 0
    %758 = vmatprep.subr.bf16.mxu0 0
    %759 = vmatpush1.bf16.msra.mxu0 0
    %760 = vmatprep.subr.bf16.mxu0 0
    %761 = vmatpush1.bf16.msra.mxu0 0
    %762 = vmatprep.subr.bf16.mxu0 0
    %763 = vmatpush1.bf16.msra.mxu0 0
    %764 = vmatprep.subr.bf16.mxu0 0
    %765 = vmatpush1.bf16.msra.mxu0 0
    %766 = vmatprep.subr.bf16.mxu0 0
    %767 = vmatpush1.bf16.msra.mxu0 0
    %768 = vmatprep.mubr.bf16.mxu0 0
    %769 = vmatmul.mubr.bf16.gmra.mrb[0].mxu0 %v224
    %v770 = vpop.f32.mrb[0].mxu0
    %v771 = vadd.f32 0.0, %v770
    %v772 = vpop.f32.mrb[0].mxu0
    %v773 = vadd.f32 0.0, %v772
    %v774 = vpop.f32.mrb[0].mxu0
    %v775 = vadd.f32 0.0, %v774
    %v776 = vpop.f32.mrb[0].mxu0
    %v777 = vadd.f32 0.0, %v776
    %778 = vmatprep.mubr.bf16.mxu0 0
    %779 = vmatmul.mubr.bf16.gmra.mrb[0].mxu0 %v227
    %v780 = vpop.f32.mrb[0].mxu0
    %v781 = vadd.f32 0.0, %v780
    %v782 = vpop.f32.mrb[0].mxu0
    %v783 = vadd.f32 0.0, %v782
    %v784 = vpop.f32.mrb[0].mxu0
    %v785 = vadd.f32 0.0, %v784
    %v786 = vpop.f32.mrb[0].mxu0
    %v787 = vadd.f32 0.0, %v786
    %788 = vmatprep.mubr.bf16.mxu0 0
    %789 = vmatmul.mubr.bf16.gmra.mrb[0].mxu0 %v230
    %v790 = vpop.f32.mrb[0].mxu0
    %v791 = vadd.f32 0.0, %v790
    %v792 = vpop.f32.mrb[0].mxu0
    %v793 = vadd.f32 0.0, %v792
    %v794 = vpop.f32.mrb[0].mxu0
    %v795 = vadd.f32 0.0, %v794
    %v796 = vpop.f32.mrb[0].mxu0
    %v797 = vadd.f32 0.0, %v796
    %798 = vmatprep.mubr.bf16.mxu0 0
    %799 = vmatmul.mubr.bf16.gmra.mrb[0].mxu0 %v233
    %v800 = vpop.f32.mrb[0].mxu0
    %v801 = vadd.f32 0.0, %v800
    %v802 = vpop.f32.mrb[0].mxu0
    %v803 = vadd.f32 0.0, %v802
    %v804 = vpop.f32.mrb[0].mxu0
    %v805 = vadd.f32 0.0, %v804
    %v806 = vpop.f32.mrb[0].mxu0
    %v807 = vadd.f32 0.0, %v806
    %808 = vmatprep.mubr.bf16.mxu0 0
    %809 = vmatmul.mubr.bf16.gmra.mrb[0].mxu0 %v236
    %v810 = vpop.f32.mrb[0].mxu0
    %v811 = vadd.f32 0.0, %v810
    %v812 = vpop.f32.mrb[0].mxu0
    %v813 = vadd.f32 0.0, %v812
    %v814 = vpop.f32.mrb[0].mxu0
    %v815 = vadd.f32 0.0, %v814
    %v816 = vpop.f32.mrb[0].mxu0
    %v817 = vadd.f32 0.0, %v816
    %818 = vmatprep.mubr.bf16.mxu0 0
    %819 = vmatmul.mubr.bf16.gmra.mrb[0].mxu0 %v239
    %v820 = vpop.f32.mrb[0].mxu0
    %v821 = vadd.f32 0.0, %v820
    %v822 = vpop.f32.mrb[0].mxu0
    %v823 = vadd.f32 0.0, %v822
    %v824 = vpop.f32.mrb[0].mxu0
    %v825 = vadd.f32 0.0, %v824
    %v826 = vpop.f32.mrb[0].mxu0
    %v827 = vadd.f32 0.0, %v826
    %828 = vmatprep.mubr.bf16.mxu0 0
    %829 = vmatmul.mubr.bf16.gmra.mrb[0].mxu0 %v242
    %v830 = vpop.f32.mrb[0].mxu0
    %v831 = vadd.f32 0.0, %v830
    %v832 = vpop.f32.mrb[0].mxu0
    %v833 = vadd.f32 0.0, %v832
    %v834 = vpop.f32.mrb[0].mxu0
    %v835 = vadd.f32 0.0, %v834
    %v836 = vpop.f32.mrb[0].mxu0
    %v837 = vadd.f32 0.0, %v836
    %838 = vmatprep.mubr.bf16.mxu0 0
    %839 = vmatmul.mubr.bf16.gmra.mrb[0].mxu0 %v245
    %v840 = vpop.f32.mrb[0].mxu0
    %v841 = vadd.f32 0.0, %v840
    %v842 = vpop.f32.mrb[0].mxu0
    %v843 = vadd.f32 0.0, %v842
    %v844 = vpop.f32.mrb[0].mxu0
    %v845 = vadd.f32 0.0, %v844
    %v846 = vpop.f32.mrb[0].mxu0
    %v847 = vadd.f32 0.0, %v846
    %848 = vdwg.mxu0
    %849 = vmatprep.subr.bf16.mxu0 %v197
    %850 = vmatpush1.bf16.msra.mxu0 %v196
    %851 = vmatprep.subr.bf16.mxu0 %v282
    %852 = vmatpush1.bf16.msra.mxu0 %v279
    %853 = vmatprep.subr.bf16.mxu0 0
    %854 = vmatpush1.bf16.msra.mxu0 0
    %855 = vmatprep.subr.bf16.mxu0 0
    %856 = vmatpush1.bf16.msra.mxu0 0
    %857 = vmatprep.subr.bf16.mxu0 0
    %858 = vmatpush1.bf16.msra.mxu0 0
    %859 = vmatprep.subr.bf16.mxu0 0
    %860 = vmatpush1.bf16.msra.mxu0 0
    %861 = vmatprep.subr.bf16.mxu0 0
    %862 = vmatpush1.bf16.msra.mxu0 0
    %863 = vmatprep.subr.bf16.mxu0 0
    %864 = vmatpush1.bf16.msra.mxu0 0
    %865 = vmatprep.subr.bf16.mxu0 0
    %866 = vmatpush1.bf16.msra.mxu0 0
    %867 = vmatprep.subr.bf16.mxu0 0
    %868 = vmatpush1.bf16.msra.mxu0 0
    %869 = vmatprep.subr.bf16.mxu0 0
    %870 = vmatpush1.bf16.msra.mxu0 0
    %871 = vmatprep.subr.bf16.mxu0 0
    %872 = vmatpush1.bf16.msra.mxu0 0
    %873 = vmatprep.subr.bf16.mxu0 0
    %874 = vmatpush1.bf16.msra.mxu0 0
    %875 = vmatprep.subr.bf16.mxu0 0
    %876 = vmatpush1.bf16.msra.mxu0 0
    %877 = vmatprep.subr.bf16.mxu0 0
    %878 = vmatpush1.bf16.msra.mxu0 0
    %879 = vmatprep.subr.bf16.mxu0 0
    %880 = vmatpush1.bf16.msra.mxu0 0
    %881 = vmatprep.mubr.bf16.mxu0 0
    %882 = vmatmul.mubr.bf16.gmra.mrb[0].mxu0 %v224
    %v883 = vpop.f32.mrb[0].mxu0
    %v884 = vadd.f32 0.0, %v883
    %v885 = vpop.f32.mrb[0].mxu0
    %v886 = vadd.f32 0.0, %v885
    %v887 = vpop.f32.mrb[0].mxu0
    %v888 = vadd.f32 0.0, %v887
    %v889 = vpop.f32.mrb[0].mxu0
    %v890 = vadd.f32 0.0, %v889
    %891 = vmatprep.mubr.bf16.mxu0 0
    %892 = vmatmul.mubr.bf16.gmra.mrb[0].mxu0 %v227
    %v893 = vpop.f32.mrb[0].mxu0
    %v894 = vadd.f32 0.0, %v893
    %v895 = vpop.f32.mrb[0].mxu0
    %v896 = vadd.f32 0.0, %v895
    %v897 = vpop.f32.mrb[0].mxu0
    %v898 = vadd.f32 0.0, %v897
    %v899 = vpop.f32.mrb[0].mxu0
    %v900 = vadd.f32 0.0, %v899
    %901 = vmatprep.mubr.bf16.mxu0 0
    %902 = vmatmul.mubr.bf16.gmra.mrb[0].mxu0 %v230
    %v903 = vpop.f32.mrb[0].mxu0
    %v904 = vadd.f32 0.0, %v903
    %v905 = vpop.f32.mrb[0].mxu0
    %v906 = vadd.f32 0.0, %v905
    %v907 = vpop.f32.mrb[0].mxu0
    %v908 = vadd.f32 0.0, %v907
    %v909 = vpop.f32.mrb[0].mxu0
    %v910 = vadd.f32 0.0, %v909
    %911 = vmatprep.mubr.bf16.mxu0 0
    %912 = vmatmul.mubr.bf16.gmra.mrb[0].mxu0 %v233
    %v913 = vpop.f32.mrb[0].mxu0
    %v914 = vadd.f32 0.0, %v913
    %v915 = vpop.f32.mrb[0].mxu0
    %v916 = vadd.f32 0.0, %v915
    %v917 = vpop.f32.mrb[0].mxu0
    %v918 = vadd.f32 0.0, %v917
    %v919 = vpop.f32.mrb[0].mxu0
    %v920 = vadd.f32 0.0, %v919
    %921 = vmatprep.mubr.bf16.mxu0 0
    %922 = vmatmul.mubr.bf16.gmra.mrb[0].mxu0 %v236
    %v923 = vpop.f32.mrb[0].mxu0
    %v924 = vadd.f32 0.0, %v923
    %v925 = vpop.f32.mrb[0].mxu0
    %v926 = vadd.f32 0.0, %v925
    %v927 = vpop.f32.mrb[0].mxu0
    %v928 = vadd.f32 0.0, %v927
    %v929 = vpop.f32.mrb[0].mxu0
    %v930 = vadd.f32 0.0, %v929
    %931 = vmatprep.mubr.bf16.mxu0 0
    %932 = vmatmul.mubr.bf16.gmra.mrb[0].mxu0 %v239
    %v933 = vpop.f32.mrb[0].mxu0
    %v934 = vadd.f32 0.0, %v933
    %v935 = vpop.f32.mrb[0].mxu0
    %v936 = vadd.f32 0.0, %v935
    %v937 = vpop.f32.mrb[0].mxu0
    %v938 = vadd.f32 0.0, %v937
    %v939 = vpop.f32.mrb[0].mxu0
    %v940 = vadd.f32 0.0, %v939
    %941 = vmatprep.mubr.bf16.mxu0 0
    %942 = vmatmul.mubr.bf16.gmra.mrb[0].mxu0 %v242
    %v943 = vpop.f32.mrb[0].mxu0
    %v944 = vadd.f32 0.0, %v943
    %v945 = vpop.f32.mrb[0].mxu0
    %v946 = vadd.f32 0.0, %v945
    %v947 = vpop.f32.mrb[0].mxu0
    %v948 = vadd.f32 0.0, %v947
    %v949 = vpop.f32.mrb[0].mxu0
    %v950 = vadd.f32 0.0, %v949
    %951 = vmatprep.mubr.bf16.mxu0 0
    %952 = vmatmul.mubr.bf16.gmra.mrb[0].mxu0 %v245
    %v953 = vpop.f32.mrb[0].mxu0
    %v954 = vadd.f32 0.0, %v953
    %v955 = vpop.f32.mrb[0].mxu0
    %v956 = vadd.f32 0.0, %v955
    %v957 = vpop.f32.mrb[0].mxu0
    %v958 = vadd.f32 0.0, %v957
    %v959 = vpop.f32.mrb[0].mxu0
    %v960 = vadd.f32 0.0, %v959
    %961 = vdwg.mxu0
    %v962 = vld [vmem:[%s2] sm:$0xff]
    %v964 = vlaneseq
    %v965 = vshrl.u32 %v964, 7
    %v966 = vsub.s32 0, %v965
    %v967 = vrot.slane %v962, %v966
    %v968 = vlaneseq
    %v969 = vshrl.u32 %v968, 7
    %v970 = vsub.s32 1, %v969
    %v971 = vrot.slane %v962, %v970
    %v972 = vlaneseq
    %v973 = vshrl.u32 %v972, 7
    %v974 = vsub.s32 2, %v973
    %v975 = vrot.slane %v962, %v974
    %v976 = vlaneseq
    %v977 = vshrl.u32 %v976, 7
    %v978 = vsub.s32 3, %v977
    %v979 = vrot.slane %v962, %v978
    %v980 = vlaneseq
    %v981 = vshrl.u32 %v980, 7
    %v982 = vsub.s32 4, %v981
    %v983 = vrot.slane %v962, %v982
    %v984 = vlaneseq
    %v985 = vshrl.u32 %v984, 7
    %v986 = vsub.s32 5, %v985
    %v987 = vrot.slane %v962, %v986
    %v988 = vlaneseq
    %v989 = vshrl.u32 %v988, 7
    %v990 = vsub.s32 6, %v989
    %v991 = vrot.slane %v962, %v990
    %v992 = vlaneseq
    %v993 = vshrl.u32 %v992, 7
    %v994 = vsub.s32 7, %v993
    %v995 = vrot.slane %v962, %v994
    %v1004 = vadd.f32 %v319, %v967
    %v1005 = vadd.f32 %v321, %v971
    %v1006 = vadd.f32 %v432, %v975
    %v1007 = vadd.f32 %v434, %v979
    %v1008 = vadd.f32 %v545, %v983
    %v1009 = vadd.f32 %v547, %v987
    %v1010 = vadd.f32 %v658, %v991
    %v1011 = vadd.f32 %v660, %v995
    %v1012 = vadd.f32 %v323, %v967
    %v1013 = vadd.f32 %v325, %v971
    %v1014 = vadd.f32 %v436, %v975
    %v1015 = vadd.f32 %v438, %v979
    %v1016 = vadd.f32 %v549, %v983
    %v1017 = vadd.f32 %v551, %v987
    %v1018 = vadd.f32 %v662, %v991
    %v1019 = vadd.f32 %v664, %v995
    %v1020 = vadd.f32 %v329, %v967
    %v1021 = vadd.f32 %v331, %v971
    %v1022 = vadd.f32 %v442, %v975
    %v1023 = vadd.f32 %v444, %v979
    %v1024 = vadd.f32 %v555, %v983
    %v1025 = vadd.f32 %v557, %v987
    %v1026 = vadd.f32 %v668, %v991
    %v1027 = vadd.f32 %v670, %v995
    %v1028 = vadd.f32 %v333, %v967
    %v1029 = vadd.f32 %v335, %v971
    %v1030 = vadd.f32 %v446, %v975
    %v1031 = vadd.f32 %v448, %v979
    %v1032 = vadd.f32 %v559, %v983
    %v1033 = vadd.f32 %v561, %v987
    %v1034 = vadd.f32 %v672, %v991
    %v1035 = vadd.f32 %v674, %v995
    %v1036 = vadd.f32 %v339, %v967
    %v1037 = vadd.f32 %v341, %v971
    %v1038 = vadd.f32 %v452, %v975
    %v1039 = vadd.f32 %v454, %v979
    %v1040 = vadd.f32 %v565, %v983
    %v1041 = vadd.f32 %v567, %v987
    %v1042 = vadd.f32 %v678, %v991
    %v1043 = vadd.f32 %v680, %v995
    %v1044 = vadd.f32 %v343, %v967
    %v1045 = vadd.f32 %v345, %v971
    %v1046 = vadd.f32 %v456, %v975
    %v1047 = vadd.f32 %v458, %v979
    %v1048 = vadd.f32 %v569, %v983
    %v1049 = vadd.f32 %v571, %v987
    %v1050 = vadd.f32 %v682, %v991
    %v1051 = vadd.f32 %v684, %v995
    %v1052 = vadd.f32 %v349, %v967
    %v1053 = vadd.f32 %v351, %v971
    %v1054 = vadd.f32 %v462, %v975
    %v1055 = vadd.f32 %v464, %v979
    %v1056 = vadd.f32 %v575, %v983
    %v1057 = vadd.f32 %v577, %v987
    %v1058 = vadd.f32 %v688, %v991
    %v1059 = vadd.f32 %v690, %v995
    %v1060 = vadd.f32 %v353, %v967
    %v1061 = vadd.f32 %v355, %v971
    %v1062 = vadd.f32 %v466, %v975
    %v1063 = vadd.f32 %v468, %v979
    %v1064 = vadd.f32 %v579, %v983
    %v1065 = vadd.f32 %v581, %v987
    %v1066 = vadd.f32 %v692, %v991
    %v1067 = vadd.f32 %v694, %v995
    %v1068 = vadd.f32 %v359, %v967
    %v1069 = vadd.f32 %v361, %v971
    %v1070 = vadd.f32 %v472, %v975
    %v1071 = vadd.f32 %v474, %v979
    %v1072 = vadd.f32 %v585, %v983
    %v1073 = vadd.f32 %v587, %v987
    %v1074 = vadd.f32 %v698, %v991
    %v1075 = vadd.f32 %v700, %v995
    %v1076 = vadd.f32 %v363, %v967
    %v1077 = vadd.f32 %v365, %v971
    %v1078 = vadd.f32 %v476, %v975
    %v1079 = vadd.f32 %v478, %v979
    %v1080 = vadd.f32 %v589, %v983
    %v1081 = vadd.f32 %v591, %v987
    %v1082 = vadd.f32 %v702, %v991
    %v1083 = vadd.f32 %v704, %v995
    %v1084 = vadd.f32 %v369, %v967
    %v1085 = vadd.f32 %v371, %v971
    %v1086 = vadd.f32 %v482, %v975
    %v1087 = vadd.f32 %v484, %v979
    %v1088 = vadd.f32 %v595, %v983
    %v1089 = vadd.f32 %v597, %v987
    %v1090 = vadd.f32 %v708, %v991
    %v1091 = vadd.f32 %v710, %v995
    %v1092 = vadd.f32 %v373, %v967
    %v1093 = vadd.f32 %v375, %v971
    %v1094 = vadd.f32 %v486, %v975
    %v1095 = vadd.f32 %v488, %v979
    %v1096 = vadd.f32 %v599, %v983
    %v1097 = vadd.f32 %v601, %v987
    %v1098 = vadd.f32 %v712, %v991
    %v1099 = vadd.f32 %v714, %v995
    %v1100 = vadd.f32 %v379, %v967
    %v1101 = vadd.f32 %v381, %v971
    %v1102 = vadd.f32 %v492, %v975
    %v1103 = vadd.f32 %v494, %v979
    %v1104 = vadd.f32 %v605, %v983
    %v1105 = vadd.f32 %v607, %v987
    %v1106 = vadd.f32 %v718, %v991
    %v1107 = vadd.f32 %v720, %v995
    %v1108 = vadd.f32 %v383, %v967
    %v1109 = vadd.f32 %v385, %v971
    %v1110 = vadd.f32 %v496, %v975
    %v1111 = vadd.f32 %v498, %v979
    %v1112 = vadd.f32 %v609, %v983
    %v1113 = vadd.f32 %v611, %v987
    %v1114 = vadd.f32 %v722, %v991
    %v1115 = vadd.f32 %v724, %v995
    %v1116 = vadd.f32 %v389, %v967
    %v1117 = vadd.f32 %v391, %v971
    %v1118 = vadd.f32 %v502, %v975
    %v1119 = vadd.f32 %v504, %v979
    %v1120 = vadd.f32 %v615, %v983
    %v1121 = vadd.f32 %v617, %v987
    %v1122 = vadd.f32 %v728, %v991
    %v1123 = vadd.f32 %v730, %v995
    %v1124 = vadd.f32 %v393, %v967
    %v1125 = vadd.f32 %v395, %v971
    %v1126 = vadd.f32 %v506, %v975
    %v1127 = vadd.f32 %v508, %v979
    %v1128 = vadd.f32 %v619, %v983
    %v1129 = vadd.f32 %v621, %v987
    %v1130 = vadd.f32 %v732, %v991
    %v1131 = vadd.f32 %v734, %v995
    %v1132 = vmax.f32 %v1004, 0.0
    %v1133 = vmax.f32 %v1005, 0.0
    %v1134 = vmax.f32 %v1006, 0.0
    %v1135 = vmax.f32 %v1007, 0.0
    %v1136 = vmax.f32 %v1008, 0.0
    %v1137 = vmax.f32 %v1009, 0.0
    %v1138 = vmax.f32 %v1010, 0.0
    %v1139 = vmax.f32 %v1011, 0.0
    %v1140 = vmax.f32 %v1012, 0.0
    %v1141 = vmax.f32 %v1013, 0.0
    %v1142 = vmax.f32 %v1014, 0.0
    %v1143 = vmax.f32 %v1015, 0.0
    %v1144 = vmax.f32 %v1016, 0.0
    %v1145 = vmax.f32 %v1017, 0.0
    %v1146 = vmax.f32 %v1018, 0.0
    %v1147 = vmax.f32 %v1019, 0.0
    %v1148 = vmax.f32 %v1020, 0.0
    %v1149 = vmax.f32 %v1021, 0.0
    %v1150 = vmax.f32 %v1022, 0.0
    %v1151 = vmax.f32 %v1023, 0.0
    %v1152 = vmax.f32 %v1024, 0.0
    %v1153 = vmax.f32 %v1025, 0.0
    %v1154 = vmax.f32 %v1026, 0.0
    %v1155 = vmax.f32 %v1027, 0.0
    %v1156 = vmax.f32 %v1028, 0.0
    %v1157 = vmax.f32 %v1029, 0.0
    %v1158 = vmax.f32 %v1030, 0.0
    %v1159 = vmax.f32 %v1031, 0.0
    %v1160 = vmax.f32 %v1032, 0.0
    %v1161 = vmax.f32 %v1033, 0.0
    %v1162 = vmax.f32 %v1034, 0.0
    %v1163 = vmax.f32 %v1035, 0.0
    %v1164 = vmax.f32 %v1036, 0.0
    %v1165 = vmax.f32 %v1037, 0.0
    %v1166 = vmax.f32 %v1038, 0.0
    %v1167 = vmax.f32 %v1039, 0.0
    %v1168 = vmax.f32 %v1040, 0.0
    %v1169 = vmax.f32 %v1041, 0.0
    %v1170 = vmax.f32 %v1042, 0.0
    %v1171 = vmax.f32 %v1043, 0.0
    %v1172 = vmax.f32 %v1044, 0.0
    %v1173 = vmax.f32 %v1045, 0.0
    %v1174 = vmax.f32 %v1046, 0.0
    %v1175 = vmax.f32 %v1047, 0.0
    %v1176 = vmax.f32 %v1048, 0.0
    %v1177 = vmax.f32 %v1049, 0.0
    %v1178 = vmax.f32 %v1050, 0.0
    %v1179 = vmax.f32 %v1051, 0.0
    %v1180 = vmax.f32 %v1052, 0.0
    %v1181 = vmax.f32 %v1053, 0.0
    %v1182 = vmax.f32 %v1054, 0.0
    %v1183 = vmax.f32 %v1055, 0.0
    %v1184 = vmax.f32 %v1056, 0.0
    %v1185 = vmax.f32 %v1057, 0.0
    %v1186 = vmax.f32 %v1058, 0.0
    %v1187 = vmax.f32 %v1059, 0.0
    %v1188 = vmax.f32 %v1060, 0.0
    %v1189 = vmax.f32 %v1061, 0.0
    %v1190 = vmax.f32 %v1062, 0.0
    %v1191 = vmax.f32 %v1063, 0.0
    %v1192 = vmax.f32 %v1064, 0.0
    %v1193 = vmax.f32 %v1065, 0.0
    %v1194 = vmax.f32 %v1066, 0.0
    %v1195 = vmax.f32 %v1067, 0.0
    %v1196 = vmax.f32 %v1068, 0.0
    %v1197 = vmax.f32 %v1069, 0.0
    %v1198 = vmax.f32 %v1070, 0.0
    %v1199 = vmax.f32 %v1071, 0.0
    %v1200 = vmax.f32 %v1072, 0.0
    %v1201 = vmax.f32 %v1073, 0.0
    %v1202 = vmax.f32 %v1074, 0.0
    %v1203 = vmax.f32 %v1075, 0.0
    %v1204 = vmax.f32 %v1076, 0.0
    %v1205 = vmax.f32 %v1077, 0.0
    %v1206 = vmax.f32 %v1078, 0.0
    %v1207 = vmax.f32 %v1079, 0.0
    %v1208 = vmax.f32 %v1080, 0.0
    %v1209 = vmax.f32 %v1081, 0.0
    %v1210 = vmax.f32 %v1082, 0.0
    %v1211 = vmax.f32 %v1083, 0.0
    %v1212 = vmax.f32 %v1084, 0.0
    %v1213 = vmax.f32 %v1085, 0.0
    %v1214 = vmax.f32 %v1086, 0.0
    %v1215 = vmax.f32 %v1087, 0.0
    %v1216 = vmax.f32 %v1088, 0.0
    %v1217 = vmax.f32 %v1089, 0.0
    %v1218 = vmax.f32 %v1090, 0.0
    %v1219 = vmax.f32 %v1091, 0.0
    %v1220 = vmax.f32 %v1092, 0.0
    %v1221 = vmax.f32 %v1093, 0.0
    %v1222 = vmax.f32 %v1094, 0.0
    %v1223 = vmax.f32 %v1095, 0.0
    %v1224 = vmax.f32 %v1096, 0.0
    %v1225 = vmax.f32 %v1097, 0.0
    %v1226 = vmax.f32 %v1098, 0.0
    %v1227 = vmax.f32 %v1099, 0.0
    %v1228 = vmax.f32 %v1100, 0.0
    %v1229 = vmax.f32 %v1101, 0.0
    %v1230 = vmax.f32 %v1102, 0.0
    %v1231 = vmax.f32 %v1103, 0.0
    %v1232 = vmax.f32 %v1104, 0.0
    %v1233 = vmax.f32 %v1105, 0.0
    %v1234 = vmax.f32 %v1106, 0.0
    %v1235 = vmax.f32 %v1107, 0.0
    %v1236 = vmax.f32 %v1108, 0.0
    %v1237 = vmax.f32 %v1109, 0.0
    %v1238 = vmax.f32 %v1110, 0.0
    %v1239 = vmax.f32 %v1111, 0.0
    %v1240 = vmax.f32 %v1112, 0.0
    %v1241 = vmax.f32 %v1113, 0.0
    %v1242 = vmax.f32 %v1114, 0.0
    %v1243 = vmax.f32 %v1115, 0.0
    %v1244 = vmax.f32 %v1116, 0.0
    %v1245 = vmax.f32 %v1117, 0.0
    %v1246 = vmax.f32 %v1118, 0.0
    %v1247 = vmax.f32 %v1119, 0.0
    %v1248 = vmax.f32 %v1120, 0.0
    %v1249 = vmax.f32 %v1121, 0.0
    %v1250 = vmax.f32 %v1122, 0.0
    %v1251 = vmax.f32 %v1123, 0.0
    %v1252 = vmax.f32 %v1124, 0.0
    %v1253 = vmax.f32 %v1125, 0.0
    %v1254 = vmax.f32 %v1126, 0.0
    %v1255 = vmax.f32 %v1127, 0.0
    %v1256 = vmax.f32 %v1128, 0.0
    %v1257 = vmax.f32 %v1129, 0.0
    %v1258 = vmax.f32 %v1130, 0.0
    %v1259 = vmax.f32 %v1131, 0.0
    %v1260 = vpack.c.bf16 %v1140, %v1132
    %v1261 = vpack.c.bf16 %v1141, %v1133
    %v1262 = vpack.c.bf16 %v1142, %v1134
    %v1263 = vpack.c.bf16 %v1143, %v1135
    %v1264 = vpack.c.bf16 %v1144, %v1136
    %v1265 = vpack.c.bf16 %v1145, %v1137
    %v1266 = vpack.c.bf16 %v1146, %v1138
    %v1267 = vpack.c.bf16 %v1147, %v1139
    %v1268 = vpack.c.bf16 %v1156, %v1148
    %v1269 = vpack.c.bf16 %v1157, %v1149
    %v1270 = vpack.c.bf16 %v1158, %v1150
    %v1271 = vpack.c.bf16 %v1159, %v1151
    %v1272 = vpack.c.bf16 %v1160, %v1152
    %v1273 = vpack.c.bf16 %v1161, %v1153
    %v1274 = vpack.c.bf16 %v1162, %v1154
    %v1275 = vpack.c.bf16 %v1163, %v1155
    %v1276 = vpack.c.bf16 %v1172, %v1164
    %v1277 = vpack.c.bf16 %v1173, %v1165
    %v1278 = vpack.c.bf16 %v1174, %v1166
    %v1279 = vpack.c.bf16 %v1175, %v1167
    %v1280 = vpack.c.bf16 %v1176, %v1168
    %v1281 = vpack.c.bf16 %v1177, %v1169
    %v1282 = vpack.c.bf16 %v1178, %v1170
    %v1283 = vpack.c.bf16 %v1179, %v1171
    %v1284 = vpack.c.bf16 %v1188, %v1180
    %v1285 = vpack.c.bf16 %v1189, %v1181
    %v1286 = vpack.c.bf16 %v1190, %v1182
    %v1287 = vpack.c.bf16 %v1191, %v1183
    %v1288 = vpack.c.bf16 %v1192, %v1184
    %v1289 = vpack.c.bf16 %v1193, %v1185
    %v1290 = vpack.c.bf16 %v1194, %v1186
    %v1291 = vpack.c.bf16 %v1195, %v1187
    %v1292 = vpack.c.bf16 %v1204, %v1196
    %v1293 = vpack.c.bf16 %v1205, %v1197
    %v1294 = vpack.c.bf16 %v1206, %v1198
    %v1295 = vpack.c.bf16 %v1207, %v1199
    %v1296 = vpack.c.bf16 %v1208, %v1200
    %v1297 = vpack.c.bf16 %v1209, %v1201
    %v1298 = vpack.c.bf16 %v1210, %v1202
    %v1299 = vpack.c.bf16 %v1211, %v1203
    %v1300 = vpack.c.bf16 %v1220, %v1212
    %v1301 = vpack.c.bf16 %v1221, %v1213
    %v1302 = vpack.c.bf16 %v1222, %v1214
    %v1303 = vpack.c.bf16 %v1223, %v1215
    %v1304 = vpack.c.bf16 %v1224, %v1216
    %v1305 = vpack.c.bf16 %v1225, %v1217
    %v1306 = vpack.c.bf16 %v1226, %v1218
    %v1307 = vpack.c.bf16 %v1227, %v1219
    %v1308 = vpack.c.bf16 %v1236, %v1228
    %v1309 = vpack.c.bf16 %v1237, %v1229
    %v1310 = vpack.c.bf16 %v1238, %v1230
    %v1311 = vpack.c.bf16 %v1239, %v1231
    %v1312 = vpack.c.bf16 %v1240, %v1232
    %v1313 = vpack.c.bf16 %v1241, %v1233
    %v1314 = vpack.c.bf16 %v1242, %v1234
    %v1315 = vpack.c.bf16 %v1243, %v1235
    %v1316 = vpack.c.bf16 %v1252, %v1244
    %v1317 = vpack.c.bf16 %v1253, %v1245
    %v1318 = vpack.c.bf16 %v1254, %v1246
    %v1319 = vpack.c.bf16 %v1255, %v1247
    %v1320 = vpack.c.bf16 %v1256, %v1248
    %v1321 = vpack.c.bf16 %v1257, %v1249
    %v1322 = vpack.c.bf16 %v1258, %v1250
    %v1323 = vpack.c.bf16 %v1259, %v1251
    %v1324 = vld [vmem:[#allocation7] sm:$0xff]
    %v1325 = vld [vmem:[#allocation7 + $0x8] sm:$0xff]
    %v1326 = vld [vmem:[#allocation7 + $0x10] sm:$0xff]
    %v1327 = vld [vmem:[#allocation7 + $0x18] sm:$0xff]
    %v1328 = vld [vmem:[#allocation7 + $0x20] sm:$0xff]
    %v1329 = vld [vmem:[#allocation7 + $0x28] sm:$0xff]
    %v1330 = vld [vmem:[#allocation7 + $0x30] sm:$0xff]
    %v1331 = vld [vmem:[#allocation7 + $0x38] sm:$0xff]
    %v1332 = vld [vmem:[#allocation7 + $0x40] sm:$0xff]
    %v1333 = vld [vmem:[#allocation7 + $0x48] sm:$0xff]
    %v1334 = vld [vmem:[#allocation7 + $0x50] sm:$0xff]
    %v1335 = vld [vmem:[#allocation7 + $0x58] sm:$0xff]
    %v1336 = vld [vmem:[#allocation7 + $0x60] sm:$0xff]
    %v1337 = vld [vmem:[#allocation7 + $0x68] sm:$0xff]
    %v1338 = vld [vmem:[#allocation7 + $0x70] sm:$0xff]
    %v1339 = vld [vmem:[#allocation7 + $0x78] sm:$0xff]
    %v1340 = vld [vmem:[#allocation7 + $0x80] sm:$0xff]
    %v1341 = vld [vmem:[#allocation7 + $0x88] sm:$0xff]
    %v1342 = vld [vmem:[#allocation7 + $0x90] sm:$0xff]
    %v1343 = vld [vmem:[#allocation7 + $0x98] sm:$0xff]
    %v1344 = vld [vmem:[#allocation7 + $0xa0] sm:$0xff]
    %v1345 = vld [vmem:[#allocation7 + $0xa8] sm:$0xff]
    %v1346 = vld [vmem:[#allocation7 + $0xb0] sm:$0xff]
    %v1347 = vld [vmem:[#allocation7 + $0xb8] sm:$0xff]
    %v1348 = vld [vmem:[#allocation7 + $0xc0] sm:$0xff]
    %v1349 = vld [vmem:[#allocation7 + $0xc8] sm:$0xff]
    %v1350 = vld [vmem:[#allocation7 + $0xd0] sm:$0xff]
    %v1351 = vld [vmem:[#allocation7 + $0xd8] sm:$0xff]
    %v1352 = vld [vmem:[#allocation7 + $0xe0] sm:$0xff]
    %v1353 = vld [vmem:[#allocation7 + $0xe8] sm:$0xff]
    %v1354 = vld [vmem:[#allocation7 + $0xf0] sm:$0xff]
    %v1355 = vld [vmem:[#allocation7 + $0xf8] sm:$0xff]
    %v1356 = vld [vmem:[#allocation7 + $0x100] sm:$0xff]
    %v1357 = vld [vmem:[#allocation7 + $0x108] sm:$0xff]
    %v1358 = vld [vmem:[#allocation7 + $0x110] sm:$0xff]
    %v1359 = vld [vmem:[#allocation7 + $0x118] sm:$0xff]
    %v1360 = vld [vmem:[#allocation7 + $0x120] sm:$0xff]
    %v1361 = vld [vmem:[#allocation7 + $0x128] sm:$0xff]
    %v1362 = vld [vmem:[#allocation7 + $0x130] sm:$0xff]
    %v1363 = vld [vmem:[#allocation7 + $0x138] sm:$0xff]
    %v1364 = vld [vmem:[#allocation7 + $0x140] sm:$0xff]
    %v1365 = vld [vmem:[#allocation7 + $0x148] sm:$0xff]
    %v1366 = vld [vmem:[#allocation7 + $0x150] sm:$0xff]
    %v1367 = vld [vmem:[#allocation7 + $0x158] sm:$0xff]
    %v1368 = vld [vmem:[#allocation7 + $0x160] sm:$0xff]
    %v1369 = vld [vmem:[#allocation7 + $0x168] sm:$0xff]
    %v1370 = vld [vmem:[#allocation7 + $0x170] sm:$0xff]
    %v1371 = vld [vmem:[#allocation7 + $0x178] sm:$0xff]
    %v1372 = vld [vmem:[#allocation7 + $0x180] sm:$0xff]
    %v1373 = vld [vmem:[#allocation7 + $0x188] sm:$0xff]
    %v1374 = vld [vmem:[#allocation7 + $0x190] sm:$0xff]
    %v1375 = vld [vmem:[#allocation7 + $0x198] sm:$0xff]
    %v1376 = vld [vmem:[#allocation7 + $0x1a0] sm:$0xff]
    %v1377 = vld [vmem:[#allocation7 + $0x1a8] sm:$0xff]
    %v1378 = vld [vmem:[#allocation7 + $0x1b0] sm:$0xff]
    %v1379 = vld [vmem:[#allocation7 + $0x1b8] sm:$0xff]
    %v1380 = vld [vmem:[#allocation7 + $0x1c0] sm:$0xff]
    %v1381 = vld [vmem:[#allocation7 + $0x1c8] sm:$0xff]
    %v1382 = vld [vmem:[#allocation7 + $0x1d0] sm:$0xff]
    %v1383 = vld [vmem:[#allocation7 + $0x1d8] sm:$0xff]
    %v1384 = vld [vmem:[#allocation7 + $0x1e0] sm:$0xff]
    %v1385 = vld [vmem:[#allocation7 + $0x1e8] sm:$0xff]
    %v1386 = vld [vmem:[#allocation7 + $0x1f0] sm:$0xff]
    %v1387 = vld [vmem:[#allocation7 + $0x1f8] sm:$0xff]
    %v1388 = vld [vmem:[#allocation7 + $0x200] sm:$0xff]
    %v1389 = vld [vmem:[#allocation7 + $0x208] sm:$0xff]
    %v1390 = vld [vmem:[#allocation7 + $0x210] sm:$0xff]
    %v1391 = vld [vmem:[#allocation7 + $0x218] sm:$0xff]
    %v1392 = vld [vmem:[#allocation7 + $0x220] sm:$0xff]
    %v1393 = vld [vmem:[#allocation7 + $0x228] sm:$0xff]
    %v1394 = vld [vmem:[#allocation7 + $0x230] sm:$0xff]
    %v1395 = vld [vmem:[#allocation7 + $0x238] sm:$0xff]
    %v1396 = vld [vmem:[#allocation7 + $0x240] sm:$0xff]
    %v1397 = vld [vmem:[#allocation7 + $0x248] sm:$0xff]
    %v1398 = vld [vmem:[#allocation7 + $0x250] sm:$0xff]
    %v1399 = vld [vmem:[#allocation7 + $0x258] sm:$0xff]
    %v1400 = vld [vmem:[#allocation7 + $0x260] sm:$0xff]
    %v1401 = vld [vmem:[#allocation7 + $0x268] sm:$0xff]
    %v1402 = vld [vmem:[#allocation7 + $0x270] sm:$0xff]
    %v1403 = vld [vmem:[#allocation7 + $0x278] sm:$0xff]
    %v1404 = vld [vmem:[#allocation7 + $0x280] sm:$0xff]
    %v1405 = vld [vmem:[#allocation7 + $0x288] sm:$0xff]
    %v1406 = vld [vmem:[#allocation7 + $0x290] sm:$0xff]
    %v1407 = vld [vmem:[#allocation7 + $0x298] sm:$0xff]
    %v1408 = vld [vmem:[#allocation7 + $0x2a0] sm:$0xff]
    %v1409 = vld [vmem:[#allocation7 + $0x2a8] sm:$0xff]
    %v1410 = vld [vmem:[#allocation7 + $0x2b0] sm:$0xff]
    %v1411 = vld [vmem:[#allocation7 + $0x2b8] sm:$0xff]
    %v1412 = vld [vmem:[#allocation7 + $0x2c0] sm:$0xff]
    %v1413 = vld [vmem:[#allocation7 + $0x2c8] sm:$0xff]
    %v1414 = vld [vmem:[#allocation7 + $0x2d0] sm:$0xff]
    %v1415 = vld [vmem:[#allocation7 + $0x2d8] sm:$0xff]
    %v1416 = vld [vmem:[#allocation7 + $0x2e0] sm:$0xff]
    %v1417 = vld [vmem:[#allocation7 + $0x2e8] sm:$0xff]
    %v1418 = vld [vmem:[#allocation7 + $0x2f0] sm:$0xff]
    %v1419 = vld [vmem:[#allocation7 + $0x2f8] sm:$0xff]
    %v1420 = vld [vmem:[#allocation7 + $0x300] sm:$0xff]
    %v1421 = vld [vmem:[#allocation7 + $0x308] sm:$0xff]
    %v1422 = vld [vmem:[#allocation7 + $0x310] sm:$0xff]
    %v1423 = vld [vmem:[#allocation7 + $0x318] sm:$0xff]
    %v1424 = vld [vmem:[#allocation7 + $0x320] sm:$0xff]
    %v1425 = vld [vmem:[#allocation7 + $0x328] sm:$0xff]
    %v1426 = vld [vmem:[#allocation7 + $0x330] sm:$0xff]
    %v1427 = vld [vmem:[#allocation7 + $0x338] sm:$0xff]
    %v1428 = vld [vmem:[#allocation7 + $0x340] sm:$0xff]
    %v1429 = vld [vmem:[#allocation7 + $0x348] sm:$0xff]
    %v1430 = vld [vmem:[#allocation7 + $0x350] sm:$0xff]
    %v1431 = vld [vmem:[#allocation7 + $0x358] sm:$0xff]
    %v1432 = vld [vmem:[#allocation7 + $0x360] sm:$0xff]
    %v1433 = vld [vmem:[#allocation7 + $0x368] sm:$0xff]
    %v1434 = vld [vmem:[#allocation7 + $0x370] sm:$0xff]
    %v1435 = vld [vmem:[#allocation7 + $0x378] sm:$0xff]
    %v1436 = vld [vmem:[#allocation7 + $0x380] sm:$0xff]
    %v1437 = vld [vmem:[#allocation7 + $0x388] sm:$0xff]
    %v1438 = vld [vmem:[#allocation7 + $0x390] sm:$0xff]
    %v1439 = vld [vmem:[#allocation7 + $0x398] sm:$0xff]
    %v1440 = vld [vmem:[#allocation7 + $0x3a0] sm:$0xff]
    %v1441 = vld [vmem:[#allocation7 + $0x3a8] sm:$0xff]
    %v1442 = vld [vmem:[#allocation7 + $0x3b0] sm:$0xff]
    %v1443 = vld [vmem:[#allocation7 + $0x3b8] sm:$0xff]
    %v1444 = vld [vmem:[#allocation7 + $0x3c0] sm:$0xff]
    %v1445 = vld [vmem:[#allocation7 + $0x3c8] sm:$0xff]
    %v1446 = vld [vmem:[#allocation7 + $0x3d0] sm:$0xff]
    %v1447 = vld [vmem:[#allocation7 + $0x3d8] sm:$0xff]
    %v1448 = vld [vmem:[#allocation7 + $0x3e0] sm:$0xff]
    %v1449 = vld [vmem:[#allocation7 + $0x3e8] sm:$0xff]
    %v1450 = vld [vmem:[#allocation7 + $0x3f0] sm:$0xff]
    %v1451 = vld [vmem:[#allocation7 + $0x3f8] sm:$0xff]
    %v1452 = vld [vmem:[#allocation7 + $0x400] sm:$0xff]
    %v1453 = vld [vmem:[#allocation7 + $0x408] sm:$0xff]
    %v1454 = vld [vmem:[#allocation7 + $0x410] sm:$0xff]
    %v1455 = vld [vmem:[#allocation7 + $0x418] sm:$0xff]
    %v1456 = vld [vmem:[#allocation7 + $0x420] sm:$0xff]
    %v1457 = vld [vmem:[#allocation7 + $0x428] sm:$0xff]
    %v1458 = vld [vmem:[#allocation7 + $0x430] sm:$0xff]
    %v1459 = vld [vmem:[#allocation7 + $0x438] sm:$0xff]
    %v1460 = vld [vmem:[#allocation7 + $0x440] sm:$0xff]
    %v1461 = vld [vmem:[#allocation7 + $0x448] sm:$0xff]
    %v1462 = vld [vmem:[#allocation7 + $0x450] sm:$0xff]
    %v1463 = vld [vmem:[#allocation7 + $0x458] sm:$0xff]
    %v1464 = vld [vmem:[#allocation7 + $0x460] sm:$0xff]
    %v1465 = vld [vmem:[#allocation7 + $0x468] sm:$0xff]
    %v1466 = vld [vmem:[#allocation7 + $0x470] sm:$0xff]
    %v1467 = vld [vmem:[#allocation7 + $0x478] sm:$0xff]
    %v1468 = vld [vmem:[#allocation7 + $0x480] sm:$0xff]
    %v1469 = vld [vmem:[#allocation7 + $0x488] sm:$0xff]
    %v1470 = vld [vmem:[#allocation7 + $0x490] sm:$0xff]
    %v1471 = vld [vmem:[#allocation7 + $0x498] sm:$0xff]
    %v1472 = vld [vmem:[#allocation7 + $0x4a0] sm:$0xff]
    %v1473 = vld [vmem:[#allocation7 + $0x4a8] sm:$0xff]
    %v1474 = vld [vmem:[#allocation7 + $0x4b0] sm:$0xff]
    %v1475 = vld [vmem:[#allocation7 + $0x4b8] sm:$0xff]
    %v1476 = vld [vmem:[#allocation7 + $0x4c0] sm:$0xff]
    %v1477 = vld [vmem:[#allocation7 + $0x4c8] sm:$0xff]
    %v1478 = vld [vmem:[#allocation7 + $0x4d0] sm:$0xff]
    %v1479 = vld [vmem:[#allocation7 + $0x4d8] sm:$0xff]
    %v1480 = vld [vmem:[#allocation7 + $0x4e0] sm:$0xff]
    %v1481 = vld [vmem:[#allocation7 + $0x4e8] sm:$0xff]
    %v1482 = vld [vmem:[#allocation7 + $0x4f0] sm:$0xff]
    %v1483 = vld [vmem:[#allocation7 + $0x4f8] sm:$0xff]
    %v1484 = vld [vmem:[#allocation7 + $0x500] sm:$0xff]
    %v1485 = vld [vmem:[#allocation7 + $0x508] sm:$0xff]
    %v1486 = vld [vmem:[#allocation7 + $0x510] sm:$0xff]
    %v1487 = vld [vmem:[#allocation7 + $0x518] sm:$0xff]
    %v1488 = vld [vmem:[#allocation7 + $0x520] sm:$0xff]
    %v1489 = vld [vmem:[#allocation7 + $0x528] sm:$0xff]
    %v1490 = vld [vmem:[#allocation7 + $0x530] sm:$0xff]
    %v1491 = vld [vmem:[#allocation7 + $0x538] sm:$0xff]
    %v1492 = vld [vmem:[#allocation7 + $0x540] sm:$0xff]
    %v1493 = vld [vmem:[#allocation7 + $0x548] sm:$0xff]
    %v1494 = vld [vmem:[#allocation7 + $0x550] sm:$0xff]
    %v1495 = vld [vmem:[#allocation7 + $0x558] sm:$0xff]
    %v1496 = vld [vmem:[#allocation7 + $0x560] sm:$0xff]
    %v1497 = vld [vmem:[#allocation7 + $0x568] sm:$0xff]
    %v1498 = vld [vmem:[#allocation7 + $0x570] sm:$0xff]
    %v1499 = vld [vmem:[#allocation7 + $0x578] sm:$0xff]
    %v1500 = vld [vmem:[#allocation7 + $0x580] sm:$0xff]
    %v1501 = vld [vmem:[#allocation7 + $0x588] sm:$0xff]
    %v1502 = vld [vmem:[#allocation7 + $0x590] sm:$0xff]
    %v1503 = vld [vmem:[#allocation7 + $0x598] sm:$0xff]
    %v1504 = vld [vmem:[#allocation7 + $0x5a0] sm:$0xff]
    %v1505 = vld [vmem:[#allocation7 + $0x5a8] sm:$0xff]
    %v1506 = vld [vmem:[#allocation7 + $0x5b0] sm:$0xff]
    %v1507 = vld [vmem:[#allocation7 + $0x5b8] sm:$0xff]
    %v1508 = vld [vmem:[#allocation7 + $0x5c0] sm:$0xff]
    %v1509 = vld [vmem:[#allocation7 + $0x5c8] sm:$0xff]
    %v1510 = vld [vmem:[#allocation7 + $0x5d0] sm:$0xff]
    %v1511 = vld [vmem:[#allocation7 + $0x5d8] sm:$0xff]
    %v1512 = vld [vmem:[#allocation7 + $0x5e0] sm:$0xff]
    %v1513 = vld [vmem:[#allocation7 + $0x5e8] sm:$0xff]
    %v1514 = vld [vmem:[#allocation7 + $0x5f0] sm:$0xff]
    %v1515 = vld [vmem:[#allocation7 + $0x5f8] sm:$0xff]
    %v1516 = vld [vmem:[#allocation7 + $0x600] sm:$0xff]
    %v1517 = vld [vmem:[#allocation7 + $0x608] sm:$0xff]
    %v1518 = vld [vmem:[#allocation7 + $0x610] sm:$0xff]
    %v1519 = vld [vmem:[#allocation7 + $0x618] sm:$0xff]
    %v1520 = vld [vmem:[#allocation7 + $0x620] sm:$0xff]
    %v1521 = vld [vmem:[#allocation7 + $0x628] sm:$0xff]
    %v1522 = vld [vmem:[#allocation7 + $0x630] sm:$0xff]
    %v1523 = vld [vmem:[#allocation7 + $0x638] sm:$0xff]
    %v1524 = vld [vmem:[#allocation7 + $0x640] sm:$0xff]
    %v1525 = vld [vmem:[#allocation7 + $0x648] sm:$0xff]
    %v1526 = vld [vmem:[#allocation7 + $0x650] sm:$0xff]
    %v1527 = vld [vmem:[#allocation7 + $0x658] sm:$0xff]
    %v1528 = vld [vmem:[#allocation7 + $0x660] sm:$0xff]
    %v1529 = vld [vmem:[#allocation7 + $0x668] sm:$0xff]
    %v1530 = vld [vmem:[#allocation7 + $0x670] sm:$0xff]
    %v1531 = vld [vmem:[#allocation7 + $0x678] sm:$0xff]
    %v1532 = vld [vmem:[#allocation7 + $0x680] sm:$0xff]
    %v1533 = vld [vmem:[#allocation7 + $0x688] sm:$0xff]
    %v1534 = vld [vmem:[#allocation7 + $0x690] sm:$0xff]
    %v1535 = vld [vmem:[#allocation7 + $0x698] sm:$0xff]
    %v1536 = vld [vmem:[#allocation7 + $0x6a0] sm:$0xff]
    %v1537 = vld [vmem:[#allocation7 + $0x6a8] sm:$0xff]
    %v1538 = vld [vmem:[#allocation7 + $0x6b0] sm:$0xff]
    %v1539 = vld [vmem:[#allocation7 + $0x6b8] sm:$0xff]
    %v1540 = vld [vmem:[#allocation7 + $0x6c0] sm:$0xff]
    %v1541 = vld [vmem:[#allocation7 + $0x6c8] sm:$0xff]
    %v1542 = vld [vmem:[#allocation7 + $0x6d0] sm:$0xff]
    %v1543 = vld [vmem:[#allocation7 + $0x6d8] sm:$0xff]
    %v1544 = vld [vmem:[#allocation7 + $0x6e0] sm:$0xff]
    %v1545 = vld [vmem:[#allocation7 + $0x6e8] sm:$0xff]
    %v1546 = vld [vmem:[#allocation7 + $0x6f0] sm:$0xff]
    %v1547 = vld [vmem:[#allocation7 + $0x6f8] sm:$0xff]
    %v1548 = vld [vmem:[#allocation7 + $0x700] sm:$0xff]
    %v1549 = vld [vmem:[#allocation7 + $0x708] sm:$0xff]
    %v1550 = vld [vmem:[#allocation7 + $0x710] sm:$0xff]
    %v1551 = vld [vmem:[#allocation7 + $0x718] sm:$0xff]
    %v1552 = vld [vmem:[#allocation7 + $0x720] sm:$0xff]
    %v1553 = vld [vmem:[#allocation7 + $0x728] sm:$0xff]
    %v1554 = vld [vmem:[#allocation7 + $0x730] sm:$0xff]
    %v1555 = vld [vmem:[#allocation7 + $0x738] sm:$0xff]
    %v1556 = vld [vmem:[#allocation7 + $0x740] sm:$0xff]
    %v1557 = vld [vmem:[#allocation7 + $0x748] sm:$0xff]
    %v1558 = vld [vmem:[#allocation7 + $0x750] sm:$0xff]
    %v1559 = vld [vmem:[#allocation7 + $0x758] sm:$0xff]
    %v1560 = vld [vmem:[#allocation7 + $0x760] sm:$0xff]
    %v1561 = vld [vmem:[#allocation7 + $0x768] sm:$0xff]
    %v1562 = vld [vmem:[#allocation7 + $0x770] sm:$0xff]
    %v1563 = vld [vmem:[#allocation7 + $0x778] sm:$0xff]
    %v1564 = vld [vmem:[#allocation7 + $0x780] sm:$0xff]
    %v1565 = vld [vmem:[#allocation7 + $0x788] sm:$0xff]
    %v1566 = vld [vmem:[#allocation7 + $0x790] sm:$0xff]
    %v1567 = vld [vmem:[#allocation7 + $0x798] sm:$0xff]
    %v1568 = vld [vmem:[#allocation7 + $0x7a0] sm:$0xff]
    %v1569 = vld [vmem:[#allocation7 + $0x7a8] sm:$0xff]
    %v1570 = vld [vmem:[#allocation7 + $0x7b0] sm:$0xff]
    %v1571 = vld [vmem:[#allocation7 + $0x7b8] sm:$0xff]
    %v1572 = vld [vmem:[#allocation7 + $0x7c0] sm:$0xff]
    %v1573 = vld [vmem:[#allocation7 + $0x7c8] sm:$0xff]
    %v1574 = vld [vmem:[#allocation7 + $0x7d0] sm:$0xff]
    %v1575 = vld [vmem:[#allocation7 + $0x7d8] sm:$0xff]
    %v1576 = vld [vmem:[#allocation7 + $0x7e0] sm:$0xff]
    %v1577 = vld [vmem:[#allocation7 + $0x7e8] sm:$0xff]
    %v1578 = vld [vmem:[#allocation7 + $0x7f0] sm:$0xff]
    %v1579 = vld [vmem:[#allocation7 + $0x7f8] sm:$0xff]
    %v1836 = vunpack.c.l.b16 %v1324
    %v1837 = vunpack.c.h.b16 %v1324
    %v1838 = vunpack.c.l.b16 %v1325
    %v1839 = vunpack.c.h.b16 %v1325
    %v1840 = vunpack.c.l.b16 %v1326
    %v1841 = vunpack.c.h.b16 %v1326
    %v1842 = vunpack.c.l.b16 %v1327
    %v1843 = vunpack.c.h.b16 %v1327
    %v1844 = vunpack.c.l.b16 %v1328
    %v1845 = vunpack.c.h.b16 %v1328
    %v1846 = vunpack.c.l.b16 %v1329
    %v1847 = vunpack.c.h.b16 %v1329
    %v1848 = vunpack.c.l.b16 %v1330
    %v1849 = vunpack.c.h.b16 %v1330
    %v1850 = vunpack.c.l.b16 %v1331
    %v1851 = vunpack.c.h.b16 %v1331
    %v1852 = vunpack.c.l.b16 %v1332
    %v1853 = vunpack.c.h.b16 %v1332
    %v1854 = vunpack.c.l.b16 %v1333
    %v1855 = vunpack.c.h.b16 %v1333
    %v1856 = vunpack.c.l.b16 %v1334
    %v1857 = vunpack.c.h.b16 %v1334
    %v1858 = vunpack.c.l.b16 %v1335
    %v1859 = vunpack.c.h.b16 %v1335
    %v1860 = vunpack.c.l.b16 %v1336
    %v1861 = vunpack.c.h.b16 %v1336
    %v1862 = vunpack.c.l.b16 %v1337
    %v1863 = vunpack.c.h.b16 %v1337
    %v1864 = vunpack.c.l.b16 %v1338
    %v1865 = vunpack.c.h.b16 %v1338
    %v1866 = vunpack.c.l.b16 %v1339
    %v1867 = vunpack.c.h.b16 %v1339
    %v1868 = vunpack.c.l.b16 %v1340
    %v1869 = vunpack.c.h.b16 %v1340
    %v1870 = vunpack.c.l.b16 %v1341
    %v1871 = vunpack.c.h.b16 %v1341
    %v1872 = vunpack.c.l.b16 %v1342
    %v1873 = vunpack.c.h.b16 %v1342
    %v1874 = vunpack.c.l.b16 %v1343
    %v1875 = vunpack.c.h.b16 %v1343
    %v1876 = vunpack.c.l.b16 %v1344
    %v1877 = vunpack.c.h.b16 %v1344
    %v1878 = vunpack.c.l.b16 %v1345
    %v1879 = vunpack.c.h.b16 %v1345
    %v1880 = vunpack.c.l.b16 %v1346
    %v1881 = vunpack.c.h.b16 %v1346
    %v1882 = vunpack.c.l.b16 %v1347
    %v1883 = vunpack.c.h.b16 %v1347
    %v1884 = vunpack.c.l.b16 %v1348
    %v1885 = vunpack.c.h.b16 %v1348
    %v1886 = vunpack.c.l.b16 %v1349
    %v1887 = vunpack.c.h.b16 %v1349
    %v1888 = vunpack.c.l.b16 %v1350
    %v1889 = vunpack.c.h.b16 %v1350
    %v1890 = vunpack.c.l.b16 %v1351
    %v1891 = vunpack.c.h.b16 %v1351
    %v1892 = vunpack.c.l.b16 %v1352
    %v1893 = vunpack.c.h.b16 %v1352
    %v1894 = vunpack.c.l.b16 %v1353
    %v1895 = vunpack.c.h.b16 %v1353
    %v1896 = vunpack.c.l.b16 %v1354
    %v1897 = vunpack.c.h.b16 %v1354
    %v1898 = vunpack.c.l.b16 %v1355
    %v1899 = vunpack.c.h.b16 %v1355
    %v1900 = vunpack.c.l.b16 %v1356
    %v1901 = vunpack.c.h.b16 %v1356
    %v1902 = vunpack.c.l.b16 %v1357
    %v1903 = vunpack.c.h.b16 %v1357
    %v1904 = vunpack.c.l.b16 %v1358
    %v1905 = vunpack.c.h.b16 %v1358
    %v1906 = vunpack.c.l.b16 %v1359
    %v1907 = vunpack.c.h.b16 %v1359
    %v1908 = vunpack.c.l.b16 %v1360
    %v1909 = vunpack.c.h.b16 %v1360
    %v1910 = vunpack.c.l.b16 %v1361
    %v1911 = vunpack.c.h.b16 %v1361
    %v1912 = vunpack.c.l.b16 %v1362
    %v1913 = vunpack.c.h.b16 %v1362
    %v1914 = vunpack.c.l.b16 %v1363
    %v1915 = vunpack.c.h.b16 %v1363
    %v1916 = vunpack.c.l.b16 %v1364
    %v1917 = vunpack.c.h.b16 %v1364
    %v1918 = vunpack.c.l.b16 %v1365
    %v1919 = vunpack.c.h.b16 %v1365
    %v1920 = vunpack.c.l.b16 %v1366
    %v1921 = vunpack.c.h.b16 %v1366
    %v1922 = vunpack.c.l.b16 %v1367
    %v1923 = vunpack.c.h.b16 %v1367
    %v1924 = vunpack.c.l.b16 %v1368
    %v1925 = vunpack.c.h.b16 %v1368
    %v1926 = vunpack.c.l.b16 %v1369
    %v1927 = vunpack.c.h.b16 %v1369
    %v1928 = vunpack.c.l.b16 %v1370
    %v1929 = vunpack.c.h.b16 %v1370
    %v1930 = vunpack.c.l.b16 %v1371
    %v1931 = vunpack.c.h.b16 %v1371
    %v1932 = vunpack.c.l.b16 %v1372
    %v1933 = vunpack.c.h.b16 %v1372
    %v1934 = vunpack.c.l.b16 %v1373
    %v1935 = vunpack.c.h.b16 %v1373
    %v1936 = vunpack.c.l.b16 %v1374
    %v1937 = vunpack.c.h.b16 %v1374
    %v1938 = vunpack.c.l.b16 %v1375
    %v1939 = vunpack.c.h.b16 %v1375
    %v1940 = vunpack.c.l.b16 %v1376
    %v1941 = vunpack.c.h.b16 %v1376
    %v1942 = vunpack.c.l.b16 %v1377
    %v1943 = vunpack.c.h.b16 %v1377
    %v1944 = vunpack.c.l.b16 %v1378
    %v1945 = vunpack.c.h.b16 %v1378
    %v1946 = vunpack.c.l.b16 %v1379
    %v1947 = vunpack.c.h.b16 %v1379
    %v1948 = vunpack.c.l.b16 %v1380
    %v1949 = vunpack.c.h.b16 %v1380
    %v1950 = vunpack.c.l.b16 %v1381
    %v1951 = vunpack.c.h.b16 %v1381
    %v1952 = vunpack.c.l.b16 %v1382
    %v1953 = vunpack.c.h.b16 %v1382
    %v1954 = vunpack.c.l.b16 %v1383
    %v1955 = vunpack.c.h.b16 %v1383
    %v1956 = vunpack.c.l.b16 %v1384
    %v1957 = vunpack.c.h.b16 %v1384
    %v1958 = vunpack.c.l.b16 %v1385
    %v1959 = vunpack.c.h.b16 %v1385
    %v1960 = vunpack.c.l.b16 %v1386
    %v1961 = vunpack.c.h.b16 %v1386
    %v1962 = vunpack.c.l.b16 %v1387
    %v1963 = vunpack.c.h.b16 %v1387
    %v1964 = vunpack.c.l.b16 %v1388
    %v1965 = vunpack.c.h.b16 %v1388
    %v1966 = vunpack.c.l.b16 %v1389
    %v1967 = vunpack.c.h.b16 %v1389
    %v1968 = vunpack.c.l.b16 %v1390
    %v1969 = vunpack.c.h.b16 %v1390
    %v1970 = vunpack.c.l.b16 %v1391
    %v1971 = vunpack.c.h.b16 %v1391
    %v1972 = vunpack.c.l.b16 %v1392
    %v1973 = vunpack.c.h.b16 %v1392
    %v1974 = vunpack.c.l.b16 %v1393
    %v1975 = vunpack.c.h.b16 %v1393
    %v1976 = vunpack.c.l.b16 %v1394
    %v1977 = vunpack.c.h.b16 %v1394
    %v1978 = vunpack.c.l.b16 %v1395
    %v1979 = vunpack.c.h.b16 %v1395
    %v1980 = vunpack.c.l.b16 %v1396
    %v1981 = vunpack.c.h.b16 %v1396
    %v1982 = vunpack.c.l.b16 %v1397
    %v1983 = vunpack.c.h.b16 %v1397
    %v1984 = vunpack.c.l.b16 %v1398
    %v1985 = vunpack.c.h.b16 %v1398
    %v1986 = vunpack.c.l.b16 %v1399
    %v1987 = vunpack.c.h.b16 %v1399
    %v1988 = vunpack.c.l.b16 %v1400
    %v1989 = vunpack.c.h.b16 %v1400
    %v1990 = vunpack.c.l.b16 %v1401
    %v1991 = vunpack.c.h.b16 %v1401
    %v1992 = vunpack.c.l.b16 %v1402
    %v1993 = vunpack.c.h.b16 %v1402
    %v1994 = vunpack.c.l.b16 %v1403
    %v1995 = vunpack.c.h.b16 %v1403
    %v1996 = vunpack.c.l.b16 %v1404
    %v1997 = vunpack.c.h.b16 %v1404
    %v1998 = vunpack.c.l.b16 %v1405
    %v1999 = vunpack.c.h.b16 %v1405
    %v2000 = vunpack.c.l.b16 %v1406
    %v2001 = vunpack.c.h.b16 %v1406
    %v2002 = vunpack.c.l.b16 %v1407
    %v2003 = vunpack.c.h.b16 %v1407
    %v2004 = vunpack.c.l.b16 %v1408
    %v2005 = vunpack.c.h.b16 %v1408
    %v2006 = vunpack.c.l.b16 %v1409
    %v2007 = vunpack.c.h.b16 %v1409
    %v2008 = vunpack.c.l.b16 %v1410
    %v2009 = vunpack.c.h.b16 %v1410
    %v2010 = vunpack.c.l.b16 %v1411
    %v2011 = vunpack.c.h.b16 %v1411
    %v2012 = vunpack.c.l.b16 %v1412
    %v2013 = vunpack.c.h.b16 %v1412
    %v2014 = vunpack.c.l.b16 %v1413
    %v2015 = vunpack.c.h.b16 %v1413
    %v2016 = vunpack.c.l.b16 %v1414
    %v2017 = vunpack.c.h.b16 %v1414
    %v2018 = vunpack.c.l.b16 %v1415
    %v2019 = vunpack.c.h.b16 %v1415
    %v2020 = vunpack.c.l.b16 %v1416
    %v2021 = vunpack.c.h.b16 %v1416
    %v2022 = vunpack.c.l.b16 %v1417
    %v2023 = vunpack.c.h.b16 %v1417
    %v2024 = vunpack.c.l.b16 %v1418
    %v2025 = vunpack.c.h.b16 %v1418
    %v2026 = vunpack.c.l.b16 %v1419
    %v2027 = vunpack.c.h.b16 %v1419
    %v2028 = vunpack.c.l.b16 %v1420
    %v2029 = vunpack.c.h.b16 %v1420
    %v2030 = vunpack.c.l.b16 %v1421
    %v2031 = vunpack.c.h.b16 %v1421
    %v2032 = vunpack.c.l.b16 %v1422
    %v2033 = vunpack.c.h.b16 %v1422
    %v2034 = vunpack.c.l.b16 %v1423
    %v2035 = vunpack.c.h.b16 %v1423
    %v2036 = vunpack.c.l.b16 %v1424
    %v2037 = vunpack.c.h.b16 %v1424
    %v2038 = vunpack.c.l.b16 %v1425
    %v2039 = vunpack.c.h.b16 %v1425
    %v2040 = vunpack.c.l.b16 %v1426
    %v2041 = vunpack.c.h.b16 %v1426
    %v2042 = vunpack.c.l.b16 %v1427
    %v2043 = vunpack.c.h.b16 %v1427
    %v2044 = vunpack.c.l.b16 %v1428
    %v2045 = vunpack.c.h.b16 %v1428
    %v2046 = vunpack.c.l.b16 %v1429
    %v2047 = vunpack.c.h.b16 %v1429
    %v2048 = vunpack.c.l.b16 %v1430
    %v2049 = vunpack.c.h.b16 %v1430
    %v2050 = vunpack.c.l.b16 %v1431
    %v2051 = vunpack.c.h.b16 %v1431
    %v2052 = vunpack.c.l.b16 %v1432
    %v2053 = vunpack.c.h.b16 %v1432
    %v2054 = vunpack.c.l.b16 %v1433
    %v2055 = vunpack.c.h.b16 %v1433
    %v2056 = vunpack.c.l.b16 %v1434
    %v2057 = vunpack.c.h.b16 %v1434
    %v2058 = vunpack.c.l.b16 %v1435
    %v2059 = vunpack.c.h.b16 %v1435
    %v2060 = vunpack.c.l.b16 %v1436
    %v2061 = vunpack.c.h.b16 %v1436
    %v2062 = vunpack.c.l.b16 %v1437
    %v2063 = vunpack.c.h.b16 %v1437
    %v2064 = vunpack.c.l.b16 %v1438
    %v2065 = vunpack.c.h.b16 %v1438
    %v2066 = vunpack.c.l.b16 %v1439
    %v2067 = vunpack.c.h.b16 %v1439
    %v2068 = vunpack.c.l.b16 %v1440
    %v2069 = vunpack.c.h.b16 %v1440
    %v2070 = vunpack.c.l.b16 %v1441
    %v2071 = vunpack.c.h.b16 %v1441
    %v2072 = vunpack.c.l.b16 %v1442
    %v2073 = vunpack.c.h.b16 %v1442
    %v2074 = vunpack.c.l.b16 %v1443
    %v2075 = vunpack.c.h.b16 %v1443
    %v2076 = vunpack.c.l.b16 %v1444
    %v2077 = vunpack.c.h.b16 %v1444
    %v2078 = vunpack.c.l.b16 %v1445
    %v2079 = vunpack.c.h.b16 %v1445
    %v2080 = vunpack.c.l.b16 %v1446
    %v2081 = vunpack.c.h.b16 %v1446
    %v2082 = vunpack.c.l.b16 %v1447
    %v2083 = vunpack.c.h.b16 %v1447
    %v2084 = vunpack.c.l.b16 %v1448
    %v2085 = vunpack.c.h.b16 %v1448
    %v2086 = vunpack.c.l.b16 %v1449
    %v2087 = vunpack.c.h.b16 %v1449
    %v2088 = vunpack.c.l.b16 %v1450
    %v2089 = vunpack.c.h.b16 %v1450
    %v2090 = vunpack.c.l.b16 %v1451
    %v2091 = vunpack.c.h.b16 %v1451
    %v2092 = vunpack.c.l.b16 %v1452
    %v2093 = vunpack.c.h.b16 %v1452
    %v2094 = vunpack.c.l.b16 %v1453
    %v2095 = vunpack.c.h.b16 %v1453
    %v2096 = vunpack.c.l.b16 %v1454
    %v2097 = vunpack.c.h.b16 %v1454
    %v2098 = vunpack.c.l.b16 %v1455
    %v2099 = vunpack.c.h.b16 %v1455
    %v2100 = vunpack.c.l.b16 %v1456
    %v2101 = vunpack.c.h.b16 %v1456
    %v2102 = vunpack.c.l.b16 %v1457
    %v2103 = vunpack.c.h.b16 %v1457
    %v2104 = vunpack.c.l.b16 %v1458
    %v2105 = vunpack.c.h.b16 %v1458
    %v2106 = vunpack.c.l.b16 %v1459
    %v2107 = vunpack.c.h.b16 %v1459
    %v2108 = vunpack.c.l.b16 %v1460
    %v2109 = vunpack.c.h.b16 %v1460
    %v2110 = vunpack.c.l.b16 %v1461
    %v2111 = vunpack.c.h.b16 %v1461
    %v2112 = vunpack.c.l.b16 %v1462
    %v2113 = vunpack.c.h.b16 %v1462
    %v2114 = vunpack.c.l.b16 %v1463
    %v2115 = vunpack.c.h.b16 %v1463
    %v2116 = vunpack.c.l.b16 %v1464
    %v2117 = vunpack.c.h.b16 %v1464
    %v2118 = vunpack.c.l.b16 %v1465
    %v2119 = vunpack.c.h.b16 %v1465
    %v2120 = vunpack.c.l.b16 %v1466
    %v2121 = vunpack.c.h.b16 %v1466
    %v2122 = vunpack.c.l.b16 %v1467
    %v2123 = vunpack.c.h.b16 %v1467
    %v2124 = vunpack.c.l.b16 %v1468
    %v2125 = vunpack.c.h.b16 %v1468
    %v2126 = vunpack.c.l.b16 %v1469
    %v2127 = vunpack.c.h.b16 %v1469
    %v2128 = vunpack.c.l.b16 %v1470
    %v2129 = vunpack.c.h.b16 %v1470
    %v2130 = vunpack.c.l.b16 %v1471
    %v2131 = vunpack.c.h.b16 %v1471
    %v2132 = vunpack.c.l.b16 %v1472
    %v2133 = vunpack.c.h.b16 %v1472
    %v2134 = vunpack.c.l.b16 %v1473
    %v2135 = vunpack.c.h.b16 %v1473
    %v2136 = vunpack.c.l.b16 %v1474
    %v2137 = vunpack.c.h.b16 %v1474
    %v2138 = vunpack.c.l.b16 %v1475
    %v2139 = vunpack.c.h.b16 %v1475
    %v2140 = vunpack.c.l.b16 %v1476
    %v2141 = vunpack.c.h.b16 %v1476
    %v2142 = vunpack.c.l.b16 %v1477
    %v2143 = vunpack.c.h.b16 %v1477
    %v2144 = vunpack.c.l.b16 %v1478
    %v2145 = vunpack.c.h.b16 %v1478
    %v2146 = vunpack.c.l.b16 %v1479
    %v2147 = vunpack.c.h.b16 %v1479
    %v2148 = vunpack.c.l.b16 %v1480
    %v2149 = vunpack.c.h.b16 %v1480
    %v2150 = vunpack.c.l.b16 %v1481
    %v2151 = vunpack.c.h.b16 %v1481
    %v2152 = vunpack.c.l.b16 %v1482
    %v2153 = vunpack.c.h.b16 %v1482
    %v2154 = vunpack.c.l.b16 %v1483
    %v2155 = vunpack.c.h.b16 %v1483
    %v2156 = vunpack.c.l.b16 %v1484
    %v2157 = vunpack.c.h.b16 %v1484
    %v2158 = vunpack.c.l.b16 %v1485
    %v2159 = vunpack.c.h.b16 %v1485
    %v2160 = vunpack.c.l.b16 %v1486
    %v2161 = vunpack.c.h.b16 %v1486
    %v2162 = vunpack.c.l.b16 %v1487
    %v2163 = vunpack.c.h.b16 %v1487
    %v2164 = vunpack.c.l.b16 %v1488
    %v2165 = vunpack.c.h.b16 %v1488
    %v2166 = vunpack.c.l.b16 %v1489
    %v2167 = vunpack.c.h.b16 %v1489
    %v2168 = vunpack.c.l.b16 %v1490
    %v2169 = vunpack.c.h.b16 %v1490
    %v2170 = vunpack.c.l.b16 %v1491
    %v2171 = vunpack.c.h.b16 %v1491
    %v2172 = vunpack.c.l.b16 %v1492
    %v2173 = vunpack.c.h.b16 %v1492
    %v2174 = vunpack.c.l.b16 %v1493
    %v2175 = vunpack.c.h.b16 %v1493
    %v2176 = vunpack.c.l.b16 %v1494
    %v2177 = vunpack.c.h.b16 %v1494
    %v2178 = vunpack.c.l.b16 %v1495
    %v2179 = vunpack.c.h.b16 %v1495
    %v2180 = vunpack.c.l.b16 %v1496
    %v2181 = vunpack.c.h.b16 %v1496
    %v2182 = vunpack.c.l.b16 %v1497
    %v2183 = vunpack.c.h.b16 %v1497
    %v2184 = vunpack.c.l.b16 %v1498
    %v2185 = vunpack.c.h.b16 %v1498
    %v2186 = vunpack.c.l.b16 %v1499
    %v2187 = vunpack.c.h.b16 %v1499
    %v2188 = vunpack.c.l.b16 %v1500
    %v2189 = vunpack.c.h.b16 %v1500
    %v2190 = vunpack.c.l.b16 %v1501
    %v2191 = vunpack.c.h.b16 %v1501
    %v2192 = vunpack.c.l.b16 %v1502
    %v2193 = vunpack.c.h.b16 %v1502
    %v2194 = vunpack.c.l.b16 %v1503
    %v2195 = vunpack.c.h.b16 %v1503
    %v2196 = vunpack.c.l.b16 %v1504
    %v2197 = vunpack.c.h.b16 %v1504
    %v2198 = vunpack.c.l.b16 %v1505
    %v2199 = vunpack.c.h.b16 %v1505
    %v2200 = vunpack.c.l.b16 %v1506
    %v2201 = vunpack.c.h.b16 %v1506
    %v2202 = vunpack.c.l.b16 %v1507
    %v2203 = vunpack.c.h.b16 %v1507
    %v2204 = vunpack.c.l.b16 %v1508
    %v2205 = vunpack.c.h.b16 %v1508
    %v2206 = vunpack.c.l.b16 %v1509
    %v2207 = vunpack.c.h.b16 %v1509
    %v2208 = vunpack.c.l.b16 %v1510
    %v2209 = vunpack.c.h.b16 %v1510
    %v2210 = vunpack.c.l.b16 %v1511
    %v2211 = vunpack.c.h.b16 %v1511
    %v2212 = vunpack.c.l.b16 %v1512
    %v2213 = vunpack.c.h.b16 %v1512
    %v2214 = vunpack.c.l.b16 %v1513
    %v2215 = vunpack.c.h.b16 %v1513
    %v2216 = vunpack.c.l.b16 %v1514
    %v2217 = vunpack.c.h.b16 %v1514
    %v2218 = vunpack.c.l.b16 %v1515
    %v2219 = vunpack.c.h.b16 %v1515
    %v2220 = vunpack.c.l.b16 %v1516
    %v2221 = vunpack.c.h.b16 %v1516
    %v2222 = vunpack.c.l.b16 %v1517
    %v2223 = vunpack.c.h.b16 %v1517
    %v2224 = vunpack.c.l.b16 %v1518
    %v2225 = vunpack.c.h.b16 %v1518
    %v2226 = vunpack.c.l.b16 %v1519
    %v2227 = vunpack.c.h.b16 %v1519
    %v2228 = vunpack.c.l.b16 %v1520
    %v2229 = vunpack.c.h.b16 %v1520
    %v2230 = vunpack.c.l.b16 %v1521
    %v2231 = vunpack.c.h.b16 %v1521
    %v2232 = vunpack.c.l.b16 %v1522
    %v2233 = vunpack.c.h.b16 %v1522
    %v2234 = vunpack.c.l.b16 %v1523
    %v2235 = vunpack.c.h.b16 %v1523
    %v2236 = vunpack.c.l.b16 %v1524
    %v2237 = vunpack.c.h.b16 %v1524
    %v2238 = vunpack.c.l.b16 %v1525
    %v2239 = vunpack.c.h.b16 %v1525
    %v2240 = vunpack.c.l.b16 %v1526
    %v2241 = vunpack.c.h.b16 %v1526
    %v2242 = vunpack.c.l.b16 %v1527
    %v2243 = vunpack.c.h.b16 %v1527
    %v2244 = vunpack.c.l.b16 %v1528
    %v2245 = vunpack.c.h.b16 %v1528
    %v2246 = vunpack.c.l.b16 %v1529
    %v2247 = vunpack.c.h.b16 %v1529
    %v2248 = vunpack.c.l.b16 %v1530
    %v2249 = vunpack.c.h.b16 %v1530
    %v2250 = vunpack.c.l.b16 %v1531
    %v2251 = vunpack.c.h.b16 %v1531
    %v2252 = vunpack.c.l.b16 %v1532
    %v2253 = vunpack.c.h.b16 %v1532
    %v2254 = vunpack.c.l.b16 %v1533
    %v2255 = vunpack.c.h.b16 %v1533
    %v2256 = vunpack.c.l.b16 %v1534
    %v2257 = vunpack.c.h.b16 %v1534
    %v2258 = vunpack.c.l.b16 %v1535
    %v2259 = vunpack.c.h.b16 %v1535
    %v2260 = vunpack.c.l.b16 %v1536
    %v2261 = vunpack.c.h.b16 %v1536
    %v2262 = vunpack.c.l.b16 %v1537
    %v2263 = vunpack.c.h.b16 %v1537
    %v2264 = vunpack.c.l.b16 %v1538
    %v2265 = vunpack.c.h.b16 %v1538
    %v2266 = vunpack.c.l.b16 %v1539
    %v2267 = vunpack.c.h.b16 %v1539
    %v2268 = vunpack.c.l.b16 %v1540
    %v2269 = vunpack.c.h.b16 %v1540
    %v2270 = vunpack.c.l.b16 %v1541
    %v2271 = vunpack.c.h.b16 %v1541
    %v2272 = vunpack.c.l.b16 %v1542
    %v2273 = vunpack.c.h.b16 %v1542
    %v2274 = vunpack.c.l.b16 %v1543
    %v2275 = vunpack.c.h.b16 %v1543
    %v2276 = vunpack.c.l.b16 %v1544
    %v2277 = vunpack.c.h.b16 %v1544
    %v2278 = vunpack.c.l.b16 %v1545
    %v2279 = vunpack.c.h.b16 %v1545
    %v2280 = vunpack.c.l.b16 %v1546
    %v2281 = vunpack.c.h.b16 %v1546
    %v2282 = vunpack.c.l.b16 %v1547
    %v2283 = vunpack.c.h.b16 %v1547
    %v2284 = vunpack.c.l.b16 %v1548
    %v2285 = vunpack.c.h.b16 %v1548
    %v2286 = vunpack.c.l.b16 %v1549
    %v2287 = vunpack.c.h.b16 %v1549
    %v2288 = vunpack.c.l.b16 %v1550
    %v2289 = vunpack.c.h.b16 %v1550
    %v2290 = vunpack.c.l.b16 %v1551
    %v2291 = vunpack.c.h.b16 %v1551
    %v2292 = vunpack.c.l.b16 %v1552
    %v2293 = vunpack.c.h.b16 %v1552
    %v2294 = vunpack.c.l.b16 %v1553
    %v2295 = vunpack.c.h.b16 %v1553
    %v2296 = vunpack.c.l.b16 %v1554
    %v2297 = vunpack.c.h.b16 %v1554
    %v2298 = vunpack.c.l.b16 %v1555
    %v2299 = vunpack.c.h.b16 %v1555
    %v2300 = vunpack.c.l.b16 %v1556
    %v2301 = vunpack.c.h.b16 %v1556
    %v2302 = vunpack.c.l.b16 %v1557
    %v2303 = vunpack.c.h.b16 %v1557
    %v2304 = vunpack.c.l.b16 %v1558
    %v2305 = vunpack.c.h.b16 %v1558
    %v2306 = vunpack.c.l.b16 %v1559
    %v2307 = vunpack.c.h.b16 %v1559
    %v2308 = vunpack.c.l.b16 %v1560
    %v2309 = vunpack.c.h.b16 %v1560
    %v2310 = vunpack.c.l.b16 %v1561
    %v2311 = vunpack.c.h.b16 %v1561
    %v2312 = vunpack.c.l.b16 %v1562
    %v2313 = vunpack.c.h.b16 %v1562
    %v2314 = vunpack.c.l.b16 %v1563
    %v2315 = vunpack.c.h.b16 %v1563
    %v2316 = vunpack.c.l.b16 %v1564
    %v2317 = vunpack.c.h.b16 %v1564
    %v2318 = vunpack.c.l.b16 %v1565
    %v2319 = vunpack.c.h.b16 %v1565
    %v2320 = vunpack.c.l.b16 %v1566
    %v2321 = vunpack.c.h.b16 %v1566
    %v2322 = vunpack.c.l.b16 %v1567
    %v2323 = vunpack.c.h.b16 %v1567
    %v2324 = vunpack.c.l.b16 %v1568
    %v2325 = vunpack.c.h.b16 %v1568
    %v2326 = vunpack.c.l.b16 %v1569
    %v2327 = vunpack.c.h.b16 %v1569
    %v2328 = vunpack.c.l.b16 %v1570
    %v2329 = vunpack.c.h.b16 %v1570
    %v2330 = vunpack.c.l.b16 %v1571
    %v2331 = vunpack.c.h.b16 %v1571
    %v2332 = vunpack.c.l.b16 %v1572
    %v2333 = vunpack.c.h.b16 %v1572
    %v2334 = vunpack.c.l.b16 %v1573
    %v2335 = vunpack.c.h.b16 %v1573
    %v2336 = vunpack.c.l.b16 %v1574
    %v2337 = vunpack.c.h.b16 %v1574
    %v2338 = vunpack.c.l.b16 %v1575
    %v2339 = vunpack.c.h.b16 %v1575
    %v2340 = vunpack.c.l.b16 %v1576
    %v2341 = vunpack.c.h.b16 %v1576
    %v2342 = vunpack.c.l.b16 %v1577
    %v2343 = vunpack.c.h.b16 %v1577
    %v2344 = vunpack.c.l.b16 %v1578
    %v2345 = vunpack.c.h.b16 %v1578
    %v2346 = vunpack.c.l.b16 %v1579
    %v2347 = vunpack.c.h.b16 %v1579
    %v2348 = vpack.c.b16 %v1840, %v1836
    %v2349 = vpack.c.b16 %v1841, %v1837
    %v2350 = vpack.c.b16 %v1842, %v1838
    %v2351 = vpack.c.b16 %v1843, %v1839
    %v2352 = vpack.c.b16 %v1848, %v1844
    %v2353 = vpack.c.b16 %v1849, %v1845
    %v2354 = vpack.c.b16 %v1850, %v1846
    %v2355 = vpack.c.b16 %v1851, %v1847
    %v2356 = vpack.c.b16 %v1856, %v1852
    %v2357 = vpack.c.b16 %v1857, %v1853
    %v2358 = vpack.c.b16 %v1858, %v1854
    %v2359 = vpack.c.b16 %v1859, %v1855
    %v2360 = vpack.c.b16 %v1864, %v1860
    %v2361 = vpack.c.b16 %v1865, %v1861
    %v2362 = vpack.c.b16 %v1866, %v1862
    %v2363 = vpack.c.b16 %v1867, %v1863
    %v2364 = vpack.c.b16 %v1872, %v1868
    %v2365 = vpack.c.b16 %v1873, %v1869
    %v2366 = vpack.c.b16 %v1874, %v1870
    %v2367 = vpack.c.b16 %v1875, %v1871
    %v2368 = vpack.c.b16 %v1880, %v1876
    %v2369 = vpack.c.b16 %v1881, %v1877
    %v2370 = vpack.c.b16 %v1882, %v1878
    %v2371 = vpack.c.b16 %v1883, %v1879
    %v2372 = vpack.c.b16 %v1888, %v1884
    %v2373 = vpack.c.b16 %v1889, %v1885
    %v2374 = vpack.c.b16 %v1890, %v1886
    %v2375 = vpack.c.b16 %v1891, %v1887
    %v2376 = vpack.c.b16 %v1896, %v1892
    %v2377 = vpack.c.b16 %v1897, %v1893
    %v2378 = vpack.c.b16 %v1898, %v1894
    %v2379 = vpack.c.b16 %v1899, %v1895
    %v2380 = vpack.c.b16 %v1904, %v1900
    %v2381 = vpack.c.b16 %v1905, %v1901
    %v2382 = vpack.c.b16 %v1906, %v1902
    %v2383 = vpack.c.b16 %v1907, %v1903
    %v2384 = vpack.c.b16 %v1912, %v1908
    %v2385 = vpack.c.b16 %v1913, %v1909
    %v2386 = vpack.c.b16 %v1914, %v1910
    %v2387 = vpack.c.b16 %v1915, %v1911
    %v2388 = vpack.c.b16 %v1920, %v1916
    %v2389 = vpack.c.b16 %v1921, %v1917
    %v2390 = vpack.c.b16 %v1922, %v1918
    %v2391 = vpack.c.b16 %v1923, %v1919
    %v2392 = vpack.c.b16 %v1928, %v1924
    %v2393 = vpack.c.b16 %v1929, %v1925
    %v2394 = vpack.c.b16 %v1930, %v1926
    %v2395 = vpack.c.b16 %v1931, %v1927
    %v2396 = vpack.c.b16 %v1936, %v1932
    %v2397 = vpack.c.b16 %v1937, %v1933
    %v2398 = vpack.c.b16 %v1938, %v1934
    %v2399 = vpack.c.b16 %v1939, %v1935
    %v2400 = vpack.c.b16 %v1944, %v1940
    %v2401 = vpack.c.b16 %v1945, %v1941
    %v2402 = vpack.c.b16 %v1946, %v1942
    %v2403 = vpack.c.b16 %v1947, %v1943
    %v2404 = vpack.c.b16 %v1952, %v1948
    %v2405 = vpack.c.b16 %v1953, %v1949
    %v2406 = vpack.c.b16 %v1954, %v1950
    %v2407 = vpack.c.b16 %v1955, %v1951
    %v2408 = vpack.c.b16 %v1960, %v1956
    %v2409 = vpack.c.b16 %v1961, %v1957
    %v2410 = vpack.c.b16 %v1962, %v1958
    %v2411 = vpack.c.b16 %v1963, %v1959
    %v2412 = vpack.c.b16 %v1968, %v1964
    %v2413 = vpack.c.b16 %v1969, %v1965
    %v2414 = vpack.c.b16 %v1970, %v1966
    %v2415 = vpack.c.b16 %v1971, %v1967
    %v2416 = vpack.c.b16 %v1976, %v1972
    %v2417 = vpack.c.b16 %v1977, %v1973
    %v2418 = vpack.c.b16 %v1978, %v1974
    %v2419 = vpack.c.b16 %v1979, %v1975
    %v2420 = vpack.c.b16 %v1984, %v1980
    %v2421 = vpack.c.b16 %v1985, %v1981
    %v2422 = vpack.c.b16 %v1986, %v1982
    %v2423 = vpack.c.b16 %v1987, %v1983
    %v2424 = vpack.c.b16 %v1992, %v1988
    %v2425 = vpack.c.b16 %v1993, %v1989
    %v2426 = vpack.c.b16 %v1994, %v1990
    %v2427 = vpack.c.b16 %v1995, %v1991
    %v2428 = vpack.c.b16 %v2000, %v1996
    %v2429 = vpack.c.b16 %v2001, %v1997
    %v2430 = vpack.c.b16 %v2002, %v1998
    %v2431 = vpack.c.b16 %v2003, %v1999
    %v2432 = vpack.c.b16 %v2008, %v2004
    %v2433 = vpack.c.b16 %v2009, %v2005
    %v2434 = vpack.c.b16 %v2010, %v2006
    %v2435 = vpack.c.b16 %v2011, %v2007
    %v2436 = vpack.c.b16 %v2016, %v2012
    %v2437 = vpack.c.b16 %v2017, %v2013
    %v2438 = vpack.c.b16 %v2018, %v2014
    %v2439 = vpack.c.b16 %v2019, %v2015
    %v2440 = vpack.c.b16 %v2024, %v2020
    %v2441 = vpack.c.b16 %v2025, %v2021
    %v2442 = vpack.c.b16 %v2026, %v2022
    %v2443 = vpack.c.b16 %v2027, %v2023
    %v2444 = vpack.c.b16 %v2032, %v2028
    %v2445 = vpack.c.b16 %v2033, %v2029
    %v2446 = vpack.c.b16 %v2034, %v2030
    %v2447 = vpack.c.b16 %v2035, %v2031
    %v2448 = vpack.c.b16 %v2040, %v2036
    %v2449 = vpack.c.b16 %v2041, %v2037
    %v2450 = vpack.c.b16 %v2042, %v2038
    %v2451 = vpack.c.b16 %v2043, %v2039
    %v2452 = vpack.c.b16 %v2048, %v2044
    %v2453 = vpack.c.b16 %v2049, %v2045
    %v2454 = vpack.c.b16 %v2050, %v2046
    %v2455 = vpack.c.b16 %v2051, %v2047
    %v2456 = vpack.c.b16 %v2056, %v2052
    %v2457 = vpack.c.b16 %v2057, %v2053
    %v2458 = vpack.c.b16 %v2058, %v2054
    %v2459 = vpack.c.b16 %v2059, %v2055
    %v2460 = vpack.c.b16 %v2064, %v2060
    %v2461 = vpack.c.b16 %v2065, %v2061
    %v2462 = vpack.c.b16 %v2066, %v2062
    %v2463 = vpack.c.b16 %v2067, %v2063
    %v2464 = vpack.c.b16 %v2072, %v2068
    %v2465 = vpack.c.b16 %v2073, %v2069
    %v2466 = vpack.c.b16 %v2074, %v2070
    %v2467 = vpack.c.b16 %v2075, %v2071
    %v2468 = vpack.c.b16 %v2080, %v2076
    %v2469 = vpack.c.b16 %v2081, %v2077
    %v2470 = vpack.c.b16 %v2082, %v2078
    %v2471 = vpack.c.b16 %v2083, %v2079
    %v2472 = vpack.c.b16 %v2088, %v2084
    %v2473 = vpack.c.b16 %v2089, %v2085
    %v2474 = vpack.c.b16 %v2090, %v2086
    %v2475 = vpack.c.b16 %v2091, %v2087
    %v2476 = vpack.c.b16 %v2096, %v2092
    %v2477 = vpack.c.b16 %v2097, %v2093
    %v2478 = vpack.c.b16 %v2098, %v2094
    %v2479 = vpack.c.b16 %v2099, %v2095
    %v2480 = vpack.c.b16 %v2104, %v2100
    %v2481 = vpack.c.b16 %v2105, %v2101
    %v2482 = vpack.c.b16 %v2106, %v2102
    %v2483 = vpack.c.b16 %v2107, %v2103
    %v2484 = vpack.c.b16 %v2112, %v2108
    %v2485 = vpack.c.b16 %v2113, %v2109
    %v2486 = vpack.c.b16 %v2114, %v2110
    %v2487 = vpack.c.b16 %v2115, %v2111
    %v2488 = vpack.c.b16 %v2120, %v2116
    %v2489 = vpack.c.b16 %v2121, %v2117
    %v2490 = vpack.c.b16 %v2122, %v2118
    %v2491 = vpack.c.b16 %v2123, %v2119
    %v2492 = vpack.c.b16 %v2128, %v2124
    %v2493 = vpack.c.b16 %v2129, %v2125
    %v2494 = vpack.c.b16 %v2130, %v2126
    %v2495 = vpack.c.b16 %v2131, %v2127
    %v2496 = vpack.c.b16 %v2136, %v2132
    %v2497 = vpack.c.b16 %v2137, %v2133
    %v2498 = vpack.c.b16 %v2138, %v2134
    %v2499 = vpack.c.b16 %v2139, %v2135
    %v2500 = vpack.c.b16 %v2144, %v2140
    %v2501 = vpack.c.b16 %v2145, %v2141
    %v2502 = vpack.c.b16 %v2146, %v2142
    %v2503 = vpack.c.b16 %v2147, %v2143
    %v2504 = vpack.c.b16 %v2152, %v2148
    %v2505 = vpack.c.b16 %v2153, %v2149
    %v2506 = vpack.c.b16 %v2154, %v2150
    %v2507 = vpack.c.b16 %v2155, %v2151
    %v2508 = vpack.c.b16 %v2160, %v2156
    %v2509 = vpack.c.b16 %v2161, %v2157
    %v2510 = vpack.c.b16 %v2162, %v2158
    %v2511 = vpack.c.b16 %v2163, %v2159
    %v2512 = vpack.c.b16 %v2168, %v2164
    %v2513 = vpack.c.b16 %v2169, %v2165
    %v2514 = vpack.c.b16 %v2170, %v2166
    %v2515 = vpack.c.b16 %v2171, %v2167
    %v2516 = vpack.c.b16 %v2176, %v2172
    %v2517 = vpack.c.b16 %v2177, %v2173
    %v2518 = vpack.c.b16 %v2178, %v2174
    %v2519 = vpack.c.b16 %v2179, %v2175
    %v2520 = vpack.c.b16 %v2184, %v2180
    %v2521 = vpack.c.b16 %v2185, %v2181
    %v2522 = vpack.c.b16 %v2186, %v2182
    %v2523 = vpack.c.b16 %v2187, %v2183
    %v2524 = vpack.c.b16 %v2192, %v2188
    %v2525 = vpack.c.b16 %v2193, %v2189
    %v2526 = vpack.c.b16 %v2194, %v2190
    %v2527 = vpack.c.b16 %v2195, %v2191
    %v2528 = vpack.c.b16 %v2200, %v2196
    %v2529 = vpack.c.b16 %v2201, %v2197
    %v2530 = vpack.c.b16 %v2202, %v2198
    %v2531 = vpack.c.b16 %v2203, %v2199
    %v2532 = vpack.c.b16 %v2208, %v2204
    %v2533 = vpack.c.b16 %v2209, %v2205
    %v2534 = vpack.c.b16 %v2210, %v2206
    %v2535 = vpack.c.b16 %v2211, %v2207
    %v2536 = vpack.c.b16 %v2216, %v2212
    %v2537 = vpack.c.b16 %v2217, %v2213
    %v2538 = vpack.c.b16 %v2218, %v2214
    %v2539 = vpack.c.b16 %v2219, %v2215
    %v2540 = vpack.c.b16 %v2224, %v2220
    %v2541 = vpack.c.b16 %v2225, %v2221
    %v2542 = vpack.c.b16 %v2226, %v2222
    %v2543 = vpack.c.b16 %v2227, %v2223
    %v2544 = vpack.c.b16 %v2232, %v2228
    %v2545 = vpack.c.b16 %v2233, %v2229
    %v2546 = vpack.c.b16 %v2234, %v2230
    %v2547 = vpack.c.b16 %v2235, %v2231
    %v2548 = vpack.c.b16 %v2240, %v2236
    %v2549 = vpack.c.b16 %v2241, %v2237
    %v2550 = vpack.c.b16 %v2242, %v2238
    %v2551 = vpack.c.b16 %v2243, %v2239
    %v2552 = vpack.c.b16 %v2248, %v2244
    %v2553 = vpack.c.b16 %v2249, %v2245
    %v2554 = vpack.c.b16 %v2250, %v2246
    %v2555 = vpack.c.b16 %v2251, %v2247
    %v2556 = vpack.c.b16 %v2256, %v2252
    %v2557 = vpack.c.b16 %v2257, %v2253
    %v2558 = vpack.c.b16 %v2258, %v2254
    %v2559 = vpack.c.b16 %v2259, %v2255
    %v2560 = vpack.c.b16 %v2264, %v2260
    %v2561 = vpack.c.b16 %v2265, %v2261
    %v2562 = vpack.c.b16 %v2266, %v2262
    %v2563 = vpack.c.b16 %v2267, %v2263
    %v2564 = vpack.c.b16 %v2272, %v2268
    %v2565 = vpack.c.b16 %v2273, %v2269
    %v2566 = vpack.c.b16 %v2274, %v2270
    %v2567 = vpack.c.b16 %v2275, %v2271
    %v2568 = vpack.c.b16 %v2280, %v2276
    %v2569 = vpack.c.b16 %v2281, %v2277
    %v2570 = vpack.c.b16 %v2282, %v2278
    %v2571 = vpack.c.b16 %v2283, %v2279
    %v2572 = vpack.c.b16 %v2288, %v2284
    %v2573 = vpack.c.b16 %v2289, %v2285
    %v2574 = vpack.c.b16 %v2290, %v2286
    %v2575 = vpack.c.b16 %v2291, %v2287
    %v2576 = vpack.c.b16 %v2296, %v2292
    %v2577 = vpack.c.b16 %v2297, %v2293
    %v2578 = vpack.c.b16 %v2298, %v2294
    %v2579 = vpack.c.b16 %v2299, %v2295
    %v2580 = vpack.c.b16 %v2304, %v2300
    %v2581 = vpack.c.b16 %v2305, %v2301
    %v2582 = vpack.c.b16 %v2306, %v2302
    %v2583 = vpack.c.b16 %v2307, %v2303
    %v2584 = vpack.c.b16 %v2312, %v2308
    %v2585 = vpack.c.b16 %v2313, %v2309
    %v2586 = vpack.c.b16 %v2314, %v2310
    %v2587 = vpack.c.b16 %v2315, %v2311
    %v2588 = vpack.c.b16 %v2320, %v2316
    %v2589 = vpack.c.b16 %v2321, %v2317
    %v2590 = vpack.c.b16 %v2322, %v2318
    %v2591 = vpack.c.b16 %v2323, %v2319
    %v2592 = vpack.c.b16 %v2328, %v2324
    %v2593 = vpack.c.b16 %v2329, %v2325
    %v2594 = vpack.c.b16 %v2330, %v2326
    %v2595 = vpack.c.b16 %v2331, %v2327
    %v2596 = vpack.c.b16 %v2336, %v2332
    %v2597 = vpack.c.b16 %v2337, %v2333
    %v2598 = vpack.c.b16 %v2338, %v2334
    %v2599 = vpack.c.b16 %v2339, %v2335
    %v2600 = vpack.c.b16 %v2344, %v2340
    %v2601 = vpack.c.b16 %v2345, %v2341
    %v2602 = vpack.c.b16 %v2346, %v2342
    %v2603 = vpack.c.b16 %v2347, %v2343
    %2860 = vmatprep.subr.bf16.mxu0 %v2349
    %2861 = vmatpush1.bf16.msra.mxu0 %v2348
    %2862 = vmatprep.subr.bf16.mxu0 %v2353
    %2863 = vmatpush1.bf16.msra.mxu0 %v2352
    %2864 = vmatprep.subr.bf16.mxu0 %v2357
    %2865 = vmatpush1.bf16.msra.mxu0 %v2356
    %2866 = vmatprep.subr.bf16.mxu0 %v2361
    %2867 = vmatpush1.bf16.msra.mxu0 %v2360
    %2868 = vmatprep.subr.bf16.mxu0 %v2365
    %2869 = vmatpush1.bf16.msra.mxu0 %v2364
    %2870 = vmatprep.subr.bf16.mxu0 %v2369
    %2871 = vmatpush1.bf16.msra.mxu0 %v2368
    %2872 = vmatprep.subr.bf16.mxu0 %v2373
    %2873 = vmatpush1.bf16.msra.mxu0 %v2372
    %2874 = vmatprep.subr.bf16.mxu0 %v2377
    %2875 = vmatpush1.bf16.msra.mxu0 %v2376
    %2876 = vmatprep.subr.bf16.mxu0 %v2381
    %2877 = vmatpush1.bf16.msra.mxu0 %v2380
    %2878 = vmatprep.subr.bf16.mxu0 %v2385
    %2879 = vmatpush1.bf16.msra.mxu0 %v2384
    %2880 = vmatprep.subr.bf16.mxu0 %v2389
    %2881 = vmatpush1.bf16.msra.mxu0 %v2388
    %2882 = vmatprep.subr.bf16.mxu0 %v2393
    %2883 = vmatpush1.bf16.msra.mxu0 %v2392
    %2884 = vmatprep.subr.bf16.mxu0 %v2397
    %2885 = vmatpush1.bf16.msra.mxu0 %v2396
    %2886 = vmatprep.subr.bf16.mxu0 %v2401
    %2887 = vmatpush1.bf16.msra.mxu0 %v2400
    %2888 = vmatprep.subr.bf16.mxu0 %v2405
    %2889 = vmatpush1.bf16.msra.mxu0 %v2404
    %2890 = vmatprep.subr.bf16.mxu0 %v2409
    %2891 = vmatpush1.bf16.msra.mxu0 %v2408
    %2892 = vmatprep.mubr.bf16.mxu0 %v1261
    %2893 = vmatmul.mubr.bf16.gmra.mrb[0].mxu0 %v1260
    %v2894 = vpop.f32.mrb[0].mxu0
    %v2895 = vadd.f32 %v771, %v2894
    %v2896 = vpop.f32.mrb[0].mxu0
    %v2897 = vadd.f32 %v773, %v2896
    %v2898 = vpop.f32.mrb[0].mxu0
    %v2899 = vadd.f32 %v775, %v2898
    %v2900 = vpop.f32.mrb[0].mxu0
    %v2901 = vadd.f32 %v777, %v2900
    %2902 = vmatprep.mubr.bf16.mxu0 %v1269
    %2903 = vmatmul.mubr.bf16.gmra.mrb[0].mxu0 %v1268
    %v2904 = vpop.f32.mrb[0].mxu0
    %v2905 = vadd.f32 %v781, %v2904
    %v2906 = vpop.f32.mrb[0].mxu0
    %v2907 = vadd.f32 %v783, %v2906
    %v2908 = vpop.f32.mrb[0].mxu0
    %v2909 = vadd.f32 %v785, %v2908
    %v2910 = vpop.f32.mrb[0].mxu0
    %v2911 = vadd.f32 %v787, %v2910
    %2912 = vmatprep.mubr.bf16.mxu0 %v1277
    %2913 = vmatmul.mubr.bf16.gmra.mrb[0].mxu0 %v1276
    %v2914 = vpop.f32.mrb[0].mxu0
    %v2915 = vadd.f32 %v791, %v2914
    %v2916 = vpop.f32.mrb[0].mxu0
    %v2917 = vadd.f32 %v793, %v2916
    %v2918 = vpop.f32.mrb[0].mxu0
    %v2919 = vadd.f32 %v795, %v2918
    %v2920 = vpop.f32.mrb[0].mxu0
    %v2921 = vadd.f32 %v797, %v2920
    %2922 = vmatprep.mubr.bf16.mxu0 %v1285
    %2923 = vmatmul.mubr.bf16.gmra.mrb[0].mxu0 %v1284
    %v2924 = vpop.f32.mrb[0].mxu0
    %v2925 = vadd.f32 %v801, %v2924
    %v2926 = vpop.f32.mrb[0].mxu0
    %v2927 = vadd.f32 %v803, %v2926
    %v2928 = vpop.f32.mrb[0].mxu0
    %v2929 = vadd.f32 %v805, %v2928
    %v2930 = vpop.f32.mrb[0].mxu0
    %v2931 = vadd.f32 %v807, %v2930
    %2932 = vmatprep.mubr.bf16.mxu0 %v1293
    %2933 = vmatmul.mubr.bf16.gmra.mrb[0].mxu0 %v1292
    %v2934 = vpop.f32.mrb[0].mxu0
    %v2935 = vadd.f32 %v811, %v2934
    %v2936 = vpop.f32.mrb[0].mxu0
    %v2937 = vadd.f32 %v813, %v2936
    %v2938 = vpop.f32.mrb[0].mxu0
    %v2939 = vadd.f32 %v815, %v2938
    %v2940 = vpop.f32.mrb[0].mxu0
    %v2941 = vadd.f32 %v817, %v2940
    %2942 = vmatprep.mubr.bf16.mxu0 %v1301
    %2943 = vmatmul.mubr.bf16.gmra.mrb[0].mxu0 %v1300
    %v2944 = vpop.f32.mrb[0].mxu0
    %v2945 = vadd.f32 %v821, %v2944
    %v2946 = vpop.f32.mrb[0].mxu0
    %v2947 = vadd.f32 %v823, %v2946
    %v2948 = vpop.f32.mrb[0].mxu0
    %v2949 = vadd.f32 %v825, %v2948
    %v2950 = vpop.f32.mrb[0].mxu0
    %v2951 = vadd.f32 %v827, %v2950
    %2952 = vmatprep.mubr.bf16.mxu0 %v1309
    %2953 = vmatmul.mubr.bf16.gmra.mrb[0].mxu0 %v1308
    %v2954 = vpop.f32.mrb[0].mxu0
    %v2955 = vadd.f32 %v831, %v2954
    %v2956 = vpop.f32.mrb[0].mxu0
    %v2957 = vadd.f32 %v833, %v2956
    %v2958 = vpop.f32.mrb[0].mxu0
    %v2959 = vadd.f32 %v835, %v2958
    %v2960 = vpop.f32.mrb[0].mxu0
    %v2961 = vadd.f32 %v837, %v2960
    %2962 = vmatprep.mubr.bf16.mxu0 %v1317
    %2963 = vmatmul.mubr.bf16.gmra.mrb[0].mxu0 %v1316
    %v2964 = vpop.f32.mrb[0].mxu0
    %v2965 = vadd.f32 %v841, %v2964
    %v2966 = vpop.f32.mrb[0].mxu0
    %v2967 = vadd.f32 %v843, %v2966
    %v2968 = vpop.f32.mrb[0].mxu0
    %v2969 = vadd.f32 %v845, %v2968
    %v2970 = vpop.f32.mrb[0].mxu0
    %v2971 = vadd.f32 %v847, %v2970
    %2972 = vdwg.mxu0
    %2973 = vmatprep.subr.bf16.mxu0 %v2413
    %2974 = vmatpush1.bf16.msra.mxu0 %v2412
    %2975 = vmatprep.subr.bf16.mxu0 %v2417
    %2976 = vmatpush1.bf16.msra.mxu0 %v2416
    %2977 = vmatprep.subr.bf16.mxu0 %v2421
    %2978 = vmatpush1.bf16.msra.mxu0 %v2420
    %2979 = vmatprep.subr.bf16.mxu0 %v2425
    %2980 = vmatpush1.bf16.msra.mxu0 %v2424
    %2981 = vmatprep.subr.bf16.mxu0 %v2429
    %2982 = vmatpush1.bf16.msra.mxu0 %v2428
    %2983 = vmatprep.subr.bf16.mxu0 %v2433
    %2984 = vmatpush1.bf16.msra.mxu0 %v2432
    %2985 = vmatprep.subr.bf16.mxu0 %v2437
    %2986 = vmatpush1.bf16.msra.mxu0 %v2436
    %2987 = vmatprep.subr.bf16.mxu0 %v2441
    %2988 = vmatpush1.bf16.msra.mxu0 %v2440
    %2989 = vmatprep.subr.bf16.mxu0 %v2445
    %2990 = vmatpush1.bf16.msra.mxu0 %v2444
    %2991 = vmatprep.subr.bf16.mxu0 %v2449
    %2992 = vmatpush1.bf16.msra.mxu0 %v2448
    %2993 = vmatprep.subr.bf16.mxu0 %v2453
    %2994 = vmatpush1.bf16.msra.mxu0 %v2452
    %2995 = vmatprep.subr.bf16.mxu0 %v2457
    %2996 = vmatpush1.bf16.msra.mxu0 %v2456
    %2997 = vmatprep.subr.bf16.mxu0 %v2461
    %2998 = vmatpush1.bf16.msra.mxu0 %v2460
    %2999 = vmatprep.subr.bf16.mxu0 %v2465
    %3000 = vmatpush1.bf16.msra.mxu0 %v2464
    %3001 = vmatprep.subr.bf16.mxu0 %v2469
    %3002 = vmatpush1.bf16.msra.mxu0 %v2468
    %3003 = vmatprep.subr.bf16.mxu0 %v2473
    %3004 = vmatpush1.bf16.msra.mxu0 %v2472
    %3005 = vmatprep.mubr.bf16.mxu0 %v1263
    %3006 = vmatmul.mubr.bf16.gmra.mrb[0].mxu0 %v1262
    %v3007 = vpop.f32.mrb[0].mxu0
    %v3008 = vadd.f32 %v2895, %v3007
    %v3009 = vpop.f32.mrb[0].mxu0
    %v3010 = vadd.f32 %v2897, %v3009
    %v3011 = vpop.f32.mrb[0].mxu0
    %v3012 = vadd.f32 %v2899, %v3011
    %v3013 = vpop.f32.mrb[0].mxu0
    %v3014 = vadd.f32 %v2901, %v3013
    %3015 = vmatprep.mubr.bf16.mxu0 %v1271
    %3016 = vmatmul.mubr.bf16.gmra.mrb[0].mxu0 %v1270
    %v3017 = vpop.f32.mrb[0].mxu0
    %v3018 = vadd.f32 %v2905, %v3017
    %v3019 = vpop.f32.mrb[0].mxu0
    %v3020 = vadd.f32 %v2907, %v3019
    %v3021 = vpop.f32.mrb[0].mxu0
    %v3022 = vadd.f32 %v2909, %v3021
    %v3023 = vpop.f32.mrb[0].mxu0
    %v3024 = vadd.f32 %v2911, %v3023
    %3025 = vmatprep.mubr.bf16.mxu0 %v1279
    %3026 = vmatmul.mubr.bf16.gmra.mrb[0].mxu0 %v1278
    %v3027 = vpop.f32.mrb[0].mxu0
    %v3028 = vadd.f32 %v2915, %v3027
    %v3029 = vpop.f32.mrb[0].mxu0
    %v3030 = vadd.f32 %v2917, %v3029
    %v3031 = vpop.f32.mrb[0].mxu0
    %v3032 = vadd.f32 %v2919, %v3031
    %v3033 = vpop.f32.mrb[0].mxu0
    %v3034 = vadd.f32 %v2921, %v3033
    %3035 = vmatprep.mubr.bf16.mxu0 %v1287
    %3036 = vmatmul.mubr.bf16.gmra.mrb[0].mxu0 %v1286
    %v3037 = vpop.f32.mrb[0].mxu0
    %v3038 = vadd.f32 %v2925, %v3037
    %v3039 = vpop.f32.mrb[0].mxu0
    %v3040 = vadd.f32 %v2927, %v3039
    %v3041 = vpop.f32.mrb[0].mxu0
    %v3042 = vadd.f32 %v2929, %v3041
    %v3043 = vpop.f32.mrb[0].mxu0
    %v3044 = vadd.f32 %v2931, %v3043
    %3045 = vmatprep.mubr.bf16.mxu0 %v1295
    %3046 = vmatmul.mubr.bf16.gmra.mrb[0].mxu0 %v1294
    %v3047 = vpop.f32.mrb[0].mxu0
    %v3048 = vadd.f32 %v2935, %v3047
    %v3049 = vpop.f32.mrb[0].mxu0
    %v3050 = vadd.f32 %v2937, %v3049
    %v3051 = vpop.f32.mrb[0].mxu0
    %v3052 = vadd.f32 %v2939, %v3051
    %v3053 = vpop.f32.mrb[0].mxu0
    %v3054 = vadd.f32 %v2941, %v3053
    %3055 = vmatprep.mubr.bf16.mxu0 %v1303
    %3056 = vmatmul.mubr.bf16.gmra.mrb[0].mxu0 %v1302
    %v3057 = vpop.f32.mrb[0].mxu0
    %v3058 = vadd.f32 %v2945, %v3057
    %v3059 = vpop.f32.mrb[0].mxu0
    %v3060 = vadd.f32 %v2947, %v3059
    %v3061 = vpop.f32.mrb[0].mxu0
    %v3062 = vadd.f32 %v2949, %v3061
    %v3063 = vpop.f32.mrb[0].mxu0
    %v3064 = vadd.f32 %v2951, %v3063
    %3065 = vmatprep.mubr.bf16.mxu0 %v1311
    %3066 = vmatmul.mubr.bf16.gmra.mrb[0].mxu0 %v1310
    %v3067 = vpop.f32.mrb[0].mxu0
    %v3068 = vadd.f32 %v2955, %v3067
    %v3069 = vpop.f32.mrb[0].mxu0
    %v3070 = vadd.f32 %v2957, %v3069
    %v3071 = vpop.f32.mrb[0].mxu0
    %v3072 = vadd.f32 %v2959, %v3071
    %v3073 = vpop.f32.mrb[0].mxu0
    %v3074 = vadd.f32 %v2961, %v3073
    %3075 = vmatprep.mubr.bf16.mxu0 %v1319
    %3076 = vmatmul.mubr.bf16.gmra.mrb[0].mxu0 %v1318
    %v3077 = vpop.f32.mrb[0].mxu0
    %v3078 = vadd.f32 %v2965, %v3077
    %v3079 = vpop.f32.mrb[0].mxu0
    %v3080 = vadd.f32 %v2967, %v3079
    %v3081 = vpop.f32.mrb[0].mxu0
    %v3082 = vadd.f32 %v2969, %v3081
    %v3083 = vpop.f32.mrb[0].mxu0
    %v3084 = vadd.f32 %v2971, %v3083
    %3085 = vdwg.mxu0
    %3086 = vmatprep.subr.bf16.mxu0 %v2477
    %3087 = vmatpush1.bf16.msra.mxu0 %v2476
    %3088 = vmatprep.subr.bf16.mxu0 %v2481
    %3089 = vmatpush1.bf16.msra.mxu0 %v2480
    %3090 = vmatprep.subr.bf16.mxu0 %v2485
    %3091 = vmatpush1.bf16.msra.mxu0 %v2484
    %3092 = vmatprep.subr.bf16.mxu0 %v2489
    %3093 = vmatpush1.bf16.msra.mxu0 %v2488
    %3094 = vmatprep.subr.bf16.mxu0 %v2493
    %3095 = vmatpush1.bf16.msra.mxu0 %v2492
    %3096 = vmatprep.subr.bf16.mxu0 %v2497
    %3097 = vmatpush1.bf16.msra.mxu0 %v2496
    %3098 = vmatprep.subr.bf16.mxu0 %v2501
    %3099 = vmatpush1.bf16.msra.mxu0 %v2500
    %3100 = vmatprep.subr.bf16.mxu0 %v2505
    %3101 = vmatpush1.bf16.msra.mxu0 %v2504
    %3102 = vmatprep.subr.bf16.mxu0 %v2509
    %3103 = vmatpush1.bf16.msra.mxu0 %v2508
    %3104 = vmatprep.subr.bf16.mxu0 %v2513
    %3105 = vmatpush1.bf16.msra.mxu0 %v2512
    %3106 = vmatprep.subr.bf16.mxu0 %v2517
    %3107 = vmatpush1.bf16.msra.mxu0 %v2516
    %3108 = vmatprep.subr.bf16.mxu0 %v2521
    %3109 = vmatpush1.bf16.msra.mxu0 %v2520
    %3110 = vmatprep.subr.bf16.mxu0 %v2525
    %3111 = vmatpush1.bf16.msra.mxu0 %v2524
    %3112 = vmatprep.subr.bf16.mxu0 %v2529
    %3113 = vmatpush1.bf16.msra.mxu0 %v2528
    %3114 = vmatprep.subr.bf16.mxu0 %v2533
    %3115 = vmatpush1.bf16.msra.mxu0 %v2532
    %3116 = vmatprep.subr.bf16.mxu0 %v2537
    %3117 = vmatpush1.bf16.msra.mxu0 %v2536
    %3118 = vmatprep.mubr.bf16.mxu0 %v1265
    %3119 = vmatmul.mubr.bf16.gmra.mrb[0].mxu0 %v1264
    %v3120 = vpop.f32.mrb[0].mxu0
    %v3121 = vadd.f32 %v3008, %v3120
    %v3122 = vpop.f32.mrb[0].mxu0
    %v3123 = vadd.f32 %v3010, %v3122
    %v3124 = vpop.f32.mrb[0].mxu0
    %v3125 = vadd.f32 %v3012, %v3124
    %v3126 = vpop.f32.mrb[0].mxu0
    %v3127 = vadd.f32 %v3014, %v3126
    %3128 = vmatprep.mubr.bf16.mxu0 %v1273
    %3129 = vmatmul.mubr.bf16.gmra.mrb[0].mxu0 %v1272
    %v3130 = vpop.f32.mrb[0].mxu0
    %v3131 = vadd.f32 %v3018, %v3130
    %v3132 = vpop.f32.mrb[0].mxu0
    %v3133 = vadd.f32 %v3020, %v3132
    %v3134 = vpop.f32.mrb[0].mxu0
    %v3135 = vadd.f32 %v3022, %v3134
    %v3136 = vpop.f32.mrb[0].mxu0
    %v3137 = vadd.f32 %v3024, %v3136
    %3138 = vmatprep.mubr.bf16.mxu0 %v1281
    %3139 = vmatmul.mubr.bf16.gmra.mrb[0].mxu0 %v1280
    %v3140 = vpop.f32.mrb[0].mxu0
    %v3141 = vadd.f32 %v3028, %v3140
    %v3142 = vpop.f32.mrb[0].mxu0
    %v3143 = vadd.f32 %v3030, %v3142
    %v3144 = vpop.f32.mrb[0].mxu0
    %v3145 = vadd.f32 %v3032, %v3144
    %v3146 = vpop.f32.mrb[0].mxu0
    %v3147 = vadd.f32 %v3034, %v3146
    %3148 = vmatprep.mubr.bf16.mxu0 %v1289
    %3149 = vmatmul.mubr.bf16.gmra.mrb[0].mxu0 %v1288
    %v3150 = vpop.f32.mrb[0].mxu0
    %v3151 = vadd.f32 %v3038, %v3150
    %v3152 = vpop.f32.mrb[0].mxu0
    %v3153 = vadd.f32 %v3040, %v3152
    %v3154 = vpop.f32.mrb[0].mxu0
    %v3155 = vadd.f32 %v3042, %v3154
    %v3156 = vpop.f32.mrb[0].mxu0
    %v3157 = vadd.f32 %v3044, %v3156
    %3158 = vmatprep.mubr.bf16.mxu0 %v1297
    %3159 = vmatmul.mubr.bf16.gmra.mrb[0].mxu0 %v1296
    %v3160 = vpop.f32.mrb[0].mxu0
    %v3161 = vadd.f32 %v3048, %v3160
    %v3162 = vpop.f32.mrb[0].mxu0
    %v3163 = vadd.f32 %v3050, %v3162
    %v3164 = vpop.f32.mrb[0].mxu0
    %v3165 = vadd.f32 %v3052, %v3164
    %v3166 = vpop.f32.mrb[0].mxu0
    %v3167 = vadd.f32 %v3054, %v3166
    %3168 = vmatprep.mubr.bf16.mxu0 %v1305
    %3169 = vmatmul.mubr.bf16.gmra.mrb[0].mxu0 %v1304
    %v3170 = vpop.f32.mrb[0].mxu0
    %v3171 = vadd.f32 %v3058, %v3170
    %v3172 = vpop.f32.mrb[0].mxu0
    %v3173 = vadd.f32 %v3060, %v3172
    %v3174 = vpop.f32.mrb[0].mxu0
    %v3175 = vadd.f32 %v3062, %v3174
    %v3176 = vpop.f32.mrb[0].mxu0
    %v3177 = vadd.f32 %v3064, %v3176
    %3178 = vmatprep.mubr.bf16.mxu0 %v1313
    %3179 = vmatmul.mubr.bf16.gmra.mrb[0].mxu0 %v1312
    %v3180 = vpop.f32.mrb[0].mxu0
    %v3181 = vadd.f32 %v3068, %v3180
    %v3182 = vpop.f32.mrb[0].mxu0
    %v3183 = vadd.f32 %v3070, %v3182
    %v3184 = vpop.f32.mrb[0].mxu0
    %v3185 = vadd.f32 %v3072, %v3184
    %v3186 = vpop.f32.mrb[0].mxu0
    %v3187 = vadd.f32 %v3074, %v3186
    %3188 = vmatprep.mubr.bf16.mxu0 %v1321
    %3189 = vmatmul.mubr.bf16.gmra.mrb[0].mxu0 %v1320
    %v3190 = vpop.f32.mrb[0].mxu0
    %v3191 = vadd.f32 %v3078, %v3190
    %v3192 = vpop.f32.mrb[0].mxu0
    %v3193 = vadd.f32 %v3080, %v3192
    %v3194 = vpop.f32.mrb[0].mxu0
    %v3195 = vadd.f32 %v3082, %v3194
    %v3196 = vpop.f32.mrb[0].mxu0
    %v3197 = vadd.f32 %v3084, %v3196
    %3198 = vdwg.mxu0
    %3199 = vmatprep.subr.bf16.mxu0 %v2541
    %3200 = vmatpush1.bf16.msra.mxu0 %v2540
    %3201 = vmatprep.subr.bf16.mxu0 %v2545
    %3202 = vmatpush1.bf16.msra.mxu0 %v2544
    %3203 = vmatprep.subr.bf16.mxu0 %v2549
    %3204 = vmatpush1.bf16.msra.mxu0 %v2548
    %3205 = vmatprep.subr.bf16.mxu0 %v2553
    %3206 = vmatpush1.bf16.msra.mxu0 %v2552
    %3207 = vmatprep.subr.bf16.mxu0 %v2557
    %3208 = vmatpush1.bf16.msra.mxu0 %v2556
    %3209 = vmatprep.subr.bf16.mxu0 %v2561
    %3210 = vmatpush1.bf16.msra.mxu0 %v2560
    %3211 = vmatprep.subr.bf16.mxu0 %v2565
    %3212 = vmatpush1.bf16.msra.mxu0 %v2564
    %3213 = vmatprep.subr.bf16.mxu0 %v2569
    %3214 = vmatpush1.bf16.msra.mxu0 %v2568
    %3215 = vmatprep.subr.bf16.mxu0 %v2573
    %3216 = vmatpush1.bf16.msra.mxu0 %v2572
    %3217 = vmatprep.subr.bf16.mxu0 %v2577
    %3218 = vmatpush1.bf16.msra.mxu0 %v2576
    %3219 = vmatprep.subr.bf16.mxu0 %v2581
    %3220 = vmatpush1.bf16.msra.mxu0 %v2580
    %3221 = vmatprep.subr.bf16.mxu0 %v2585
    %3222 = vmatpush1.bf16.msra.mxu0 %v2584
    %3223 = vmatprep.subr.bf16.mxu0 %v2589
    %3224 = vmatpush1.bf16.msra.mxu0 %v2588
    %3225 = vmatprep.subr.bf16.mxu0 %v2593
    %3226 = vmatpush1.bf16.msra.mxu0 %v2592
    %3227 = vmatprep.subr.bf16.mxu0 %v2597
    %3228 = vmatpush1.bf16.msra.mxu0 %v2596
    %3229 = vmatprep.subr.bf16.mxu0 %v2601
    %3230 = vmatpush1.bf16.msra.mxu0 %v2600
    %3231 = vmatprep.mubr.bf16.mxu0 %v1267
    %3232 = vmatmul.mubr.bf16.gmra.mrb[0].mxu0 %v1266
    %v3233 = vpop.f32.mrb[0].mxu0
    %v3234 = vadd.f32 %v3121, %v3233
    %v3235 = vpop.f32.mrb[0].mxu0
    %v3236 = vadd.f32 %v3123, %v3235
    %v3237 = vpop.f32.mrb[0].mxu0
    %v3238 = vadd.f32 %v3125, %v3237
    %v3239 = vpop.f32.mrb[0].mxu0
    %v3240 = vadd.f32 %v3127, %v3239
    %3241 = vmatprep.mubr.bf16.mxu0 %v1275
    %3242 = vmatmul.mubr.bf16.gmra.mrb[0].mxu0 %v1274
    %v3243 = vpop.f32.mrb[0].mxu0
    %v3244 = vadd.f32 %v3131, %v3243
    %v3245 = vpop.f32.mrb[0].mxu0
    %v3246 = vadd.f32 %v3133, %v3245
    %v3247 = vpop.f32.mrb[0].mxu0
    %v3248 = vadd.f32 %v3135, %v3247
    %v3249 = vpop.f32.mrb[0].mxu0
    %v3250 = vadd.f32 %v3137, %v3249
    %3251 = vmatprep.mubr.bf16.mxu0 %v1283
    %3252 = vmatmul.mubr.bf16.gmra.mrb[0].mxu0 %v1282
    %v3253 = vpop.f32.mrb[0].mxu0
    %v3254 = vadd.f32 %v3141, %v3253
    %v3255 = vpop.f32.mrb[0].mxu0
    %v3256 = vadd.f32 %v3143, %v3255
    %v3257 = vpop.f32.mrb[0].mxu0
    %v3258 = vadd.f32 %v3145, %v3257
    %v3259 = vpop.f32.mrb[0].mxu0
    %v3260 = vadd.f32 %v3147, %v3259
    %3261 = vmatprep.mubr.bf16.mxu0 %v1291
    %3262 = vmatmul.mubr.bf16.gmra.mrb[0].mxu0 %v1290
    %v3263 = vpop.f32.mrb[0].mxu0
    %v3264 = vadd.f32 %v3151, %v3263
    %v3265 = vpop.f32.mrb[0].mxu0
    %v3266 = vadd.f32 %v3153, %v3265
    %v3267 = vpop.f32.mrb[0].mxu0
    %v3268 = vadd.f32 %v3155, %v3267
    %v3269 = vpop.f32.mrb[0].mxu0
    %v3270 = vadd.f32 %v3157, %v3269
    %3271 = vmatprep.mubr.bf16.mxu0 %v1299
    %3272 = vmatmul.mubr.bf16.gmra.mrb[0].mxu0 %v1298
    %v3273 = vpop.f32.mrb[0].mxu0
    %v3274 = vadd.f32 %v3161, %v3273
    %v3275 = vpop.f32.mrb[0].mxu0
    %v3276 = vadd.f32 %v3163, %v3275
    %v3277 = vpop.f32.mrb[0].mxu0
    %v3278 = vadd.f32 %v3165, %v3277
    %v3279 = vpop.f32.mrb[0].mxu0
    %v3280 = vadd.f32 %v3167, %v3279
    %3281 = vmatprep.mubr.bf16.mxu0 %v1307
    %3282 = vmatmul.mubr.bf16.gmra.mrb[0].mxu0 %v1306
    %v3283 = vpop.f32.mrb[0].mxu0
    %v3284 = vadd.f32 %v3171, %v3283
    %v3285 = vpop.f32.mrb[0].mxu0
    %v3286 = vadd.f32 %v3173, %v3285
    %v3287 = vpop.f32.mrb[0].mxu0
    %v3288 = vadd.f32 %v3175, %v3287
    %v3289 = vpop.f32.mrb[0].mxu0
    %v3290 = vadd.f32 %v3177, %v3289
    %3291 = vmatprep.mubr.bf16.mxu0 %v1315
    %3292 = vmatmul.mubr.bf16.gmra.mrb[0].mxu0 %v1314
    %v3293 = vpop.f32.mrb[0].mxu0
    %v3294 = vadd.f32 %v3181, %v3293
    %v3295 = vpop.f32.mrb[0].mxu0
    %v3296 = vadd.f32 %v3183, %v3295
    %v3297 = vpop.f32.mrb[0].mxu0
    %v3298 = vadd.f32 %v3185, %v3297
    %v3299 = vpop.f32.mrb[0].mxu0
    %v3300 = vadd.f32 %v3187, %v3299
    %3301 = vmatprep.mubr.bf16.mxu0 %v1323
    %3302 = vmatmul.mubr.bf16.gmra.mrb[0].mxu0 %v1322
    %v3303 = vpop.f32.mrb[0].mxu0
    %v3304 = vadd.f32 %v3191, %v3303
    %v3305 = vpop.f32.mrb[0].mxu0
    %v3306 = vadd.f32 %v3193, %v3305
    %v3307 = vpop.f32.mrb[0].mxu0
    %v3308 = vadd.f32 %v3195, %v3307
    %v3309 = vpop.f32.mrb[0].mxu0
    %v3310 = vadd.f32 %v3197, %v3309
    %3311 = vdwg.mxu0
    %3312 = vmatprep.subr.bf16.mxu0 %v2351
    %3313 = vmatpush1.bf16.msra.mxu0 %v2350
    %3314 = vmatprep.subr.bf16.mxu0 %v2355
    %3315 = vmatpush1.bf16.msra.mxu0 %v2354
    %3316 = vmatprep.subr.bf16.mxu0 %v2359
    %3317 = vmatpush1.bf16.msra.mxu0 %v2358
    %3318 = vmatprep.subr.bf16.mxu0 %v2363
    %3319 = vmatpush1.bf16.msra.mxu0 %v2362
    %3320 = vmatprep.subr.bf16.mxu0 %v2367
    %3321 = vmatpush1.bf16.msra.mxu0 %v2366
    %3322 = vmatprep.subr.bf16.mxu0 %v2371
    %3323 = vmatpush1.bf16.msra.mxu0 %v2370
    %3324 = vmatprep.subr.bf16.mxu0 %v2375
    %3325 = vmatpush1.bf16.msra.mxu0 %v2374
    %3326 = vmatprep.subr.bf16.mxu0 %v2379
    %3327 = vmatpush1.bf16.msra.mxu0 %v2378
    %3328 = vmatprep.subr.bf16.mxu0 %v2383
    %3329 = vmatpush1.bf16.msra.mxu0 %v2382
    %3330 = vmatprep.subr.bf16.mxu0 %v2387
    %3331 = vmatpush1.bf16.msra.mxu0 %v2386
    %3332 = vmatprep.subr.bf16.mxu0 %v2391
    %3333 = vmatpush1.bf16.msra.mxu0 %v2390
    %3334 = vmatprep.subr.bf16.mxu0 %v2395
    %3335 = vmatpush1.bf16.msra.mxu0 %v2394
    %3336 = vmatprep.subr.bf16.mxu0 %v2399
    %3337 = vmatpush1.bf16.msra.mxu0 %v2398
    %3338 = vmatprep.subr.bf16.mxu0 %v2403
    %3339 = vmatpush1.bf16.msra.mxu0 %v2402
    %3340 = vmatprep.subr.bf16.mxu0 %v2407
    %3341 = vmatpush1.bf16.msra.mxu0 %v2406
    %3342 = vmatprep.subr.bf16.mxu0 %v2411
    %3343 = vmatpush1.bf16.msra.mxu0 %v2410
    %3344 = vmatprep.mubr.bf16.mxu0 %v1261
    %3345 = vmatmul.mubr.bf16.gmra.mrb[0].mxu0 %v1260
    %v3346 = vpop.f32.mrb[0].mxu0
    %v3347 = vadd.f32 %v884, %v3346
    %v3348 = vpop.f32.mrb[0].mxu0
    %v3349 = vadd.f32 %v886, %v3348
    %v3350 = vpop.f32.mrb[0].mxu0
    %v3351 = vadd.f32 %v888, %v3350
    %v3352 = vpop.f32.mrb[0].mxu0
    %v3353 = vadd.f32 %v890, %v3352
    %3354 = vmatprep.mubr.bf16.mxu0 %v1269
    %3355 = vmatmul.mubr.bf16.gmra.mrb[0].mxu0 %v1268
    %v3356 = vpop.f32.mrb[0].mxu0
    %v3357 = vadd.f32 %v894, %v3356
    %v3358 = vpop.f32.mrb[0].mxu0
    %v3359 = vadd.f32 %v896, %v3358
    %v3360 = vpop.f32.mrb[0].mxu0
    %v3361 = vadd.f32 %v898, %v3360
    %v3362 = vpop.f32.mrb[0].mxu0
    %v3363 = vadd.f32 %v900, %v3362
    %3364 = vmatprep.mubr.bf16.mxu0 %v1277
    %3365 = vmatmul.mubr.bf16.gmra.mrb[0].mxu0 %v1276
    %v3366 = vpop.f32.mrb[0].mxu0
    %v3367 = vadd.f32 %v904, %v3366
    %v3368 = vpop.f32.mrb[0].mxu0
    %v3369 = vadd.f32 %v906, %v3368
    %v3370 = vpop.f32.mrb[0].mxu0
    %v3371 = vadd.f32 %v908, %v3370
    %v3372 = vpop.f32.mrb[0].mxu0
    %v3373 = vadd.f32 %v910, %v3372
    %3374 = vmatprep.mubr.bf16.mxu0 %v1285
    %3375 = vmatmul.mubr.bf16.gmra.mrb[0].mxu0 %v1284
    %v3376 = vpop.f32.mrb[0].mxu0
    %v3377 = vadd.f32 %v914, %v3376
    %v3378 = vpop.f32.mrb[0].mxu0
    %v3379 = vadd.f32 %v916, %v3378
    %v3380 = vpop.f32.mrb[0].mxu0
    %v3381 = vadd.f32 %v918, %v3380
    %v3382 = vpop.f32.mrb[0].mxu0
    %v3383 = vadd.f32 %v920, %v3382
    %3384 = vmatprep.mubr.bf16.mxu0 %v1293
    %3385 = vmatmul.mubr.bf16.gmra.mrb[0].mxu0 %v1292
    %v3386 = vpop.f32.mrb[0].mxu0
    %v3387 = vadd.f32 %v924, %v3386
    %v3388 = vpop.f32.mrb[0].mxu0
    %v3389 = vadd.f32 %v926, %v3388
    %v3390 = vpop.f32.mrb[0].mxu0
    %v3391 = vadd.f32 %v928, %v3390
    %v3392 = vpop.f32.mrb[0].mxu0
    %v3393 = vadd.f32 %v930, %v3392
    %3394 = vmatprep.mubr.bf16.mxu0 %v1301
    %3395 = vmatmul.mubr.bf16.gmra.mrb[0].mxu0 %v1300
    %v3396 = vpop.f32.mrb[0].mxu0
    %v3397 = vadd.f32 %v934, %v3396
    %v3398 = vpop.f32.mrb[0].mxu0
    %v3399 = vadd.f32 %v936, %v3398
    %v3400 = vpop.f32.mrb[0].mxu0
    %v3401 = vadd.f32 %v938, %v3400
    %v3402 = vpop.f32.mrb[0].mxu0
    %v3403 = vadd.f32 %v940, %v3402
    %3404 = vmatprep.mubr.bf16.mxu0 %v1309
    %3405 = vmatmul.mubr.bf16.gmra.mrb[0].mxu0 %v1308
    %v3406 = vpop.f32.mrb[0].mxu0
    %v3407 = vadd.f32 %v944, %v3406
    %v3408 = vpop.f32.mrb[0].mxu0
    %v3409 = vadd.f32 %v946, %v3408
    %v3410 = vpop.f32.mrb[0].mxu0
    %v3411 = vadd.f32 %v948, %v3410
    %v3412 = vpop.f32.mrb[0].mxu0
    %v3413 = vadd.f32 %v950, %v3412
    %3414 = vmatprep.mubr.bf16.mxu0 %v1317
    %3415 = vmatmul.mubr.bf16.gmra.mrb[0].mxu0 %v1316
    %v3416 = vpop.f32.mrb[0].mxu0
    %v3417 = vadd.f32 %v954, %v3416
    %v3418 = vpop.f32.mrb[0].mxu0
    %v3419 = vadd.f32 %v956, %v3418
    %v3420 = vpop.f32.mrb[0].mxu0
    %v3421 = vadd.f32 %v958, %v3420
    %v3422 = vpop.f32.mrb[0].mxu0
    %v3423 = vadd.f32 %v960, %v3422
    %3424 = vdwg.mxu0
    %3425 = vmatprep.subr.bf16.mxu0 %v2415
    %3426 = vmatpush1.bf16.msra.mxu0 %v2414
    %3427 = vmatprep.subr.bf16.mxu0 %v2419
    %3428 = vmatpush1.bf16.msra.mxu0 %v2418
    %3429 = vmatprep.subr.bf16.mxu0 %v2423
    %3430 = vmatpush1.bf16.msra.mxu0 %v2422
    %3431 = vmatprep.subr.bf16.mxu0 %v2427
    %3432 = vmatpush1.bf16.msra.mxu0 %v2426
    %3433 = vmatprep.subr.bf16.mxu0 %v2431
    %3434 = vmatpush1.bf16.msra.mxu0 %v2430
    %3435 = vmatprep.subr.bf16.mxu0 %v2435
    %3436 = vmatpush1.bf16.msra.mxu0 %v2434
    %3437 = vmatprep.subr.bf16.mxu0 %v2439
    %3438 = vmatpush1.bf16.msra.mxu0 %v2438
    %3439 = vmatprep.subr.bf16.mxu0 %v2443
    %3440 = vmatpush1.bf16.msra.mxu0 %v2442
    %3441 = vmatprep.subr.bf16.mxu0 %v2447
    %3442 = vmatpush1.bf16.msra.mxu0 %v2446
    %3443 = vmatprep.subr.bf16.mxu0 %v2451
    %3444 = vmatpush1.bf16.msra.mxu0 %v2450
    %3445 = vmatprep.subr.bf16.mxu0 %v2455
    %3446 = vmatpush1.bf16.msra.mxu0 %v2454
    %3447 = vmatprep.subr.bf16.mxu0 %v2459
    %3448 = vmatpush1.bf16.msra.mxu0 %v2458
    %3449 = vmatprep.subr.bf16.mxu0 %v2463
    %3450 = vmatpush1.bf16.msra.mxu0 %v2462
    %3451 = vmatprep.subr.bf16.mxu0 %v2467
    %3452 = vmatpush1.bf16.msra.mxu0 %v2466
    %3453 = vmatprep.subr.bf16.mxu0 %v2471
    %3454 = vmatpush1.bf16.msra.mxu0 %v2470
    %3455 = vmatprep.subr.bf16.mxu0 %v2475
    %3456 = vmatpush1.bf16.msra.mxu0 %v2474
    %3457 = vmatprep.mubr.bf16.mxu0 %v1263
    %3458 = vmatmul.mubr.bf16.gmra.mrb[0].mxu0 %v1262
    %v3459 = vpop.f32.mrb[0].mxu0
    %v3460 = vadd.f32 %v3347, %v3459
    %v3461 = vpop.f32.mrb[0].mxu0
    %v3462 = vadd.f32 %v3349, %v3461
    %v3463 = vpop.f32.mrb[0].mxu0
    %v3464 = vadd.f32 %v3351, %v3463
    %v3465 = vpop.f32.mrb[0].mxu0
    %v3466 = vadd.f32 %v3353, %v3465
    %3467 = vmatprep.mubr.bf16.mxu0 %v1271
    %3468 = vmatmul.mubr.bf16.gmra.mrb[0].mxu0 %v1270
    %v3469 = vpop.f32.mrb[0].mxu0
    %v3470 = vadd.f32 %v3357, %v3469
    %v3471 = vpop.f32.mrb[0].mxu0
    %v3472 = vadd.f32 %v3359, %v3471
    %v3473 = vpop.f32.mrb[0].mxu0
    %v3474 = vadd.f32 %v3361, %v3473
    %v3475 = vpop.f32.mrb[0].mxu0
    %v3476 = vadd.f32 %v3363, %v3475
    %3477 = vmatprep.mubr.bf16.mxu0 %v1279
    %3478 = vmatmul.mubr.bf16.gmra.mrb[0].mxu0 %v1278
    %v3479 = vpop.f32.mrb[0].mxu0
    %v3480 = vadd.f32 %v3367, %v3479
    %v3481 = vpop.f32.mrb[0].mxu0
    %v3482 = vadd.f32 %v3369, %v3481
    %v3483 = vpop.f32.mrb[0].mxu0
    %v3484 = vadd.f32 %v3371, %v3483
    %v3485 = vpop.f32.mrb[0].mxu0
    %v3486 = vadd.f32 %v3373, %v3485
    %3487 = vmatprep.mubr.bf16.mxu0 %v1287
    %3488 = vmatmul.mubr.bf16.gmra.mrb[0].mxu0 %v1286
    %v3489 = vpop.f32.mrb[0].mxu0
    %v3490 = vadd.f32 %v3377, %v3489
    %v3491 = vpop.f32.mrb[0].mxu0
    %v3492 = vadd.f32 %v3379, %v3491
    %v3493 = vpop.f32.mrb[0].mxu0
    %v3494 = vadd.f32 %v3381, %v3493
    %v3495 = vpop.f32.mrb[0].mxu0
    %v3496 = vadd.f32 %v3383, %v3495
    %3497 = vmatprep.mubr.bf16.mxu0 %v1295
    %3498 = vmatmul.mubr.bf16.gmra.mrb[0].mxu0 %v1294
    %v3499 = vpop.f32.mrb[0].mxu0
    %v3500 = vadd.f32 %v3387, %v3499
    %v3501 = vpop.f32.mrb[0].mxu0
    %v3502 = vadd.f32 %v3389, %v3501
    %v3503 = vpop.f32.mrb[0].mxu0
    %v3504 = vadd.f32 %v3391, %v3503
    %v3505 = vpop.f32.mrb[0].mxu0
    %v3506 = vadd.f32 %v3393, %v3505
    %3507 = vmatprep.mubr.bf16.mxu0 %v1303
    %3508 = vmatmul.mubr.bf16.gmra.mrb[0].mxu0 %v1302
    %v3509 = vpop.f32.mrb[0].mxu0
    %v3510 = vadd.f32 %v3397, %v3509
    %v3511 = vpop.f32.mrb[0].mxu0
    %v3512 = vadd.f32 %v3399, %v3511
    %v3513 = vpop.f32.mrb[0].mxu0
    %v3514 = vadd.f32 %v3401, %v3513
    %v3515 = vpop.f32.mrb[0].mxu0
    %v3516 = vadd.f32 %v3403, %v3515
    %3517 = vmatprep.mubr.bf16.mxu0 %v1311
    %3518 = vmatmul.mubr.bf16.gmra.mrb[0].mxu0 %v1310
    %v3519 = vpop.f32.mrb[0].mxu0
    %v3520 = vadd.f32 %v3407, %v3519
    %v3521 = vpop.f32.mrb[0].mxu0
    %v3522 = vadd.f32 %v3409, %v3521
    %v3523 = vpop.f32.mrb[0].mxu0
    %v3524 = vadd.f32 %v3411, %v3523
    %v3525 = vpop.f32.mrb[0].mxu0
    %v3526 = vadd.f32 %v3413, %v3525
    %3527 = vmatprep.mubr.bf16.mxu0 %v1319
    %3528 = vmatmul.mubr.bf16.gmra.mrb[0].mxu0 %v1318
    %v3529 = vpop.f32.mrb[0].mxu0
    %v3530 = vadd.f32 %v3417, %v3529
    %v3531 = vpop.f32.mrb[0].mxu0
    %v3532 = vadd.f32 %v3419, %v3531
    %v3533 = vpop.f32.mrb[0].mxu0
    %v3534 = vadd.f32 %v3421, %v3533
    %v3535 = vpop.f32.mrb[0].mxu0
    %v3536 = vadd.f32 %v3423, %v3535
    %3537 = vdwg.mxu0
    %3538 = vmatprep.subr.bf16.mxu0 %v2479
    %3539 = vmatpush1.bf16.msra.mxu0 %v2478
    %3540 = vmatprep.subr.bf16.mxu0 %v2483
    %3541 = vmatpush1.bf16.msra.mxu0 %v2482
    %3542 = vmatprep.subr.bf16.mxu0 %v2487
    %3543 = vmatpush1.bf16.msra.mxu0 %v2486
    %3544 = vmatprep.subr.bf16.mxu0 %v2491
    %3545 = vmatpush1.bf16.msra.mxu0 %v2490
    %3546 = vmatprep.subr.bf16.mxu0 %v2495
    %3547 = vmatpush1.bf16.msra.mxu0 %v2494
    %3548 = vmatprep.subr.bf16.mxu0 %v2499
    %3549 = vmatpush1.bf16.msra.mxu0 %v2498
    %3550 = vmatprep.subr.bf16.mxu0 %v2503
    %3551 = vmatpush1.bf16.msra.mxu0 %v2502
    %3552 = vmatprep.subr.bf16.mxu0 %v2507
    %3553 = vmatpush1.bf16.msra.mxu0 %v2506
    %3554 = vmatprep.subr.bf16.mxu0 %v2511
    %3555 = vmatpush1.bf16.msra.mxu0 %v2510
    %3556 = vmatprep.subr.bf16.mxu0 %v2515
    %3557 = vmatpush1.bf16.msra.mxu0 %v2514
    %3558 = vmatprep.subr.bf16.mxu0 %v2519
    %3559 = vmatpush1.bf16.msra.mxu0 %v2518
    %3560 = vmatprep.subr.bf16.mxu0 %v2523
    %3561 = vmatpush1.bf16.msra.mxu0 %v2522
    %3562 = vmatprep.subr.bf16.mxu0 %v2527
    %3563 = vmatpush1.bf16.msra.mxu0 %v2526
    %3564 = vmatprep.subr.bf16.mxu0 %v2531
    %3565 = vmatpush1.bf16.msra.mxu0 %v2530
    %3566 = vmatprep.subr.bf16.mxu0 %v2535
    %3567 = vmatpush1.bf16.msra.mxu0 %v2534
    %3568 = vmatprep.subr.bf16.mxu0 %v2539
    %3569 = vmatpush1.bf16.msra.mxu0 %v2538
    %3570 = vmatprep.mubr.bf16.mxu0 %v1265
    %3571 = vmatmul.mubr.bf16.gmra.mrb[0].mxu0 %v1264
    %v3572 = vpop.f32.mrb[0].mxu0
    %v3573 = vadd.f32 %v3460, %v3572
    %v3574 = vpop.f32.mrb[0].mxu0
    %v3575 = vadd.f32 %v3462, %v3574
    %v3576 = vpop.f32.mrb[0].mxu0
    %v3577 = vadd.f32 %v3464, %v3576
    %v3578 = vpop.f32.mrb[0].mxu0
    %v3579 = vadd.f32 %v3466, %v3578
    %3580 = vmatprep.mubr.bf16.mxu0 %v1273
    %3581 = vmatmul.mubr.bf16.gmra.mrb[0].mxu0 %v1272
    %v3582 = vpop.f32.mrb[0].mxu0
    %v3583 = vadd.f32 %v3470, %v3582
    %v3584 = vpop.f32.mrb[0].mxu0
    %v3585 = vadd.f32 %v3472, %v3584
    %v3586 = vpop.f32.mrb[0].mxu0
    %v3587 = vadd.f32 %v3474, %v3586
    %v3588 = vpop.f32.mrb[0].mxu0
    %v3589 = vadd.f32 %v3476, %v3588
    %3590 = vmatprep.mubr.bf16.mxu0 %v1281
    %3591 = vmatmul.mubr.bf16.gmra.mrb[0].mxu0 %v1280
    %v3592 = vpop.f32.mrb[0].mxu0
    %v3593 = vadd.f32 %v3480, %v3592
    %v3594 = vpop.f32.mrb[0].mxu0
    %v3595 = vadd.f32 %v3482, %v3594
    %v3596 = vpop.f32.mrb[0].mxu0
    %v3597 = vadd.f32 %v3484, %v3596
    %v3598 = vpop.f32.mrb[0].mxu0
    %v3599 = vadd.f32 %v3486, %v3598
    %3600 = vmatprep.mubr.bf16.mxu0 %v1289
    %3601 = vmatmul.mubr.bf16.gmra.mrb[0].mxu0 %v1288
    %v3602 = vpop.f32.mrb[0].mxu0
    %v3603 = vadd.f32 %v3490, %v3602
    %v3604 = vpop.f32.mrb[0].mxu0
    %v3605 = vadd.f32 %v3492, %v3604
    %v3606 = vpop.f32.mrb[0].mxu0
    %v3607 = vadd.f32 %v3494, %v3606
    %v3608 = vpop.f32.mrb[0].mxu0
    %v3609 = vadd.f32 %v3496, %v3608
    %3610 = vmatprep.mubr.bf16.mxu0 %v1297
    %3611 = vmatmul.mubr.bf16.gmra.mrb[0].mxu0 %v1296
    %v3612 = vpop.f32.mrb[0].mxu0
    %v3613 = vadd.f32 %v3500, %v3612
    %v3614 = vpop.f32.mrb[0].mxu0
    %v3615 = vadd.f32 %v3502, %v3614
    %v3616 = vpop.f32.mrb[0].mxu0
    %v3617 = vadd.f32 %v3504, %v3616
    %v3618 = vpop.f32.mrb[0].mxu0
    %v3619 = vadd.f32 %v3506, %v3618
    %3620 = vmatprep.mubr.bf16.mxu0 %v1305
    %3621 = vmatmul.mubr.bf16.gmra.mrb[0].mxu0 %v1304
    %v3622 = vpop.f32.mrb[0].mxu0
    %v3623 = vadd.f32 %v3510, %v3622
    %v3624 = vpop.f32.mrb[0].mxu0
    %v3625 = vadd.f32 %v3512, %v3624
    %v3626 = vpop.f32.mrb[0].mxu0
    %v3627 = vadd.f32 %v3514, %v3626
    %v3628 = vpop.f32.mrb[0].mxu0
    %v3629 = vadd.f32 %v3516, %v3628
    %3630 = vmatprep.mubr.bf16.mxu0 %v1313
    %3631 = vmatmul.mubr.bf16.gmra.mrb[0].mxu0 %v1312
    %v3632 = vpop.f32.mrb[0].mxu0
    %v3633 = vadd.f32 %v3520, %v3632
    %v3634 = vpop.f32.mrb[0].mxu0
    %v3635 = vadd.f32 %v3522, %v3634
    %v3636 = vpop.f32.mrb[0].mxu0
    %v3637 = vadd.f32 %v3524, %v3636
    %v3638 = vpop.f32.mrb[0].mxu0
    %v3639 = vadd.f32 %v3526, %v3638
    %3640 = vmatprep.mubr.bf16.mxu0 %v1321
    %3641 = vmatmul.mubr.bf16.gmra.mrb[0].mxu0 %v1320
    %v3642 = vpop.f32.mrb[0].mxu0
    %v3643 = vadd.f32 %v3530, %v3642
    %v3644 = vpop.f32.mrb[0].mxu0
    %v3645 = vadd.f32 %v3532, %v3644
    %v3646 = vpop.f32.mrb[0].mxu0
    %v3647 = vadd.f32 %v3534, %v3646
    %v3648 = vpop.f32.mrb[0].mxu0
    %v3649 = vadd.f32 %v3536, %v3648
    %3650 = vdwg.mxu0
    %3651 = vmatprep.subr.bf16.mxu0 %v2543
    %3652 = vmatpush1.bf16.msra.mxu0 %v2542
    %3653 = vmatprep.subr.bf16.mxu0 %v2547
    %3654 = vmatpush1.bf16.msra.mxu0 %v2546
    %3655 = vmatprep.subr.bf16.mxu0 %v2551
    %3656 = vmatpush1.bf16.msra.mxu0 %v2550
    %3657 = vmatprep.subr.bf16.mxu0 %v2555
    %3658 = vmatpush1.bf16.msra.mxu0 %v2554
    %3659 = vmatprep.subr.bf16.mxu0 %v2559
    %3660 = vmatpush1.bf16.msra.mxu0 %v2558
    %3661 = vmatprep.subr.bf16.mxu0 %v2563
    %3662 = vmatpush1.bf16.msra.mxu0 %v2562
    %3663 = vmatprep.subr.bf16.mxu0 %v2567
    %3664 = vmatpush1.bf16.msra.mxu0 %v2566
    %3665 = vmatprep.subr.bf16.mxu0 %v2571
    %3666 = vmatpush1.bf16.msra.mxu0 %v2570
    %3667 = vmatprep.subr.bf16.mxu0 %v2575
    %3668 = vmatpush1.bf16.msra.mxu0 %v2574
    %3669 = vmatprep.subr.bf16.mxu0 %v2579
    %3670 = vmatpush1.bf16.msra.mxu0 %v2578
    %3671 = vmatprep.subr.bf16.mxu0 %v2583
    %3672 = vmatpush1.bf16.msra.mxu0 %v2582
    %3673 = vmatprep.subr.bf16.mxu0 %v2587
    %3674 = vmatpush1.bf16.msra.mxu0 %v2586
    %3675 = vmatprep.subr.bf16.mxu0 %v2591
    %3676 = vmatpush1.bf16.msra.mxu0 %v2590
    %3677 = vmatprep.subr.bf16.mxu0 %v2595
    %3678 = vmatpush1.bf16.msra.mxu0 %v2594
    %3679 = vmatprep.subr.bf16.mxu0 %v2599
    %3680 = vmatpush1.bf16.msra.mxu0 %v2598
    %3681 = vmatprep.subr.bf16.mxu0 %v2603
    %3682 = vmatpush1.bf16.msra.mxu0 %v2602
    %3683 = vmatprep.mubr.bf16.mxu0 %v1267
    %3684 = vmatmul.mubr.bf16.gmra.mrb[0].mxu0 %v1266
    %v3685 = vpop.f32.mrb[0].mxu0
    %v3686 = vadd.f32 %v3573, %v3685
    %v3687 = vpop.f32.mrb[0].mxu0
    %v3688 = vadd.f32 %v3575, %v3687
    %v3689 = vpop.f32.mrb[0].mxu0
    %v3690 = vadd.f32 %v3577, %v3689
    %v3691 = vpop.f32.mrb[0].mxu0
    %v3692 = vadd.f32 %v3579, %v3691
    %3693 = vmatprep.mubr.bf16.mxu0 %v1275
    %3694 = vmatmul.mubr.bf16.gmra.mrb[0].mxu0 %v1274
    %v3695 = vpop.f32.mrb[0].mxu0
    %v3696 = vadd.f32 %v3583, %v3695
    %v3697 = vpop.f32.mrb[0].mxu0
    %v3698 = vadd.f32 %v3585, %v3697
    %v3699 = vpop.f32.mrb[0].mxu0
    %v3700 = vadd.f32 %v3587, %v3699
    %v3701 = vpop.f32.mrb[0].mxu0
    %v3702 = vadd.f32 %v3589, %v3701
    %3703 = vmatprep.mubr.bf16.mxu0 %v1283
    %3704 = vmatmul.mubr.bf16.gmra.mrb[0].mxu0 %v1282
    %v3705 = vpop.f32.mrb[0].mxu0
    %v3706 = vadd.f32 %v3593, %v3705
    %v3707 = vpop.f32.mrb[0].mxu0
    %v3708 = vadd.f32 %v3595, %v3707
    %v3709 = vpop.f32.mrb[0].mxu0
    %v3710 = vadd.f32 %v3597, %v3709
    %v3711 = vpop.f32.mrb[0].mxu0
    %v3712 = vadd.f32 %v3599, %v3711
    %3713 = vmatprep.mubr.bf16.mxu0 %v1291
    %3714 = vmatmul.mubr.bf16.gmra.mrb[0].mxu0 %v1290
    %v3715 = vpop.f32.mrb[0].mxu0
    %v3716 = vadd.f32 %v3603, %v3715
    %v3717 = vpop.f32.mrb[0].mxu0
    %v3718 = vadd.f32 %v3605, %v3717
    %v3719 = vpop.f32.mrb[0].mxu0
    %v3720 = vadd.f32 %v3607, %v3719
    %v3721 = vpop.f32.mrb[0].mxu0
    %v3722 = vadd.f32 %v3609, %v3721
    %3723 = vmatprep.mubr.bf16.mxu0 %v1299
    %3724 = vmatmul.mubr.bf16.gmra.mrb[0].mxu0 %v1298
    %v3725 = vpop.f32.mrb[0].mxu0
    %v3726 = vadd.f32 %v3613, %v3725
    %v3727 = vpop.f32.mrb[0].mxu0
    %v3728 = vadd.f32 %v3615, %v3727
    %v3729 = vpop.f32.mrb[0].mxu0
    %v3730 = vadd.f32 %v3617, %v3729
    %v3731 = vpop.f32.mrb[0].mxu0
    %v3732 = vadd.f32 %v3619, %v3731
    %3733 = vmatprep.mubr.bf16.mxu0 %v1307
    %3734 = vmatmul.mubr.bf16.gmra.mrb[0].mxu0 %v1306
    %v3735 = vpop.f32.mrb[0].mxu0
    %v3736 = vadd.f32 %v3623, %v3735
    %v3737 = vpop.f32.mrb[0].mxu0
    %v3738 = vadd.f32 %v3625, %v3737
    %v3739 = vpop.f32.mrb[0].mxu0
    %v3740 = vadd.f32 %v3627, %v3739
    %v3741 = vpop.f32.mrb[0].mxu0
    %v3742 = vadd.f32 %v3629, %v3741
    %3743 = vmatprep.mubr.bf16.mxu0 %v1315
    %3744 = vmatmul.mubr.bf16.gmra.mrb[0].mxu0 %v1314
    %v3745 = vpop.f32.mrb[0].mxu0
    %v3746 = vadd.f32 %v3633, %v3745
    %v3747 = vpop.f32.mrb[0].mxu0
    %v3748 = vadd.f32 %v3635, %v3747
    %v3749 = vpop.f32.mrb[0].mxu0
    %v3750 = vadd.f32 %v3637, %v3749
    %v3751 = vpop.f32.mrb[0].mxu0
    %v3752 = vadd.f32 %v3639, %v3751
    %3753 = vmatprep.mubr.bf16.mxu0 %v1323
    %3754 = vmatmul.mubr.bf16.gmra.mrb[0].mxu0 %v1322
    %v3755 = vpop.f32.mrb[0].mxu0
    %v3756 = vadd.f32 %v3643, %v3755
    %v3757 = vpop.f32.mrb[0].mxu0
    %v3758 = vadd.f32 %v3645, %v3757
    %v3759 = vpop.f32.mrb[0].mxu0
    %v3760 = vadd.f32 %v3647, %v3759
    %v3761 = vpop.f32.mrb[0].mxu0
    %v3762 = vadd.f32 %v3649, %v3761
    %3763 = vdwg.mxu0
    %v3764 = vld [vmem:[%s4] sm:$0xf]
    %v3766 = vlaneseq
    %v3767 = vshrl.u32 %v3766, 7
    %v3768 = vsub.s32 0, %v3767
    %v3769 = vrot.slane %v3764, %v3768
    %v3770 = vlaneseq
    %v3771 = vshrl.u32 %v3770, 7
    %v3772 = vsub.s32 1, %v3771
    %v3773 = vrot.slane %v3764, %v3772
    %v3774 = vlaneseq
    %v3775 = vshrl.u32 %v3774, 7
    %v3776 = vsub.s32 2, %v3775
    %v3777 = vrot.slane %v3764, %v3776
    %v3778 = vlaneseq
    %v3779 = vshrl.u32 %v3778, 7
    %v3780 = vsub.s32 3, %v3779
    %v3781 = vrot.slane %v3764, %v3780
    %v3786 = vadd.f32 %v3234, %v3769
    %v3787 = vadd.f32 %v3236, %v3773
    %v3788 = vadd.f32 %v3686, %v3777
    %v3789 = vadd.f32 %v3688, %v3781
    %v3790 = vadd.f32 %v3238, %v3769
    %v3791 = vadd.f32 %v3240, %v3773
    %v3792 = vadd.f32 %v3690, %v3777
    %v3793 = vadd.f32 %v3692, %v3781
    %v3794 = vadd.f32 %v3244, %v3769
    %v3795 = vadd.f32 %v3246, %v3773
    %v3796 = vadd.f32 %v3696, %v3777
    %v3797 = vadd.f32 %v3698, %v3781
    %v3798 = vadd.f32 %v3248, %v3769
    %v3799 = vadd.f32 %v3250, %v3773
    %v3800 = vadd.f32 %v3700, %v3777
    %v3801 = vadd.f32 %v3702, %v3781
    %v3802 = vadd.f32 %v3254, %v3769
    %v3803 = vadd.f32 %v3256, %v3773
    %v3804 = vadd.f32 %v3706, %v3777
    %v3805 = vadd.f32 %v3708, %v3781
    %v3806 = vadd.f32 %v3258, %v3769
    %v3807 = vadd.f32 %v3260, %v3773
    %v3808 = vadd.f32 %v3710, %v3777
    %v3809 = vadd.f32 %v3712, %v3781
    %v3810 = vadd.f32 %v3264, %v3769
    %v3811 = vadd.f32 %v3266, %v3773
    %v3812 = vadd.f32 %v3716, %v3777
    %v3813 = vadd.f32 %v3718, %v3781
    %v3814 = vadd.f32 %v3268, %v3769
    %v3815 = vadd.f32 %v3270, %v3773
    %v3816 = vadd.f32 %v3720, %v3777
    %v3817 = vadd.f32 %v3722, %v3781
    %v3818 = vadd.f32 %v3274, %v3769
    %v3819 = vadd.f32 %v3276, %v3773
    %v3820 = vadd.f32 %v3726, %v3777
    %v3821 = vadd.f32 %v3728, %v3781
    %v3822 = vadd.f32 %v3278, %v3769
    %v3823 = vadd.f32 %v3280, %v3773
    %v3824 = vadd.f32 %v3730, %v3777
    %v3825 = vadd.f32 %v3732, %v3781
    %v3826 = vadd.f32 %v3284, %v3769
    %v3827 = vadd.f32 %v3286, %v3773
    %v3828 = vadd.f32 %v3736, %v3777
    %v3829 = vadd.f32 %v3738, %v3781
    %v3830 = vadd.f32 %v3288, %v3769
    %v3831 = vadd.f32 %v3290, %v3773
    %v3832 = vadd.f32 %v3740, %v3777
    %v3833 = vadd.f32 %v3742, %v3781
    %v3834 = vadd.f32 %v3294, %v3769
    %v3835 = vadd.f32 %v3296, %v3773
    %v3836 = vadd.f32 %v3746, %v3777
    %v3837 = vadd.f32 %v3748, %v3781
    %v3838 = vadd.f32 %v3298, %v3769
    %v3839 = vadd.f32 %v3300, %v3773
    %v3840 = vadd.f32 %v3750, %v3777
    %v3841 = vadd.f32 %v3752, %v3781
    %v3842 = vadd.f32 %v3304, %v3769
    %v3843 = vadd.f32 %v3306, %v3773
    %v3844 = vadd.f32 %v3756, %v3777
    %v3845 = vadd.f32 %v3758, %v3781
    %v3846 = vadd.f32 %v3308, %v3769
    %v3847 = vadd.f32 %v3310, %v3773
    %v3848 = vadd.f32 %v3760, %v3777
    %v3849 = vadd.f32 %v3762, %v3781
    %v3850 = vmax.f32 %v3786, 0.0
    %v3851 = vmax.f32 %v3787, 0.0
    %v3852 = vmax.f32 %v3788, 0.0
    %v3853 = vmax.f32 %v3789, 0.0
    %v3854 = vmax.f32 %v3790, 0.0
    %v3855 = vmax.f32 %v3791, 0.0
    %v3856 = vmax.f32 %v3792, 0.0
    %v3857 = vmax.f32 %v3793, 0.0
    %v3858 = vmax.f32 %v3794, 0.0
    %v3859 = vmax.f32 %v3795, 0.0
    %v3860 = vmax.f32 %v3796, 0.0
    %v3861 = vmax.f32 %v3797, 0.0
    %v3862 = vmax.f32 %v3798, 0.0
    %v3863 = vmax.f32 %v3799, 0.0
    %v3864 = vmax.f32 %v3800, 0.0
    %v3865 = vmax.f32 %v3801, 0.0
    %v3866 = vmax.f32 %v3802, 0.0
    %v3867 = vmax.f32 %v3803, 0.0
    %v3868 = vmax.f32 %v3804, 0.0
    %v3869 = vmax.f32 %v3805, 0.0
    %v3870 = vmax.f32 %v3806, 0.0
    %v3871 = vmax.f32 %v3807, 0.0
    %v3872 = vmax.f32 %v3808, 0.0
    %v3873 = vmax.f32 %v3809, 0.0
    %v3874 = vmax.f32 %v3810, 0.0
    %v3875 = vmax.f32 %v3811, 0.0
    %v3876 = vmax.f32 %v3812, 0.0
    %v3877 = vmax.f32 %v3813, 0.0
    %v3878 = vmax.f32 %v3814, 0.0
    %v3879 = vmax.f32 %v3815, 0.0
    %v3880 = vmax.f32 %v3816, 0.0
    %v3881 = vmax.f32 %v3817, 0.0
    %v3882 = vmax.f32 %v3818, 0.0
    %v3883 = vmax.f32 %v3819, 0.0
    %v3884 = vmax.f32 %v3820, 0.0
    %v3885 = vmax.f32 %v3821, 0.0
    %v3886 = vmax.f32 %v3822, 0.0
    %v3887 = vmax.f32 %v3823, 0.0
    %v3888 = vmax.f32 %v3824, 0.0
    %v3889 = vmax.f32 %v3825, 0.0
    %v3890 = vmax.f32 %v3826, 0.0
    %v3891 = vmax.f32 %v3827, 0.0
    %v3892 = vmax.f32 %v3828, 0.0
    %v3893 = vmax.f32 %v3829, 0.0
    %v3894 = vmax.f32 %v3830, 0.0
    %v3895 = vmax.f32 %v3831, 0.0
    %v3896 = vmax.f32 %v3832, 0.0
    %v3897 = vmax.f32 %v3833, 0.0
    %v3898 = vmax.f32 %v3834, 0.0
    %v3899 = vmax.f32 %v3835, 0.0
    %v3900 = vmax.f32 %v3836, 0.0
    %v3901 = vmax.f32 %v3837, 0.0
    %v3902 = vmax.f32 %v3838, 0.0
    %v3903 = vmax.f32 %v3839, 0.0
    %v3904 = vmax.f32 %v3840, 0.0
    %v3905 = vmax.f32 %v3841, 0.0
    %v3906 = vmax.f32 %v3842, 0.0
    %v3907 = vmax.f32 %v3843, 0.0
    %v3908 = vmax.f32 %v3844, 0.0
    %v3909 = vmax.f32 %v3845, 0.0
    %v3910 = vmax.f32 %v3846, 0.0
    %v3911 = vmax.f32 %v3847, 0.0
    %v3912 = vmax.f32 %v3848, 0.0
    %v3913 = vmax.f32 %v3849, 0.0
    %v3914 = vpack.c.bf16 %v3854, %v3850
    %v3915 = vpack.c.bf16 %v3855, %v3851
    %v3916 = vpack.c.bf16 %v3856, %v3852
    %v3917 = vpack.c.bf16 %v3857, %v3853
    %v3918 = vpack.c.bf16 %v3862, %v3858
    %v3919 = vpack.c.bf16 %v3863, %v3859
    %v3920 = vpack.c.bf16 %v3864, %v3860
    %v3921 = vpack.c.bf16 %v3865, %v3861
    %v3922 = vpack.c.bf16 %v3870, %v3866
    %v3923 = vpack.c.bf16 %v3871, %v3867
    %v3924 = vpack.c.bf16 %v3872, %v3868
    %v3925 = vpack.c.bf16 %v3873, %v3869
    %v3926 = vpack.c.bf16 %v3878, %v3874
    %v3927 = vpack.c.bf16 %v3879, %v3875
    %v3928 = vpack.c.bf16 %v3880, %v3876
    %v3929 = vpack.c.bf16 %v3881, %v3877
    %v3930 = vpack.c.bf16 %v3886, %v3882
    %v3931 = vpack.c.bf16 %v3887, %v3883
    %v3932 = vpack.c.bf16 %v3888, %v3884
    %v3933 = vpack.c.bf16 %v3889, %v3885
    %v3934 = vpack.c.bf16 %v3894, %v3890
    %v3935 = vpack.c.bf16 %v3895, %v3891
    %v3936 = vpack.c.bf16 %v3896, %v3892
    %v3937 = vpack.c.bf16 %v3897, %v3893
    %v3938 = vpack.c.bf16 %v3902, %v3898
    %v3939 = vpack.c.bf16 %v3903, %v3899
    %v3940 = vpack.c.bf16 %v3904, %v3900
    %v3941 = vpack.c.bf16 %v3905, %v3901
    %v3942 = vpack.c.bf16 %v3910, %v3906
    %v3943 = vpack.c.bf16 %v3911, %v3907
    %v3944 = vpack.c.bf16 %v3912, %v3908
    %v3945 = vpack.c.bf16 %v3913, %v3909
    %v3946 = vld [vmem:[#allocation8] sm:$0xff]
    %v3947 = vld [vmem:[#allocation8 + $0x8] sm:$0xf]
    %v3948 = vld [vmem:[#allocation8 + $0xc] sm:$0xff]
    %v3949 = vld [vmem:[#allocation8 + $0x14] sm:$0xf]
    %v3950 = vld [vmem:[#allocation8 + $0x18] sm:$0xff]
    %v3951 = vld [vmem:[#allocation8 + $0x20] sm:$0xf]
    %v3952 = vld [vmem:[#allocation8 + $0x24] sm:$0xff]
    %v3953 = vld [vmem:[#allocation8 + $0x2c] sm:$0xf]
    %v3954 = vld [vmem:[#allocation8 + $0x30] sm:$0xff]
    %v3955 = vld [vmem:[#allocation8 + $0x38] sm:$0xf]
    %v3956 = vld [vmem:[#allocation8 + $0x3c] sm:$0xff]
    %v3957 = vld [vmem:[#allocation8 + $0x44] sm:$0xf]
    %v3958 = vld [vmem:[#allocation8 + $0x48] sm:$0xff]
    %v3959 = vld [vmem:[#allocation8 + $0x50] sm:$0xf]
    %v3960 = vld [vmem:[#allocation8 + $0x54] sm:$0xff]
    %v3961 = vld [vmem:[#allocation8 + $0x5c] sm:$0xf]
    %v3962 = vld [vmem:[#allocation8 + $0x60] sm:$0xff]
    %v3963 = vld [vmem:[#allocation8 + $0x68] sm:$0xf]
    %v3964 = vld [vmem:[#allocation8 + $0x6c] sm:$0xff]
    %v3965 = vld [vmem:[#allocation8 + $0x74] sm:$0xf]
    %v3966 = vld [vmem:[#allocation8 + $0x78] sm:$0xff]
    %v3967 = vld [vmem:[#allocation8 + $0x80] sm:$0xf]
    %v3968 = vld [vmem:[#allocation8 + $0x84] sm:$0xff]
    %v3969 = vld [vmem:[#allocation8 + $0x8c] sm:$0xf]
    %v3970 = vld [vmem:[#allocation8 + $0x90] sm:$0xff]
    %v3971 = vld [vmem:[#allocation8 + $0x98] sm:$0xf]
    %v3972 = vld [vmem:[#allocation8 + $0x9c] sm:$0xff]
    %v3973 = vld [vmem:[#allocation8 + $0xa4] sm:$0xf]
    %v3974 = vld [vmem:[#allocation8 + $0xa8] sm:$0xff]
    %v3975 = vld [vmem:[#allocation8 + $0xb0] sm:$0xf]
    %v3976 = vld [vmem:[#allocation8 + $0xb4] sm:$0xff]
    %v3977 = vld [vmem:[#allocation8 + $0xbc] sm:$0xf]
    %v3978 = vld [vmem:[#allocation8 + $0xc0] sm:$0xff]
    %v3979 = vld [vmem:[#allocation8 + $0xc8] sm:$0xf]
    %v3980 = vld [vmem:[#allocation8 + $0xcc] sm:$0xff]
    %v3981 = vld [vmem:[#allocation8 + $0xd4] sm:$0xf]
    %v3982 = vld [vmem:[#allocation8 + $0xd8] sm:$0xff]
    %v3983 = vld [vmem:[#allocation8 + $0xe0] sm:$0xf]
    %v3984 = vld [vmem:[#allocation8 + $0xe4] sm:$0xff]
    %v3985 = vld [vmem:[#allocation8 + $0xec] sm:$0xf]
    %v3986 = vld [vmem:[#allocation8 + $0xf0] sm:$0xff]
    %v3987 = vld [vmem:[#allocation8 + $0xf8] sm:$0xf]
    %v3988 = vld [vmem:[#allocation8 + $0xfc] sm:$0xff]
    %v3989 = vld [vmem:[#allocation8 + $0x104] sm:$0xf]
    %v3990 = vld [vmem:[#allocation8 + $0x108] sm:$0xff]
    %v3991 = vld [vmem:[#allocation8 + $0x110] sm:$0xf]
    %v3992 = vld [vmem:[#allocation8 + $0x114] sm:$0xff]
    %v3993 = vld [vmem:[#allocation8 + $0x11c] sm:$0xf]
    %v3994 = vld [vmem:[#allocation8 + $0x120] sm:$0xff]
    %v3995 = vld [vmem:[#allocation8 + $0x128] sm:$0xf]
    %v3996 = vld [vmem:[#allocation8 + $0x12c] sm:$0xff]
    %v3997 = vld [vmem:[#allocation8 + $0x134] sm:$0xf]
    %v3998 = vld [vmem:[#allocation8 + $0x138] sm:$0xff]
    %v3999 = vld [vmem:[#allocation8 + $0x140] sm:$0xf]
    %v4000 = vld [vmem:[#allocation8 + $0x144] sm:$0xff]
    %v4001 = vld [vmem:[#allocation8 + $0x14c] sm:$0xf]
    %v4002 = vld [vmem:[#allocation8 + $0x150] sm:$0xff]
    %v4003 = vld [vmem:[#allocation8 + $0x158] sm:$0xf]
    %v4004 = vld [vmem:[#allocation8 + $0x15c] sm:$0xff]
    %v4005 = vld [vmem:[#allocation8 + $0x164] sm:$0xf]
    %v4006 = vld [vmem:[#allocation8 + $0x168] sm:$0xff]
    %v4007 = vld [vmem:[#allocation8 + $0x170] sm:$0xf]
    %v4008 = vld [vmem:[#allocation8 + $0x174] sm:$0xff]
    %v4009 = vld [vmem:[#allocation8 + $0x17c] sm:$0xf]
    %v4010 = vld [vmem:[#allocation8 + $0x180] sm:$0xff]
    %v4011 = vld [vmem:[#allocation8 + $0x188] sm:$0xf]
    %v4012 = vld [vmem:[#allocation8 + $0x18c] sm:$0xff]
    %v4013 = vld [vmem:[#allocation8 + $0x194] sm:$0xf]
    %v4014 = vld [vmem:[#allocation8 + $0x198] sm:$0xff]
    %v4015 = vld [vmem:[#allocation8 + $0x1a0] sm:$0xf]
    %v4016 = vld [vmem:[#allocation8 + $0x1a4] sm:$0xff]
    %v4017 = vld [vmem:[#allocation8 + $0x1ac] sm:$0xf]
    %v4018 = vld [vmem:[#allocation8 + $0x1b0] sm:$0xff]
    %v4019 = vld [vmem:[#allocation8 + $0x1b8] sm:$0xf]
    %v4020 = vld [vmem:[#allocation8 + $0x1bc] sm:$0xff]
    %v4021 = vld [vmem:[#allocation8 + $0x1c4] sm:$0xf]
    %v4022 = vld [vmem:[#allocation8 + $0x1c8] sm:$0xff]
    %v4023 = vld [vmem:[#allocation8 + $0x1d0] sm:$0xf]
    %v4024 = vld [vmem:[#allocation8 + $0x1d4] sm:$0xff]
    %v4025 = vld [vmem:[#allocation8 + $0x1dc] sm:$0xf]
    %v4026 = vld [vmem:[#allocation8 + $0x1e0] sm:$0xff]
    %v4027 = vld [vmem:[#allocation8 + $0x1e8] sm:$0xf]
    %v4028 = vld [vmem:[#allocation8 + $0x1ec] sm:$0xff]
    %v4029 = vld [vmem:[#allocation8 + $0x1f4] sm:$0xf]
    %v4030 = vld [vmem:[#allocation8 + $0x1f8] sm:$0xff]
    %v4031 = vld [vmem:[#allocation8 + $0x200] sm:$0xf]
    %v4032 = vld [vmem:[#allocation8 + $0x204] sm:$0xff]
    %v4033 = vld [vmem:[#allocation8 + $0x20c] sm:$0xf]
    %v4034 = vld [vmem:[#allocation8 + $0x210] sm:$0xff]
    %v4035 = vld [vmem:[#allocation8 + $0x218] sm:$0xf]
    %v4036 = vld [vmem:[#allocation8 + $0x21c] sm:$0xff]
    %v4037 = vld [vmem:[#allocation8 + $0x224] sm:$0xf]
    %v4038 = vld [vmem:[#allocation8 + $0x228] sm:$0xff]
    %v4039 = vld [vmem:[#allocation8 + $0x230] sm:$0xf]
    %v4040 = vld [vmem:[#allocation8 + $0x234] sm:$0xff]
    %v4041 = vld [vmem:[#allocation8 + $0x23c] sm:$0xf]
    %v4042 = vld [vmem:[#allocation8 + $0x240] sm:$0xff]
    %v4043 = vld [vmem:[#allocation8 + $0x248] sm:$0xf]
    %v4044 = vld [vmem:[#allocation8 + $0x24c] sm:$0xff]
    %v4045 = vld [vmem:[#allocation8 + $0x254] sm:$0xf]
    %v4046 = vld [vmem:[#allocation8 + $0x258] sm:$0xff]
    %v4047 = vld [vmem:[#allocation8 + $0x260] sm:$0xf]
    %v4048 = vld [vmem:[#allocation8 + $0x264] sm:$0xff]
    %v4049 = vld [vmem:[#allocation8 + $0x26c] sm:$0xf]
    %v4050 = vld [vmem:[#allocation8 + $0x270] sm:$0xff]
    %v4051 = vld [vmem:[#allocation8 + $0x278] sm:$0xf]
    %v4052 = vld [vmem:[#allocation8 + $0x27c] sm:$0xff]
    %v4053 = vld [vmem:[#allocation8 + $0x284] sm:$0xf]
    %v4054 = vld [vmem:[#allocation8 + $0x288] sm:$0xff]
    %v4055 = vld [vmem:[#allocation8 + $0x290] sm:$0xf]
    %v4056 = vld [vmem:[#allocation8 + $0x294] sm:$0xff]
    %v4057 = vld [vmem:[#allocation8 + $0x29c] sm:$0xf]
    %v4058 = vld [vmem:[#allocation8 + $0x2a0] sm:$0xff]
    %v4059 = vld [vmem:[#allocation8 + $0x2a8] sm:$0xf]
    %v4060 = vld [vmem:[#allocation8 + $0x2ac] sm:$0xff]
    %v4061 = vld [vmem:[#allocation8 + $0x2b4] sm:$0xf]
    %v4062 = vld [vmem:[#allocation8 + $0x2b8] sm:$0xff]
    %v4063 = vld [vmem:[#allocation8 + $0x2c0] sm:$0xf]
    %v4064 = vld [vmem:[#allocation8 + $0x2c4] sm:$0xff]
    %v4065 = vld [vmem:[#allocation8 + $0x2cc] sm:$0xf]
    %v4066 = vld [vmem:[#allocation8 + $0x2d0] sm:$0xff]
    %v4067 = vld [vmem:[#allocation8 + $0x2d8] sm:$0xf]
    %v4068 = vld [vmem:[#allocation8 + $0x2dc] sm:$0xff]
    %v4069 = vld [vmem:[#allocation8 + $0x2e4] sm:$0xf]
    %v4070 = vld [vmem:[#allocation8 + $0x2e8] sm:$0xff]
    %v4071 = vld [vmem:[#allocation8 + $0x2f0] sm:$0xf]
    %v4072 = vld [vmem:[#allocation8 + $0x2f4] sm:$0xff]
    %v4073 = vld [vmem:[#allocation8 + $0x2fc] sm:$0xf]
    %v4074 = vld [vmem:[%s6] sm:$0x7]
    %v4076 = vlaneseq
    %v4077 = vshrl.u32 %v4076, 7
    %v4078 = vsub.s32 0, %v4077
    %v4079 = vrot.slane %v4074, %v4078
    %v4080 = vlaneseq
    %v4081 = vshrl.u32 %v4080, 7
    %v4082 = vsub.s32 1, %v4081
    %v4083 = vrot.slane %v4074, %v4082
    %v4084 = vlaneseq
    %v4085 = vshrl.u32 %v4084, 7
    %v4086 = vsub.s32 2, %v4085
    %v4087 = vrot.slane %v4074, %v4086
    %v4219 = vunpack.c.l.b16 %v3946
    %v4220 = vunpack.c.h.b16 %v3946
    %v4221 = vunpack.c.l.b16 %v3947
    %v4222 = vunpack.c.l.b16 %v3948
    %v4223 = vunpack.c.h.b16 %v3948
    %v4224 = vunpack.c.l.b16 %v3949
    %v4225 = vunpack.c.l.b16 %v3950
    %v4226 = vunpack.c.h.b16 %v3950
    %v4227 = vunpack.c.l.b16 %v3951
    %v4228 = vunpack.c.l.b16 %v3952
    %v4229 = vunpack.c.h.b16 %v3952
    %v4230 = vunpack.c.l.b16 %v3953
    %v4231 = vunpack.c.l.b16 %v3954
    %v4232 = vunpack.c.h.b16 %v3954
    %v4233 = vunpack.c.l.b16 %v3955
    %v4234 = vunpack.c.l.b16 %v3956
    %v4235 = vunpack.c.h.b16 %v3956
    %v4236 = vunpack.c.l.b16 %v3957
    %v4237 = vunpack.c.l.b16 %v3958
    %v4238 = vunpack.c.h.b16 %v3958
    %v4239 = vunpack.c.l.b16 %v3959
    %v4240 = vunpack.c.l.b16 %v3960
    %v4241 = vunpack.c.h.b16 %v3960
    %v4242 = vunpack.c.l.b16 %v3961
    %v4243 = vunpack.c.l.b16 %v3962
    %v4244 = vunpack.c.h.b16 %v3962
    %v4245 = vunpack.c.l.b16 %v3963
    %v4246 = vunpack.c.l.b16 %v3964
    %v4247 = vunpack.c.h.b16 %v3964
    %v4248 = vunpack.c.l.b16 %v3965
    %v4249 = vunpack.c.l.b16 %v3966
    %v4250 = vunpack.c.h.b16 %v3966
    %v4251 = vunpack.c.l.b16 %v3967
    %v4252 = vunpack.c.l.b16 %v3968
    %v4253 = vunpack.c.h.b16 %v3968
    %v4254 = vunpack.c.l.b16 %v3969
    %v4255 = vunpack.c.l.b16 %v3970
    %v4256 = vunpack.c.h.b16 %v3970
    %v4257 = vunpack.c.l.b16 %v3971
    %v4258 = vunpack.c.l.b16 %v3972
    %v4259 = vunpack.c.h.b16 %v3972
    %v4260 = vunpack.c.l.b16 %v3973
    %v4261 = vunpack.c.l.b16 %v3974
    %v4262 = vunpack.c.h.b16 %v3974
    %v4263 = vunpack.c.l.b16 %v3975
    %v4264 = vunpack.c.l.b16 %v3976
    %v4265 = vunpack.c.h.b16 %v3976
    %v4266 = vunpack.c.l.b16 %v3977
    %v4267 = vunpack.c.l.b16 %v3978
    %v4268 = vunpack.c.h.b16 %v3978
    %v4269 = vunpack.c.l.b16 %v3979
    %v4270 = vunpack.c.l.b16 %v3980
    %v4271 = vunpack.c.h.b16 %v3980
    %v4272 = vunpack.c.l.b16 %v3981
    %v4273 = vunpack.c.l.b16 %v3982
    %v4274 = vunpack.c.h.b16 %v3982
    %v4275 = vunpack.c.l.b16 %v3983
    %v4276 = vunpack.c.l.b16 %v3984
    %v4277 = vunpack.c.h.b16 %v3984
    %v4278 = vunpack.c.l.b16 %v3985
    %v4279 = vunpack.c.l.b16 %v3986
    %v4280 = vunpack.c.h.b16 %v3986
    %v4281 = vunpack.c.l.b16 %v3987
    %v4282 = vunpack.c.l.b16 %v3988
    %v4283 = vunpack.c.h.b16 %v3988
    %v4284 = vunpack.c.l.b16 %v3989
    %v4285 = vunpack.c.l.b16 %v3990
    %v4286 = vunpack.c.h.b16 %v3990
    %v4287 = vunpack.c.l.b16 %v3991
    %v4288 = vunpack.c.l.b16 %v3992
    %v4289 = vunpack.c.h.b16 %v3992
    %v4290 = vunpack.c.l.b16 %v3993
    %v4291 = vunpack.c.l.b16 %v3994
    %v4292 = vunpack.c.h.b16 %v3994
    %v4293 = vunpack.c.l.b16 %v3995
    %v4294 = vunpack.c.l.b16 %v3996
    %v4295 = vunpack.c.h.b16 %v3996
    %v4296 = vunpack.c.l.b16 %v3997
    %v4297 = vunpack.c.l.b16 %v3998
    %v4298 = vunpack.c.h.b16 %v3998
    %v4299 = vunpack.c.l.b16 %v3999
    %v4300 = vunpack.c.l.b16 %v4000
    %v4301 = vunpack.c.h.b16 %v4000
    %v4302 = vunpack.c.l.b16 %v4001
    %v4303 = vunpack.c.l.b16 %v4002
    %v4304 = vunpack.c.h.b16 %v4002
    %v4305 = vunpack.c.l.b16 %v4003
    %v4306 = vunpack.c.l.b16 %v4004
    %v4307 = vunpack.c.h.b16 %v4004
    %v4308 = vunpack.c.l.b16 %v4005
    %v4309 = vunpack.c.l.b16 %v4006
    %v4310 = vunpack.c.h.b16 %v4006
    %v4311 = vunpack.c.l.b16 %v4007
    %v4312 = vunpack.c.l.b16 %v4008
    %v4313 = vunpack.c.h.b16 %v4008
    %v4314 = vunpack.c.l.b16 %v4009
    %v4315 = vunpack.c.l.b16 %v4010
    %v4316 = vunpack.c.h.b16 %v4010
    %v4317 = vunpack.c.l.b16 %v4011
    %v4318 = vunpack.c.l.b16 %v4012
    %v4319 = vunpack.c.h.b16 %v4012
    %v4320 = vunpack.c.l.b16 %v4013
    %v4321 = vunpack.c.l.b16 %v4014
    %v4322 = vunpack.c.h.b16 %v4014
    %v4323 = vunpack.c.l.b16 %v4015
    %v4324 = vunpack.c.l.b16 %v4016
    %v4325 = vunpack.c.h.b16 %v4016
    %v4326 = vunpack.c.l.b16 %v4017
    %v4327 = vunpack.c.l.b16 %v4018
    %v4328 = vunpack.c.h.b16 %v4018
    %v4329 = vunpack.c.l.b16 %v4019
    %v4330 = vunpack.c.l.b16 %v4020
    %v4331 = vunpack.c.h.b16 %v4020
    %v4332 = vunpack.c.l.b16 %v4021
    %v4333 = vunpack.c.l.b16 %v4022
    %v4334 = vunpack.c.h.b16 %v4022
    %v4335 = vunpack.c.l.b16 %v4023
    %v4336 = vunpack.c.l.b16 %v4024
    %v4337 = vunpack.c.h.b16 %v4024
    %v4338 = vunpack.c.l.b16 %v4025
    %v4339 = vunpack.c.l.b16 %v4026
    %v4340 = vunpack.c.h.b16 %v4026
    %v4341 = vunpack.c.l.b16 %v4027
    %v4342 = vunpack.c.l.b16 %v4028
    %v4343 = vunpack.c.h.b16 %v4028
    %v4344 = vunpack.c.l.b16 %v4029
    %v4345 = vunpack.c.l.b16 %v4030
    %v4346 = vunpack.c.h.b16 %v4030
    %v4347 = vunpack.c.l.b16 %v4031
    %v4348 = vunpack.c.l.b16 %v4032
    %v4349 = vunpack.c.h.b16 %v4032
    %v4350 = vunpack.c.l.b16 %v4033
    %v4351 = vunpack.c.l.b16 %v4034
    %v4352 = vunpack.c.h.b16 %v4034
    %v4353 = vunpack.c.l.b16 %v4035
    %v4354 = vunpack.c.l.b16 %v4036
    %v4355 = vunpack.c.h.b16 %v4036
    %v4356 = vunpack.c.l.b16 %v4037
    %v4357 = vunpack.c.l.b16 %v4038
    %v4358 = vunpack.c.h.b16 %v4038
    %v4359 = vunpack.c.l.b16 %v4039
    %v4360 = vunpack.c.l.b16 %v4040
    %v4361 = vunpack.c.h.b16 %v4040
    %v4362 = vunpack.c.l.b16 %v4041
    %v4363 = vunpack.c.l.b16 %v4042
    %v4364 = vunpack.c.h.b16 %v4042
    %v4365 = vunpack.c.l.b16 %v4043
    %v4366 = vunpack.c.l.b16 %v4044
    %v4367 = vunpack.c.h.b16 %v4044
    %v4368 = vunpack.c.l.b16 %v4045
    %v4369 = vunpack.c.l.b16 %v4046
    %v4370 = vunpack.c.h.b16 %v4046
    %v4371 = vunpack.c.l.b16 %v4047
    %v4372 = vunpack.c.l.b16 %v4048
    %v4373 = vunpack.c.h.b16 %v4048
    %v4374 = vunpack.c.l.b16 %v4049
    %v4375 = vunpack.c.l.b16 %v4050
    %v4376 = vunpack.c.h.b16 %v4050
    %v4377 = vunpack.c.l.b16 %v4051
    %v4378 = vunpack.c.l.b16 %v4052
    %v4379 = vunpack.c.h.b16 %v4052
    %v4380 = vunpack.c.l.b16 %v4053
    %v4381 = vunpack.c.l.b16 %v4054
    %v4382 = vunpack.c.h.b16 %v4054
    %v4383 = vunpack.c.l.b16 %v4055
    %v4384 = vunpack.c.l.b16 %v4056
    %v4385 = vunpack.c.h.b16 %v4056
    %v4386 = vunpack.c.l.b16 %v4057
    %v4387 = vunpack.c.l.b16 %v4058
    %v4388 = vunpack.c.h.b16 %v4058
    %v4389 = vunpack.c.l.b16 %v4059
    %v4390 = vunpack.c.l.b16 %v4060
    %v4391 = vunpack.c.h.b16 %v4060
    %v4392 = vunpack.c.l.b16 %v4061
    %v4393 = vunpack.c.l.b16 %v4062
    %v4394 = vunpack.c.h.b16 %v4062
    %v4395 = vunpack.c.l.b16 %v4063
    %v4396 = vunpack.c.l.b16 %v4064
    %v4397 = vunpack.c.h.b16 %v4064
    %v4398 = vunpack.c.l.b16 %v4065
    %v4399 = vunpack.c.l.b16 %v4066
    %v4400 = vunpack.c.h.b16 %v4066
    %v4401 = vunpack.c.l.b16 %v4067
    %v4402 = vunpack.c.l.b16 %v4068
    %v4403 = vunpack.c.h.b16 %v4068
    %v4404 = vunpack.c.l.b16 %v4069
    %v4405 = vunpack.c.l.b16 %v4070
    %v4406 = vunpack.c.h.b16 %v4070
    %v4407 = vunpack.c.l.b16 %v4071
    %v4408 = vunpack.c.l.b16 %v4072
    %v4409 = vunpack.c.h.b16 %v4072
    %v4410 = vunpack.c.l.b16 %v4073
    %v4411 = vpack.c.b16 %v4222, %v4219
    %v4412 = vpack.c.b16 %v4223, %v4220
    %v4413 = vpack.c.b16 %v4224, %v4221
    %v4414 = vpack.c.b16 %v4228, %v4225
    %v4415 = vpack.c.b16 %v4229, %v4226
    %v4416 = vpack.c.b16 %v4230, %v4227
    %v4417 = vpack.c.b16 %v4234, %v4231
    %v4418 = vpack.c.b16 %v4235, %v4232
    %v4419 = vpack.c.b16 %v4236, %v4233
    %v4420 = vpack.c.b16 %v4240, %v4237
    %v4421 = vpack.c.b16 %v4241, %v4238
    %v4422 = vpack.c.b16 %v4242, %v4239
    %v4423 = vpack.c.b16 %v4246, %v4243
    %v4424 = vpack.c.b16 %v4247, %v4244
    %v4425 = vpack.c.b16 %v4248, %v4245
    %v4426 = vpack.c.b16 %v4252, %v4249
    %v4427 = vpack.c.b16 %v4253, %v4250
    %v4428 = vpack.c.b16 %v4254, %v4251
    %v4429 = vpack.c.b16 %v4258, %v4255
    %v4430 = vpack.c.b16 %v4259, %v4256
    %v4431 = vpack.c.b16 %v4260, %v4257
    %v4432 = vpack.c.b16 %v4264, %v4261
    %v4433 = vpack.c.b16 %v4265, %v4262
    %v4434 = vpack.c.b16 %v4266, %v4263
    %v4435 = vpack.c.b16 %v4270, %v4267
    %v4436 = vpack.c.b16 %v4271, %v4268
    %v4437 = vpack.c.b16 %v4272, %v4269
    %v4438 = vpack.c.b16 %v4276, %v4273
    %v4439 = vpack.c.b16 %v4277, %v4274
    %v4440 = vpack.c.b16 %v4278, %v4275
    %v4441 = vpack.c.b16 %v4282, %v4279
    %v4442 = vpack.c.b16 %v4283, %v4280
    %v4443 = vpack.c.b16 %v4284, %v4281
    %v4444 = vpack.c.b16 %v4288, %v4285
    %v4445 = vpack.c.b16 %v4289, %v4286
    %v4446 = vpack.c.b16 %v4290, %v4287
    %v4447 = vpack.c.b16 %v4294, %v4291
    %v4448 = vpack.c.b16 %v4295, %v4292
    %v4449 = vpack.c.b16 %v4296, %v4293
    %v4450 = vpack.c.b16 %v4300, %v4297
    %v4451 = vpack.c.b16 %v4301, %v4298
    %v4452 = vpack.c.b16 %v4302, %v4299
    %v4453 = vpack.c.b16 %v4306, %v4303
    %v4454 = vpack.c.b16 %v4307, %v4304
    %v4455 = vpack.c.b16 %v4308, %v4305
    %v4456 = vpack.c.b16 %v4312, %v4309
    %v4457 = vpack.c.b16 %v4313, %v4310
    %v4458 = vpack.c.b16 %v4314, %v4311
    %v4459 = vpack.c.b16 %v4318, %v4315
    %v4460 = vpack.c.b16 %v4319, %v4316
    %v4461 = vpack.c.b16 %v4320, %v4317
    %v4462 = vpack.c.b16 %v4324, %v4321
    %v4463 = vpack.c.b16 %v4325, %v4322
    %v4464 = vpack.c.b16 %v4326, %v4323
    %v4465 = vpack.c.b16 %v4330, %v4327
    %v4466 = vpack.c.b16 %v4331, %v4328
    %v4467 = vpack.c.b16 %v4332, %v4329
    %v4468 = vpack.c.b16 %v4336, %v4333
    %v4469 = vpack.c.b16 %v4337, %v4334
    %v4470 = vpack.c.b16 %v4338, %v4335
    %v4471 = vpack.c.b16 %v4342, %v4339
    %v4472 = vpack.c.b16 %v4343, %v4340
    %v4473 = vpack.c.b16 %v4344, %v4341
    %v4474 = vpack.c.b16 %v4348, %v4345
    %v4475 = vpack.c.b16 %v4349, %v4346
    %v4476 = vpack.c.b16 %v4350, %v4347
    %v4477 = vpack.c.b16 %v4354, %v4351
    %v4478 = vpack.c.b16 %v4355, %v4352
    %v4479 = vpack.c.b16 %v4356, %v4353
    %v4480 = vpack.c.b16 %v4360, %v4357
    %v4481 = vpack.c.b16 %v4361, %v4358
    %v4482 = vpack.c.b16 %v4362, %v4359
    %v4483 = vpack.c.b16 %v4366, %v4363
    %v4484 = vpack.c.b16 %v4367, %v4364
    %v4485 = vpack.c.b16 %v4368, %v4365
    %v4486 = vpack.c.b16 %v4372, %v4369
    %v4487 = vpack.c.b16 %v4373, %v4370
    %v4488 = vpack.c.b16 %v4374, %v4371
    %v4489 = vpack.c.b16 %v4378, %v4375
    %v4490 = vpack.c.b16 %v4379, %v4376
    %v4491 = vpack.c.b16 %v4380, %v4377
    %v4492 = vpack.c.b16 %v4384, %v4381
    %v4493 = vpack.c.b16 %v4385, %v4382
    %v4494 = vpack.c.b16 %v4386, %v4383
    %v4495 = vpack.c.b16 %v4390, %v4387
    %v4496 = vpack.c.b16 %v4391, %v4388
    %v4497 = vpack.c.b16 %v4392, %v4389
    %v4498 = vpack.c.b16 %v4396, %v4393
    %v4499 = vpack.c.b16 %v4397, %v4394
    %v4500 = vpack.c.b16 %v4398, %v4395
    %v4501 = vpack.c.b16 %v4402, %v4399
    %v4502 = vpack.c.b16 %v4403, %v4400
    %v4503 = vpack.c.b16 %v4404, %v4401
    %v4504 = vpack.c.b16 %v4408, %v4405
    %v4505 = vpack.c.b16 %v4409, %v4406
    %v4506 = vpack.c.b16 %v4410, %v4407
    %4603 = vmatprep.subr.bf16.mxu0 %v4412
    %4604 = vmatpush1.bf16.msra.mxu0 %v4411
    %4605 = vmatprep.subr.bf16.mxu0 %v4415
    %4606 = vmatpush1.bf16.msra.mxu0 %v4414
    %4607 = vmatprep.subr.bf16.mxu0 %v4418
    %4608 = vmatpush1.bf16.msra.mxu0 %v4417
    %4609 = vmatprep.subr.bf16.mxu0 %v4421
    %4610 = vmatpush1.bf16.msra.mxu0 %v4420
    %4611 = vmatprep.subr.bf16.mxu0 %v4424
    %4612 = vmatpush1.bf16.msra.mxu0 %v4423
    %4613 = vmatprep.subr.bf16.mxu0 %v4427
    %4614 = vmatpush1.bf16.msra.mxu0 %v4426
    %4615 = vmatprep.subr.bf16.mxu0 %v4430
    %4616 = vmatpush1.bf16.msra.mxu0 %v4429
    %4617 = vmatprep.subr.bf16.mxu0 %v4433
    %4618 = vmatpush1.bf16.msra.mxu0 %v4432
    %4619 = vmatprep.subr.bf16.mxu0 %v4436
    %4620 = vmatpush1.bf16.msra.mxu0 %v4435
    %4621 = vmatprep.subr.bf16.mxu0 %v4439
    %4622 = vmatpush1.bf16.msra.mxu0 %v4438
    %4623 = vmatprep.subr.bf16.mxu0 %v4442
    %4624 = vmatpush1.bf16.msra.mxu0 %v4441
    %4625 = vmatprep.subr.bf16.mxu0 %v4445
    %4626 = vmatpush1.bf16.msra.mxu0 %v4444
    %4627 = vmatprep.subr.bf16.mxu0 %v4448
    %4628 = vmatpush1.bf16.msra.mxu0 %v4447
    %4629 = vmatprep.subr.bf16.mxu0 %v4451
    %4630 = vmatpush1.bf16.msra.mxu0 %v4450
    %4631 = vmatprep.subr.bf16.mxu0 %v4454
    %4632 = vmatpush1.bf16.msra.mxu0 %v4453
    %4633 = vmatprep.subr.bf16.mxu0 %v4457
    %4634 = vmatpush1.bf16.msra.mxu0 %v4456
    %4635 = vmatprep.mubr.bf16.mxu0 %v3915
    %4636 = vmatmul.mubr.bf16.gmra.mrb[0].mxu0 %v3914
    %v4637 = vpop.f32.mrb[0].mxu0
    %v4638 = vadd.f32 %v4079, %v4637
    %v4639 = vpop.f32.mrb[0].mxu0
    %v4640 = vadd.f32 %v4083, %v4639
    %v4641 = vpop.f32.mrb[0].mxu0
    %v4642 = vadd.f32 %v4079, %v4641
    %v4643 = vpop.f32.mrb[0].mxu0
    %v4644 = vadd.f32 %v4083, %v4643
    %4645 = vmatprep.mubr.bf16.mxu0 %v3919
    %4646 = vmatmul.mubr.bf16.gmra.mrb[0].mxu0 %v3918
    %v4647 = vpop.f32.mrb[0].mxu0
    %v4648 = vadd.f32 %v4079, %v4647
    %v4649 = vpop.f32.mrb[0].mxu0
    %v4650 = vadd.f32 %v4083, %v4649
    %v4651 = vpop.f32.mrb[0].mxu0
    %v4652 = vadd.f32 %v4079, %v4651
    %v4653 = vpop.f32.mrb[0].mxu0
    %v4654 = vadd.f32 %v4083, %v4653
    %4655 = vmatprep.mubr.bf16.mxu0 %v3923
    %4656 = vmatmul.mubr.bf16.gmra.mrb[0].mxu0 %v3922
    %v4657 = vpop.f32.mrb[0].mxu0
    %v4658 = vadd.f32 %v4079, %v4657
    %v4659 = vpop.f32.mrb[0].mxu0
    %v4660 = vadd.f32 %v4083, %v4659
    %v4661 = vpop.f32.mrb[0].mxu0
    %v4662 = vadd.f32 %v4079, %v4661
    %v4663 = vpop.f32.mrb[0].mxu0
    %v4664 = vadd.f32 %v4083, %v4663
    %4665 = vmatprep.mubr.bf16.mxu0 %v3927
    %4666 = vmatmul.mubr.bf16.gmra.mrb[0].mxu0 %v3926
    %v4667 = vpop.f32.mrb[0].mxu0
    %v4668 = vadd.f32 %v4079, %v4667
    %v4669 = vpop.f32.mrb[0].mxu0
    %v4670 = vadd.f32 %v4083, %v4669
    %v4671 = vpop.f32.mrb[0].mxu0
    %v4672 = vadd.f32 %v4079, %v4671
    %v4673 = vpop.f32.mrb[0].mxu0
    %v4674 = vadd.f32 %v4083, %v4673
    %4675 = vmatprep.mubr.bf16.mxu0 %v3931
    %4676 = vmatmul.mubr.bf16.gmra.mrb[0].mxu0 %v3930
    %v4677 = vpop.f32.mrb[0].mxu0
    %v4678 = vadd.f32 %v4079, %v4677
    %v4679 = vpop.f32.mrb[0].mxu0
    %v4680 = vadd.f32 %v4083, %v4679
    %v4681 = vpop.f32.mrb[0].mxu0
    %v4682 = vadd.f32 %v4079, %v4681
    %v4683 = vpop.f32.mrb[0].mxu0
    %v4684 = vadd.f32 %v4083, %v4683
    %4685 = vmatprep.mubr.bf16.mxu0 %v3935
    %4686 = vmatmul.mubr.bf16.gmra.mrb[0].mxu0 %v3934
    %v4687 = vpop.f32.mrb[0].mxu0
    %v4688 = vadd.f32 %v4079, %v4687
    %v4689 = vpop.f32.mrb[0].mxu0
    %v4690 = vadd.f32 %v4083, %v4689
    %v4691 = vpop.f32.mrb[0].mxu0
    %v4692 = vadd.f32 %v4079, %v4691
    %v4693 = vpop.f32.mrb[0].mxu0
    %v4694 = vadd.f32 %v4083, %v4693
    %4695 = vmatprep.mubr.bf16.mxu0 %v3939
    %4696 = vmatmul.mubr.bf16.gmra.mrb[0].mxu0 %v3938
    %v4697 = vpop.f32.mrb[0].mxu0
    %v4698 = vadd.f32 %v4079, %v4697
    %v4699 = vpop.f32.mrb[0].mxu0
    %v4700 = vadd.f32 %v4083, %v4699
    %v4701 = vpop.f32.mrb[0].mxu0
    %v4702 = vadd.f32 %v4079, %v4701
    %v4703 = vpop.f32.mrb[0].mxu0
    %v4704 = vadd.f32 %v4083, %v4703
    %4705 = vmatprep.mubr.bf16.mxu0 %v3943
    %4706 = vmatmul.mubr.bf16.gmra.mrb[0].mxu0 %v3942
    %v4707 = vpop.f32.mrb[0].mxu0
    %v4708 = vadd.f32 %v4079, %v4707
    %v4709 = vpop.f32.mrb[0].mxu0
    %v4710 = vadd.f32 %v4083, %v4709
    %v4711 = vpop.f32.mrb[0].mxu0
    %v4712 = vadd.f32 %v4079, %v4711
    %v4713 = vpop.f32.mrb[0].mxu0
    %v4714 = vadd.f32 %v4083, %v4713
    %4715 = vdwg.mxu0
    %4716 = vmatprep.subr.bf16.mxu0 %v4460
    %4717 = vmatpush1.bf16.msra.mxu0 %v4459
    %4718 = vmatprep.subr.bf16.mxu0 %v4463
    %4719 = vmatpush1.bf16.msra.mxu0 %v4462
    %4720 = vmatprep.subr.bf16.mxu0 %v4466
    %4721 = vmatpush1.bf16.msra.mxu0 %v4465
    %4722 = vmatprep.subr.bf16.mxu0 %v4469
    %4723 = vmatpush1.bf16.msra.mxu0 %v4468
    %4724 = vmatprep.subr.bf16.mxu0 %v4472
    %4725 = vmatpush1.bf16.msra.mxu0 %v4471
    %4726 = vmatprep.subr.bf16.mxu0 %v4475
    %4727 = vmatpush1.bf16.msra.mxu0 %v4474
    %4728 = vmatprep.subr.bf16.mxu0 %v4478
    %4729 = vmatpush1.bf16.msra.mxu0 %v4477
    %4730 = vmatprep.subr.bf16.mxu0 %v4481
    %4731 = vmatpush1.bf16.msra.mxu0 %v4480
    %4732 = vmatprep.subr.bf16.mxu0 %v4484
    %4733 = vmatpush1.bf16.msra.mxu0 %v4483
    %4734 = vmatprep.subr.bf16.mxu0 %v4487
    %4735 = vmatpush1.bf16.msra.mxu0 %v4486
    %4736 = vmatprep.subr.bf16.mxu0 %v4490
    %4737 = vmatpush1.bf16.msra.mxu0 %v4489
    %4738 = vmatprep.subr.bf16.mxu0 %v4493
    %4739 = vmatpush1.bf16.msra.mxu0 %v4492
    %4740 = vmatprep.subr.bf16.mxu0 %v4496
    %4741 = vmatpush1.bf16.msra.mxu0 %v4495
    %4742 = vmatprep.subr.bf16.mxu0 %v4499
    %4743 = vmatpush1.bf16.msra.mxu0 %v4498
    %4744 = vmatprep.subr.bf16.mxu0 %v4502
    %4745 = vmatpush1.bf16.msra.mxu0 %v4501
    %4746 = vmatprep.subr.bf16.mxu0 %v4505
    %4747 = vmatpush1.bf16.msra.mxu0 %v4504
    %4748 = vmatprep.mubr.bf16.mxu0 %v3917
    %4749 = vmatmul.mubr.bf16.gmra.mrb[0].mxu0 %v3916
    %v4750 = vpop.f32.mrb[0].mxu0
    %v4751 = vadd.f32 %v4638, %v4750
    %v4752 = vpop.f32.mrb[0].mxu0
    %v4753 = vadd.f32 %v4640, %v4752
    %v4754 = vpop.f32.mrb[0].mxu0
    %v4755 = vadd.f32 %v4642, %v4754
    %v4756 = vpop.f32.mrb[0].mxu0
    %v4757 = vadd.f32 %v4644, %v4756
    %4758 = vmatprep.mubr.bf16.mxu0 %v3921
    %4759 = vmatmul.mubr.bf16.gmra.mrb[0].mxu0 %v3920
    %v4760 = vpop.f32.mrb[0].mxu0
    %v4761 = vadd.f32 %v4648, %v4760
    %v4762 = vpop.f32.mrb[0].mxu0
    %v4763 = vadd.f32 %v4650, %v4762
    %v4764 = vpop.f32.mrb[0].mxu0
    %v4765 = vadd.f32 %v4652, %v4764
    %v4766 = vpop.f32.mrb[0].mxu0
    %v4767 = vadd.f32 %v4654, %v4766
    %4768 = vmatprep.mubr.bf16.mxu0 %v3925
    %4769 = vmatmul.mubr.bf16.gmra.mrb[0].mxu0 %v3924
    %v4770 = vpop.f32.mrb[0].mxu0
    %v4771 = vadd.f32 %v4658, %v4770
    %v4772 = vpop.f32.mrb[0].mxu0
    %v4773 = vadd.f32 %v4660, %v4772
    %v4774 = vpop.f32.mrb[0].mxu0
    %v4775 = vadd.f32 %v4662, %v4774
    %v4776 = vpop.f32.mrb[0].mxu0
    %v4777 = vadd.f32 %v4664, %v4776
    %4778 = vmatprep.mubr.bf16.mxu0 %v3929
    %4779 = vmatmul.mubr.bf16.gmra.mrb[0].mxu0 %v3928
    %v4780 = vpop.f32.mrb[0].mxu0
    %v4781 = vadd.f32 %v4668, %v4780
    %v4782 = vpop.f32.mrb[0].mxu0
    %v4783 = vadd.f32 %v4670, %v4782
    %v4784 = vpop.f32.mrb[0].mxu0
    %v4785 = vadd.f32 %v4672, %v4784
    %v4786 = vpop.f32.mrb[0].mxu0
    %v4787 = vadd.f32 %v4674, %v4786
    %4788 = vmatprep.mubr.bf16.mxu0 %v3933
    %4789 = vmatmul.mubr.bf16.gmra.mrb[0].mxu0 %v3932
    %v4790 = vpop.f32.mrb[0].mxu0
    %v4791 = vadd.f32 %v4678, %v4790
    %v4792 = vpop.f32.mrb[0].mxu0
    %v4793 = vadd.f32 %v4680, %v4792
    %v4794 = vpop.f32.mrb[0].mxu0
    %v4795 = vadd.f32 %v4682, %v4794
    %v4796 = vpop.f32.mrb[0].mxu0
    %v4797 = vadd.f32 %v4684, %v4796
    %4798 = vmatprep.mubr.bf16.mxu0 %v3937
    %4799 = vmatmul.mubr.bf16.gmra.mrb[0].mxu0 %v3936
    %v4800 = vpop.f32.mrb[0].mxu0
    %v4801 = vadd.f32 %v4688, %v4800
    %v4802 = vpop.f32.mrb[0].mxu0
    %v4803 = vadd.f32 %v4690, %v4802
    %v4804 = vpop.f32.mrb[0].mxu0
    %v4805 = vadd.f32 %v4692, %v4804
    %v4806 = vpop.f32.mrb[0].mxu0
    %v4807 = vadd.f32 %v4694, %v4806
    %4808 = vmatprep.mubr.bf16.mxu0 %v3941
    %4809 = vmatmul.mubr.bf16.gmra.mrb[0].mxu0 %v3940
    %v4810 = vpop.f32.mrb[0].mxu0
    %v4811 = vadd.f32 %v4698, %v4810
    %v4812 = vpop.f32.mrb[0].mxu0
    %v4813 = vadd.f32 %v4700, %v4812
    %v4814 = vpop.f32.mrb[0].mxu0
    %v4815 = vadd.f32 %v4702, %v4814
    %v4816 = vpop.f32.mrb[0].mxu0
    %v4817 = vadd.f32 %v4704, %v4816
    %4818 = vmatprep.mubr.bf16.mxu0 %v3945
    %4819 = vmatmul.mubr.bf16.gmra.mrb[0].mxu0 %v3944
    %v4820 = vpop.f32.mrb[0].mxu0
    %v4821 = vadd.f32 %v4708, %v4820
    %v4822 = vpop.f32.mrb[0].mxu0
    %v4823 = vadd.f32 %v4710, %v4822
    %v4824 = vpop.f32.mrb[0].mxu0
    %v4825 = vadd.f32 %v4712, %v4824
    %v4826 = vpop.f32.mrb[0].mxu0
    %v4827 = vadd.f32 %v4714, %v4826
    %4828 = vdwg.mxu0
    %4829 = vmatprep.subr.bf16.mxu0 0
    %4830 = vmatpush1.bf16.msra.mxu0 %v4413
    %4831 = vmatprep.subr.bf16.mxu0 0
    %4832 = vmatpush1.bf16.msra.mxu0 %v4416
    %4833 = vmatprep.subr.bf16.mxu0 0
    %4834 = vmatpush1.bf16.msra.mxu0 %v4419
    %4835 = vmatprep.subr.bf16.mxu0 0
    %4836 = vmatpush1.bf16.msra.mxu0 %v4422
    %4837 = vmatprep.subr.bf16.mxu0 0
    %4838 = vmatpush1.bf16.msra.mxu0 %v4425
    %4839 = vmatprep.subr.bf16.mxu0 0
    %4840 = vmatpush1.bf16.msra.mxu0 %v4428
    %4841 = vmatprep.subr.bf16.mxu0 0
    %4842 = vmatpush1.bf16.msra.mxu0 %v4431
    %4843 = vmatprep.subr.bf16.mxu0 0
    %4844 = vmatpush1.bf16.msra.mxu0 %v4434
    %4845 = vmatprep.subr.bf16.mxu0 0
    %4846 = vmatpush1.bf16.msra.mxu0 %v4437
    %4847 = vmatprep.subr.bf16.mxu0 0
    %4848 = vmatpush1.bf16.msra.mxu0 %v4440
    %4849 = vmatprep.subr.bf16.mxu0 0
    %4850 = vmatpush1.bf16.msra.mxu0 %v4443
    %4851 = vmatprep.subr.bf16.mxu0 0
    %4852 = vmatpush1.bf16.msra.mxu0 %v4446
    %4853 = vmatprep.subr.bf16.mxu0 0
    %4854 = vmatpush1.bf16.msra.mxu0 %v4449
    %4855 = vmatprep.subr.bf16.mxu0 0
    %4856 = vmatpush1.bf16.msra.mxu0 %v4452
    %4857 = vmatprep.subr.bf16.mxu0 0
    %4858 = vmatpush1.bf16.msra.mxu0 %v4455
    %4859 = vmatprep.subr.bf16.mxu0 0
    %4860 = vmatpush1.bf16.msra.mxu0 %v4458
    %4861 = vmatprep.mubr.bf16.mxu0 %v3915
    %4862 = vmatmul.mubr.bf16.gmra.mrb[0].mxu0 %v3914
    %v4863 = vpop.f32.mrb[0].mxu0
    %v4864 = vadd.f32 %v4087, %v4863
    %v4865 = vpop.f32.mrb[0].mxu0
    %v4866 = vpop.f32.mrb[0].mxu0
    %v4867 = vadd.f32 %v4087, %v4866
    %v4868 = vpop.f32.mrb[0].mxu0
    %4869 = vmatprep.mubr.bf16.mxu0 %v3919
    %4870 = vmatmul.mubr.bf16.gmra.mrb[0].mxu0 %v3918
    %v4871 = vpop.f32.mrb[0].mxu0
    %v4872 = vadd.f32 %v4087, %v4871
    %v4873 = vpop.f32.mrb[0].mxu0
    %v4874 = vpop.f32.mrb[0].mxu0
    %v4875 = vadd.f32 %v4087, %v4874
    %v4876 = vpop.f32.mrb[0].mxu0
    %4877 = vmatprep.mubr.bf16.mxu0 %v3923
    %4878 = vmatmul.mubr.bf16.gmra.mrb[0].mxu0 %v3922
    %v4879 = vpop.f32.mrb[0].mxu0
    %v4880 = vadd.f32 %v4087, %v4879
    %v4881 = vpop.f32.mrb[0].mxu0
    %v4882 = vpop.f32.mrb[0].mxu0
    %v4883 = vadd.f32 %v4087, %v4882
    %v4884 = vpop.f32.mrb[0].mxu0
    %4885 = vmatprep.mubr.bf16.mxu0 %v3927
    %4886 = vmatmul.mubr.bf16.gmra.mrb[0].mxu0 %v3926
    %v4887 = vpop.f32.mrb[0].mxu0
    %v4888 = vadd.f32 %v4087, %v4887
    %v4889 = vpop.f32.mrb[0].mxu0
    %v4890 = vpop.f32.mrb[0].mxu0
    %v4891 = vadd.f32 %v4087, %v4890
    %v4892 = vpop.f32.mrb[0].mxu0
    %4893 = vmatprep.mubr.bf16.mxu0 %v3931
    %4894 = vmatmul.mubr.bf16.gmra.mrb[0].mxu0 %v3930
    %v4895 = vpop.f32.mrb[0].mxu0
    %v4896 = vadd.f32 %v4087, %v4895
    %v4897 = vpop.f32.mrb[0].mxu0
    %v4898 = vpop.f32.mrb[0].mxu0
    %v4899 = vadd.f32 %v4087, %v4898
    %v4900 = vpop.f32.mrb[0].mxu0
    %4901 = vmatprep.mubr.bf16.mxu0 %v3935
    %4902 = vmatmul.mubr.bf16.gmra.mrb[0].mxu0 %v3934
    %v4903 = vpop.f32.mrb[0].mxu0
    %v4904 = vadd.f32 %v4087, %v4903
    %v4905 = vpop.f32.mrb[0].mxu0
    %v4906 = vpop.f32.mrb[0].mxu0
    %v4907 = vadd.f32 %v4087, %v4906
    %v4908 = vpop.f32.mrb[0].mxu0
    %4909 = vmatprep.mubr.bf16.mxu0 %v3939
    %4910 = vmatmul.mubr.bf16.gmra.mrb[0].mxu0 %v3938
    %v4911 = vpop.f32.mrb[0].mxu0
    %v4912 = vadd.f32 %v4087, %v4911
    %v4913 = vpop.f32.mrb[0].mxu0
    %v4914 = vpop.f32.mrb[0].mxu0
    %v4915 = vadd.f32 %v4087, %v4914
    %v4916 = vpop.f32.mrb[0].mxu0
    %4917 = vmatprep.mubr.bf16.mxu0 %v3943
    %4918 = vmatmul.mubr.bf16.gmra.mrb[0].mxu0 %v3942
    %v4919 = vpop.f32.mrb[0].mxu0
    %v4920 = vadd.f32 %v4087, %v4919
    %v4921 = vpop.f32.mrb[0].mxu0
    %v4922 = vpop.f32.mrb[0].mxu0
    %v4923 = vadd.f32 %v4087, %v4922
    %v4924 = vpop.f32.mrb[0].mxu0
    %4925 = vdwg.mxu0
    %4926 = vmatprep.subr.bf16.mxu0 0
    %4927 = vmatpush1.bf16.msra.mxu0 %v4461
    %4928 = vmatprep.subr.bf16.mxu0 0
    %4929 = vmatpush1.bf16.msra.mxu0 %v4464
    %4930 = vmatprep.subr.bf16.mxu0 0
    %4931 = vmatpush1.bf16.msra.mxu0 %v4467
    %4932 = vmatprep.subr.bf16.mxu0 0
    %4933 = vmatpush1.bf16.msra.mxu0 %v4470
    %4934 = vmatprep.subr.bf16.mxu0 0
    %4935 = vmatpush1.bf16.msra.mxu0 %v4473
    %4936 = vmatprep.subr.bf16.mxu0 0
    %4937 = vmatpush1.bf16.msra.mxu0 %v4476
    %4938 = vmatprep.subr.bf16.mxu0 0
    %4939 = vmatpush1.bf16.msra.mxu0 %v4479
    %4940 = vmatprep.subr.bf16.mxu0 0
    %4941 = vmatpush1.bf16.msra.mxu0 %v4482
    %4942 = vmatprep.subr.bf16.mxu0 0
    %4943 = vmatpush1.bf16.msra.mxu0 %v4485
    %4944 = vmatprep.subr.bf16.mxu0 0
    %4945 = vmatpush1.bf16.msra.mxu0 %v4488
    %4946 = vmatprep.subr.bf16.mxu0 0
    %4947 = vmatpush1.bf16.msra.mxu0 %v4491
    %4948 = vmatprep.subr.bf16.mxu0 0
    %4949 = vmatpush1.bf16.msra.mxu0 %v4494
    %4950 = vmatprep.subr.bf16.mxu0 0
    %4951 = vmatpush1.bf16.msra.mxu0 %v4497
    %4952 = vmatprep.subr.bf16.mxu0 0
    %4953 = vmatpush1.bf16.msra.mxu0 %v4500
    %4954 = vmatprep.subr.bf16.mxu0 0
    %4955 = vmatpush1.bf16.msra.mxu0 %v4503
    %4956 = vmatprep.subr.bf16.mxu0 0
    %4957 = vmatpush1.bf16.msra.mxu0 %v4506
    %4958 = vmatprep.mubr.bf16.mxu0 %v3917
    %4959 = vmatmul.mubr.bf16.gmra.mrb[0].mxu0 %v3916
    %v4960 = vpop.f32.mrb[0].mxu0
    %v4961 = vadd.f32 %v4864, %v4960
    %v4962 = vpop.f32.mrb[0].mxu0
    %v4963 = vpop.f32.mrb[0].mxu0
    %v4964 = vadd.f32 %v4867, %v4963
    %v4965 = vpop.f32.mrb[0].mxu0
    %4966 = vmatprep.mubr.bf16.mxu0 %v3921
    %4967 = vmatmul.mubr.bf16.gmra.mrb[0].mxu0 %v3920
    %v4968 = vpop.f32.mrb[0].mxu0
    %v4969 = vadd.f32 %v4872, %v4968
    %v4970 = vpop.f32.mrb[0].mxu0
    %v4971 = vpop.f32.mrb[0].mxu0
    %v4972 = vadd.f32 %v4875, %v4971
    %v4973 = vpop.f32.mrb[0].mxu0
    %4974 = vmatprep.mubr.bf16.mxu0 %v3925
    %4975 = vmatmul.mubr.bf16.gmra.mrb[0].mxu0 %v3924
    %v4976 = vpop.f32.mrb[0].mxu0
    %v4977 = vadd.f32 %v4880, %v4976
    %v4978 = vpop.f32.mrb[0].mxu0
    %v4979 = vpop.f32.mrb[0].mxu0
    %v4980 = vadd.f32 %v4883, %v4979
    %v4981 = vpop.f32.mrb[0].mxu0
    %4982 = vmatprep.mubr.bf16.mxu0 %v3929
    %4983 = vmatmul.mubr.bf16.gmra.mrb[0].mxu0 %v3928
    %v4984 = vpop.f32.mrb[0].mxu0
    %v4985 = vadd.f32 %v4888, %v4984
    %v4986 = vpop.f32.mrb[0].mxu0
    %v4987 = vpop.f32.mrb[0].mxu0
    %v4988 = vadd.f32 %v4891, %v4987
    %v4989 = vpop.f32.mrb[0].mxu0
    %4990 = vmatprep.mubr.bf16.mxu0 %v3933
    %4991 = vmatmul.mubr.bf16.gmra.mrb[0].mxu0 %v3932
    %v4992 = vpop.f32.mrb[0].mxu0
    %v4993 = vadd.f32 %v4896, %v4992
    %v4994 = vpop.f32.mrb[0].mxu0
    %v4995 = vpop.f32.mrb[0].mxu0
    %v4996 = vadd.f32 %v4899, %v4995
    %v4997 = vpop.f32.mrb[0].mxu0
    %4998 = vmatprep.mubr.bf16.mxu0 %v3937
    %4999 = vmatmul.mubr.bf16.gmra.mrb[0].mxu0 %v3936
    %v5000 = vpop.f32.mrb[0].mxu0
    %v5001 = vadd.f32 %v4904, %v5000
    %v5002 = vpop.f32.mrb[0].mxu0
    %v5003 = vpop.f32.mrb[0].mxu0
    %v5004 = vadd.f32 %v4907, %v5003
    %v5005 = vpop.f32.mrb[0].mxu0
    %5006 = vmatprep.mubr.bf16.mxu0 %v3941
    %5007 = vmatmul.mubr.bf16.gmra.mrb[0].mxu0 %v3940
    %v5008 = vpop.f32.mrb[0].mxu0
    %v5009 = vadd.f32 %v4912, %v5008
    %v5010 = vpop.f32.mrb[0].mxu0
    %v5011 = vpop.f32.mrb[0].mxu0
    %v5012 = vadd.f32 %v4915, %v5011
    %v5013 = vpop.f32.mrb[0].mxu0
    %5014 = vmatprep.mubr.bf16.mxu0 %v3945
    %5015 = vmatmul.mubr.bf16.gmra.mrb[0].mxu0 %v3944
    %v5016 = vpop.f32.mrb[0].mxu0
    %v5017 = vadd.f32 %v4920, %v5016
    %v5018 = vpop.f32.mrb[0].mxu0
    %v5019 = vpop.f32.mrb[0].mxu0
    %v5020 = vadd.f32 %v4923, %v5019
    %v5021 = vpop.f32.mrb[0].mxu0
    %5022 = vdwg.mxu0
    %v5023 = vmax.f32 %v4751, 0.0
    %v5024 = vmax.f32 %v4753, 0.0
    %v5025 = vmax.f32 %v4961, 0.0
    %v5026 = vmax.f32 %v4755, 0.0
    %v5027 = vmax.f32 %v4757, 0.0
    %v5028 = vmax.f32 %v4964, 0.0
    %v5029 = vmax.f32 %v4761, 0.0
    %v5030 = vmax.f32 %v4763, 0.0
    %v5031 = vmax.f32 %v4969, 0.0
    %v5032 = vmax.f32 %v4765, 0.0
    %v5033 = vmax.f32 %v4767, 0.0
    %v5034 = vmax.f32 %v4972, 0.0
    %v5035 = vmax.f32 %v4771, 0.0
    %v5036 = vmax.f32 %v4773, 0.0
    %v5037 = vmax.f32 %v4977, 0.0
    %v5038 = vmax.f32 %v4775, 0.0
    %v5039 = vmax.f32 %v4777, 0.0
    %v5040 = vmax.f32 %v4980, 0.0
    %v5041 = vmax.f32 %v4781, 0.0
    %v5042 = vmax.f32 %v4783, 0.0
    %v5043 = vmax.f32 %v4985, 0.0
    %v5044 = vmax.f32 %v4785, 0.0
    %v5045 = vmax.f32 %v4787, 0.0
    %v5046 = vmax.f32 %v4988, 0.0
    %v5047 = vmax.f32 %v4791, 0.0
    %v5048 = vmax.f32 %v4793, 0.0
    %v5049 = vmax.f32 %v4993, 0.0
    %v5050 = vmax.f32 %v4795, 0.0
    %v5051 = vmax.f32 %v4797, 0.0
    %v5052 = vmax.f32 %v4996, 0.0
    %v5053 = vmax.f32 %v4801, 0.0
    %v5054 = vmax.f32 %v4803, 0.0
    %v5055 = vmax.f32 %v5001, 0.0
    %v5056 = vmax.f32 %v4805, 0.0
    %v5057 = vmax.f32 %v4807, 0.0
    %v5058 = vmax.f32 %v5004, 0.0
    %v5059 = vmax.f32 %v4811, 0.0
    %v5060 = vmax.f32 %v4813, 0.0
    %v5061 = vmax.f32 %v5009, 0.0
    %v5062 = vmax.f32 %v4815, 0.0
    %v5063 = vmax.f32 %v4817, 0.0
    %v5064 = vmax.f32 %v5012, 0.0
    %v5065 = vmax.f32 %v4821, 0.0
    %v5066 = vmax.f32 %v4823, 0.0
    %v5067 = vmax.f32 %v5017, 0.0
    %v5068 = vmax.f32 %v4825, 0.0
    %v5069 = vmax.f32 %v4827, 0.0
    %v5070 = vmax.f32 %v5020, 0.0
    %v5071 = vld [vmem:[%s7] sm:$0x7]
    %v5073 = vlaneseq
    %v5074 = vshrl.u32 %v5073, 7
    %v5075 = vsub.s32 0, %v5074
    %v5076 = vrot.slane %v5071, %v5075
    %v5077 = vlaneseq
    %v5078 = vshrl.u32 %v5077, 7
    %v5079 = vsub.s32 1, %v5078
    %v5080 = vrot.slane %v5071, %v5079
    %v5081 = vlaneseq
    %v5082 = vshrl.u32 %v5081, 7
    %v5083 = vsub.s32 2, %v5082
    %v5084 = vrot.slane %v5071, %v5083
    %v5088 = vmul.f32 %v5023, %v5076
    %v5089 = vmul.f32 %v5024, %v5080
    %v5090 = vmul.f32 %v5025, %v5084
    %v5091 = vmul.f32 %v5026, %v5076
    %v5092 = vmul.f32 %v5027, %v5080
    %v5093 = vmul.f32 %v5028, %v5084
    %v5094 = vmul.f32 %v5029, %v5076
    %v5095 = vmul.f32 %v5030, %v5080
    %v5096 = vmul.f32 %v5031, %v5084
    %v5097 = vmul.f32 %v5032, %v5076
    %v5098 = vmul.f32 %v5033, %v5080
    %v5099 = vmul.f32 %v5034, %v5084
    %v5100 = vmul.f32 %v5035, %v5076
    %v5101 = vmul.f32 %v5036, %v5080
    %v5102 = vmul.f32 %v5037, %v5084
    %v5103 = vmul.f32 %v5038, %v5076
    %v5104 = vmul.f32 %v5039, %v5080
    %v5105 = vmul.f32 %v5040, %v5084
    %v5106 = vmul.f32 %v5041, %v5076
    %v5107 = vmul.f32 %v5042, %v5080
    %v5108 = vmul.f32 %v5043, %v5084
    %v5109 = vmul.f32 %v5044, %v5076
    %v5110 = vmul.f32 %v5045, %v5080
    %v5111 = vmul.f32 %v5046, %v5084
    %v5112 = vmul.f32 %v5047, %v5076
    %v5113 = vmul.f32 %v5048, %v5080
    %v5114 = vmul.f32 %v5049, %v5084
    %v5115 = vmul.f32 %v5050, %v5076
    %v5116 = vmul.f32 %v5051, %v5080
    %v5117 = vmul.f32 %v5052, %v5084
    %v5118 = vmul.f32 %v5053, %v5076
    %v5119 = vmul.f32 %v5054, %v5080
    %v5120 = vmul.f32 %v5055, %v5084
    %v5121 = vmul.f32 %v5056, %v5076
    %v5122 = vmul.f32 %v5057, %v5080
    %v5123 = vmul.f32 %v5058, %v5084
    %v5124 = vmul.f32 %v5059, %v5076
    %v5125 = vmul.f32 %v5060, %v5080
    %v5126 = vmul.f32 %v5061, %v5084
    %v5127 = vmul.f32 %v5062, %v5076
    %v5128 = vmul.f32 %v5063, %v5080
    %v5129 = vmul.f32 %v5064, %v5084
    %v5130 = vmul.f32 %v5065, %v5076
    %v5131 = vmul.f32 %v5066, %v5080
    %v5132 = vmul.f32 %v5067, %v5084
    %v5133 = vmul.f32 %v5068, %v5076
    %v5134 = vmul.f32 %v5069, %v5080
    %v5135 = vmul.f32 %v5070, %v5084
    %v5136 = vadd.f32 %v5088, %v5089
    %v5137 = vadd.f32 %v5136, %v5090
    %5138 = vadd.xlane.f32.xlu0 %v5137
    %v5139 = vpop.xlane.xlu0 %5138
    %v5140 = vadd.f32 %v5091, %v5092
    %v5141 = vadd.f32 %v5140, %v5093
    %5142 = vadd.xlane.f32.xlu0 %v5141
    %v5143 = vpop.xlane.xlu0 %5142
    %v5144 = vadd.f32 %v5094, %v5095
    %v5145 = vadd.f32 %v5144, %v5096
    %5146 = vadd.xlane.f32.xlu0 %v5145
    %v5147 = vpop.xlane.xlu0 %5146
    %v5148 = vadd.f32 %v5097, %v5098
    %v5149 = vadd.f32 %v5148, %v5099
    %5150 = vadd.xlane.f32.xlu0 %v5149
    %v5151 = vpop.xlane.xlu0 %5150
    %v5152 = vadd.f32 %v5100, %v5101
    %v5153 = vadd.f32 %v5152, %v5102
    %5154 = vadd.xlane.f32.xlu0 %v5153
    %v5155 = vpop.xlane.xlu0 %5154
    %v5156 = vadd.f32 %v5103, %v5104
    %v5157 = vadd.f32 %v5156, %v5105
    %5158 = vadd.xlane.f32.xlu0 %v5157
    %v5159 = vpop.xlane.xlu0 %5158
    %v5160 = vadd.f32 %v5106, %v5107
    %v5161 = vadd.f32 %v5160, %v5108
    %5162 = vadd.xlane.f32.xlu0 %v5161
    %v5163 = vpop.xlane.xlu0 %5162
    %v5164 = vadd.f32 %v5109, %v5110
    %v5165 = vadd.f32 %v5164, %v5111
    %5166 = vadd.xlane.f32.xlu0 %v5165
    %v5167 = vpop.xlane.xlu0 %5166
    %v5168 = vadd.f32 %v5112, %v5113
    %v5169 = vadd.f32 %v5168, %v5114
    %5170 = vadd.xlane.f32.xlu0 %v5169
    %v5171 = vpop.xlane.xlu0 %5170
    %v5172 = vadd.f32 %v5115, %v5116
    %v5173 = vadd.f32 %v5172, %v5117
    %5174 = vadd.xlane.f32.xlu0 %v5173
    %v5175 = vpop.xlane.xlu0 %5174
    %v5176 = vadd.f32 %v5118, %v5119
    %v5177 = vadd.f32 %v5176, %v5120
    %5178 = vadd.xlane.f32.xlu0 %v5177
    %v5179 = vpop.xlane.xlu0 %5178
    %v5180 = vadd.f32 %v5121, %v5122
    %v5181 = vadd.f32 %v5180, %v5123
    %5182 = vadd.xlane.f32.xlu0 %v5181
    %v5183 = vpop.xlane.xlu0 %5182
    %v5184 = vadd.f32 %v5124, %v5125
    %v5185 = vadd.f32 %v5184, %v5126
    %5186 = vadd.xlane.f32.xlu0 %v5185
    %v5187 = vpop.xlane.xlu0 %5186
    %v5188 = vadd.f32 %v5127, %v5128
    %v5189 = vadd.f32 %v5188, %v5129
    %5190 = vadd.xlane.f32.xlu0 %v5189
    %v5191 = vpop.xlane.xlu0 %5190
    %v5192 = vadd.f32 %v5130, %v5131
    %v5193 = vadd.f32 %v5192, %v5132
    %5194 = vadd.xlane.f32.xlu0 %v5193
    %v5195 = vpop.xlane.xlu0 %5194
    %v5196 = vadd.f32 %v5133, %v5134
    %v5197 = vadd.f32 %v5196, %v5135
    %5198 = vadd.xlane.f32.xlu0 %v5197
    %v5199 = vpop.xlane.xlu0 %5198
    %v5200 = vld [vmem:[#allocation2] sm:$0x1]
    %v5202 = vlaneseq
    %v5203 = vshrl.u32 %v5202, 7
    %v5204 = vsub.s32 0, %v5203
    %v5205 = vrot.slane %v5200, %v5204
    %v5207 = vadd.f32 %v5139, %v5205
    %v5208 = vadd.f32 %v5143, %v5205
    %v5209 = vadd.f32 %v5147, %v5205
    %v5210 = vadd.f32 %v5151, %v5205
    %v5211 = vadd.f32 %v5155, %v5205
    %v5212 = vadd.f32 %v5159, %v5205
    %v5213 = vadd.f32 %v5163, %v5205
    %v5214 = vadd.f32 %v5167, %v5205
    %v5215 = vadd.f32 %v5171, %v5205
    %v5216 = vadd.f32 %v5175, %v5205
    %v5217 = vadd.f32 %v5179, %v5205
    %v5218 = vadd.f32 %v5183, %v5205
    %v5219 = vadd.f32 %v5187, %v5205
    %v5220 = vadd.f32 %v5191, %v5205
    %v5221 = vadd.f32 %v5195, %v5205
    %v5222 = vadd.f32 %v5199, %v5205
    %vm5223 = vcmask 7168
    %5224 = vst.msk [vmem:[#allocation10] sm:$0xff] %vm5223, %v5207
    %5225 = vst.msk [vmem:[#allocation10 + $0x8] sm:$0xff] %vm5223, %v5208
    %5226 = vst.msk [vmem:[#allocation10 + $0x10] sm:$0xff] %vm5223, %v5209
    %5227 = vst.msk [vmem:[#allocation10 + $0x18] sm:$0xff] %vm5223, %v5210
    %5228 = vst.msk [vmem:[#allocation10 + $0x20] sm:$0xff] %vm5223, %v5211
    %5229 = vst.msk [vmem:[#allocation10 + $0x28] sm:$0xff] %vm5223, %v5212
    %5230 = vst.msk [vmem:[#allocation10 + $0x30] sm:$0xff] %vm5223, %v5213
    %5231 = vst.msk [vmem:[#allocation10 + $0x38] sm:$0xff] %vm5223, %v5214
    %5232 = vst.msk [vmem:[#allocation10 + $0x40] sm:$0xff] %vm5223, %v5215
    %5233 = vst.msk [vmem:[#allocation10 + $0x48] sm:$0xff] %vm5223, %v5216
    %5234 = vst.msk [vmem:[#allocation10 + $0x50] sm:$0xff] %vm5223, %v5217
    %5235 = vst.msk [vmem:[#allocation10 + $0x58] sm:$0xff] %vm5223, %v5218
    %5236 = vst.msk [vmem:[#allocation10 + $0x60] sm:$0xff] %vm5223, %v5219
    %5237 = vst.msk [vmem:[#allocation10 + $0x68] sm:$0xff] %vm5223, %v5220
    %5238 = vst.msk [vmem:[#allocation10 + $0x70] sm:$0xff] %vm5223, %v5221
    %5239 = vst.msk [vmem:[#allocation10 + $0x78] sm:$0xff] %vm5223, %v5222
    // Predicated region
    $region54: #{tpu_custom_call.1} parent=1 // pred_check
      _
    $region55: #{tpu_custom_call.1} parent=1 // pred_check_branch
      %5241 = sbr.rel (0) target = $region57
    $region56: #{tpu_custom_call.1} parent=1 // pred_region
      // Predicated region
      $region58: #{tpu_custom_call.1} parent=56 // pred_check
        _
      $region59: #{tpu_custom_call.1} parent=56 // pred_check_branch
        %5243 = sbr.rel (0) target = $region61
      $region60: #{tpu_custom_call.1} parent=56 // pred_region
        // Predicated region
        $region62: #{tpu_custom_call.1} parent=60 // pred_check
          _
        $region63: #{tpu_custom_call.1} parent=60 // pred_check_branch
          %5245 = sbr.rel target = $region65
        $region64: #{tpu_custom_call.1} parent=60 // pred_region
          // Predicated region
          $region77: #{tpu_custom_call.1} parent=64 // pred_check
            _
          $region78: #{tpu_custom_call.1} parent=64 // pred_check_branch
            %5260 = sbr.rel (0) target = $region80
          $region79: #{tpu_custom_call.1} parent=64 // pred_region
            loop: start=0, step=1, limit=1
            $region81: #{tpu_custom_call.1} parent=79 // loop_pre_header
              _
            $region82: #{tpu_custom_call.1} parent=79 // loop_header
              %s5263 = sphi 0, %s5267
              %p5264 = scmp.ge.s32.totalorder %s5263, 1
              %s5268 = sphi [#allocation10], [#allocation10]
              %s5269 = sphi %s9, %s9
            $region83: #{tpu_custom_call.1} parent=79 // loop_header_branch
              %5266 = sbr.rel (%p5264) target = $region87
            $region84: #{tpu_custom_call.1} parent=79 // loop_body
              %v5270 = vld [vmem:[%s5268] sm:$0x3]
              %5271 = vst [vmem:[%s5269] sm:$0x3] %v5270
            $region85: #{tpu_custom_call.1} parent=79 // loop_footer
              %s5267 = sadd.s32 1, %s5263
            $region86: #{tpu_custom_call.1} parent=79 // loop_footer_branch
              %5262 = sbr.rel target = $region82
            $region87: #{tpu_custom_call.1} parent=79 // loop_exit
              _
          $region80: #{tpu_custom_call.1} parent=64 // pred_fallthru
            _
        $region65: #{tpu_custom_call.1} parent=60 // pred_fallthru
          _
        // Predicated region
        $region66: #{tpu_custom_call.1} parent=60 // pred_check
          _
        $region67: #{tpu_custom_call.1} parent=60 // pred_check_branch
          %5247 = sbr.rel (0) target = $region69
        $region68: #{tpu_custom_call.1} parent=60 // pred_region
          loop: start=0, step=1, limit=1
          $region70: #{tpu_custom_call.1} parent=68 // loop_pre_header
            _
          $region71: #{tpu_custom_call.1} parent=68 // loop_header
            %s5250 = sphi 0, %s5254
            %p5251 = scmp.ge.s32.totalorder %s5250, 1
            %s5255 = sphi [#allocation10], [#allocation10]
            %s5256 = sphi %s9, %s9
          $region72: #{tpu_custom_call.1} parent=68 // loop_header_branch
            %5253 = sbr.rel (%p5251) target = $region76
          $region73: #{tpu_custom_call.1} parent=68 // loop_body
            %v5257 = vld [vmem:[%s5255] sm:$0x3]
            %5258 = vst [vmem:[%s5256] sm:$0x3] %v5257
          $region74: #{tpu_custom_call.1} parent=68 // loop_footer
            %s5254 = sadd.s32 1, %s5250
          $region75: #{tpu_custom_call.1} parent=68 // loop_footer_branch
            %5249 = sbr.rel target = $region71
          $region76: #{tpu_custom_call.1} parent=68 // loop_exit
            _
        $region69: #{tpu_custom_call.1} parent=60 // pred_fallthru
          _
      $region61: #{tpu_custom_call.1} parent=56 // pred_fallthru
        _
      %5272 = vnop
    $region57: #{tpu_custom_call.1} parent=1 // pred_fallthru
      _
    // Predicated region
    $region88: #{tpu_custom_call.1} parent=1 // pred_check
      _
    $region89: #{tpu_custom_call.1} parent=1 // pred_check_branch
      %5274 = sbr.rel (0) target = $region91
    $region90: #{tpu_custom_call.1} parent=1 // pred_region
      _
    $region91: #{tpu_custom_call.1} parent=1 // pred_fallthru
      _
    %5275 = vsyncpa [#allocation4], 1
    %5276 = vsyncpa [#allocation6], 1
    %5277 = vsyncpa [#allocation9], 1

</llo_original>
